<compile_context>
chip_gen: v7x
topology: tpu7x:2x2x1
jax: 0.10.0
libtpu: 0.0.40
codegen_flags: <defaults>
</compile_context>

<pallas_src>
import functools

import jax
import jax.numpy as jnp
from jax.experimental import pallas as pl
from jax.experimental.pallas import tpu as pltpu

BG = 0.1          # gating bias constant of the GTrXL GatingMechanism
LN_EPS = 1e-6
MXU_DTYPE = jnp.bfloat16   # matmul operand dtype; accumulation stays f32


def _encoder_layer_kernel(x_ref, ln_ref, wqkv_ref, wfc_ref,
                          g1wy_ref, g1wu_ref, g1wg_ref, g1b_ref,
                          g2wy_ref, g2wu_ref, g2wg_ref, g2b_ref,
                          w1_ref, b1_ref, w2_ref, b2_ref,
                          out_ref, attn_ref, *, n_head, d_k, d_v):
    bb, L, D = x_ref.shape
    N = bb * L
    x = x_ref[...].reshape(N, D)                     # (N, D) rows = batch*seq

    def layernorm(v, gamma, beta):
        mu = jnp.mean(v, axis=-1, keepdims=True)
        var = jnp.mean((v - mu) ** 2, axis=-1, keepdims=True)
        return (v - mu) * jax.lax.rsqrt(var + LN_EPS) * gamma + beta

    def gate(wy_ref, wu_ref, wg_ref, b_ref, xg, yg):
        # fused GTrXL gate: pre = y@[Wr|Wz|Wg] + b,  xu = x@[Ur|Uz]
        # (bf16 MXU operands, f32 accumulation; sigmoid/tanh stay f32)
        xg_m = xg.astype(MXU_DTYPE)
        pre = jnp.dot(yg.astype(MXU_DTYPE), wy_ref[...],
                      preferred_element_type=jnp.float32) + b_ref[...]
        xu = jnp.dot(xg_m, wu_ref[...], preferred_element_type=jnp.float32)
        r = jax.nn.sigmoid(pre[:, :D] + xu[:, :D])
        z = jax.nn.sigmoid(pre[:, D:2 * D] + xu[:, D:])      # -BG folded into bias
        hcand = jnp.tanh(pre[:, 2 * D:] +
                         jnp.dot((r * xg).astype(MXU_DTYPE), wg_ref[...],
                                 preferred_element_type=jnp.float32))
        return (1.0 - z) * xg + z * hcand

    # ---- sublayer 1: pre-norm + multi-head self-attention --------------------
    h = layernorm(x, ln_ref[0], ln_ref[1])
    # single fused QKV projection (1/sqrt(d_k) already folded into the Q weights)
    qkv = jnp.dot(h.astype(MXU_DTYPE), wqkv_ref[...],
                  preferred_element_type=jnp.float32)
    hk = n_head * d_k
    q = qkv[:, :hk]
    k = qkv[:, hk:2 * hk]
    v = qkv[:, 2 * hk:]

    ctx_heads = []
    for head in range(n_head):                    # static loop; bb-batched einsums
        qh = q[:, head * d_k:(head + 1) * d_k].reshape(bb, L, d_k).astype(MXU_DTYPE)
        kh = k[:, head * d_k:(head + 1) * d_k].reshape(bb, L, d_k).astype(MXU_DTYPE)
        vh = v[:, head * d_v:(head + 1) * d_v].reshape(bb, L, d_v).astype(MXU_DTYPE)
        s = jnp.einsum('bld,bmd->blm', qh, kh,
                       preferred_element_type=jnp.float32)        # (bb, L, L)
        s = s - jnp.max(s, axis=-1, keepdims=True)
        e = jnp.exp(s)
        denom = jnp.sum(e, axis=-1, keepdims=True)
        # hot path: approx EUP reciprocal (free slot); stored probs: exact divide
        p = e * pl.reciprocal(denom, approx=True)
        attn_ref[:, head, :, :] = (e / denom).astype(attn_ref.dtype)  # streamed store
        ctx = jnp.einsum('blm,bmd->bld', p.astype(MXU_DTYPE), vh,
                         preferred_element_type=jnp.float32)      # (bb, L, d_v)
        ctx_heads.append(ctx.reshape(N, d_v))

    # head-fused output projection: one (N, H*d_v) x (H*d_v, D) matmul
    ctx_all = jnp.concatenate(ctx_heads, axis=-1)
    attn_out = jnp.dot(ctx_all.astype(MXU_DTYPE), wfc_ref[...],
                       preferred_element_type=jnp.float32)

    # ---- gate 1 ---------------------------------------------------------------
    x1 = gate(g1wy_ref, g1wu_ref, g1wg_ref, g1b_ref, x, attn_out)

    # ---- sublayer 2: pre-norm + position-wise FFN -----------------------------
    hn = layernorm(x1, ln_ref[2], ln_ref[3])
    ff = jnp.maximum(
        jnp.dot(hn.astype(MXU_DTYPE), w1_ref[...],
                preferred_element_type=jnp.float32) + b1_ref[...], 0.0)
    ff = jnp.dot(ff.astype(MXU_DTYPE), w2_ref[...],
                 preferred_element_type=jnp.float32) + b2_ref[...]

    # ---- gate 2 ---------------------------------------------------------------
    out = gate(g2wy_ref, g2wu_ref, g2wg_ref, g2b_ref, x1, ff)
    out_ref[...] = out.reshape(bb, L, D).astype(out_ref.dtype)


def _vmem_limit_bytes(fraction=0.75):
    """Scoped-VMEM limit derived from the chip (v5e/v6e: 128 MiB, v7x: 64 MiB)."""
    try:
        cap = int(pltpu.get_tpu_info().vmem_capacity_bytes)
    except Exception:
        cap = 64 * 1024 * 1024     # conservative (v7x-sized) fallback
    return max(32 * 1024 * 1024, min((cap * 3) // 4, 96 * 1024 * 1024))


def encoder_layer(x, p, *, n_head, d_k, d_v, batch_block=None,
                  attn_dtype=jnp.float32):
    B, L, D = x.shape
    if batch_block is None:
        # >= 2 grid steps so the "parallel" batch axis shards across v7x's two
        # TensorCores and activation blocks pipeline; re-derive at production
        # shapes so the block also fits the per-generation VMEM budget.
        batch_block = B // 2 if (B % 2 == 0 and B >= 2) else 1
    bb = batch_block
    assert B % bb == 0, "batch_block must divide batch size"

    # ---- wrapper-side weight prep (one-time fusion + bf16 cast) ---------------
    inv_temp = 1.0 / (d_k ** 0.5)
    cast = lambda a: a.astype(MXU_DTYPE)
    wqkv = cast(jnp.concatenate([p["wq"] * inv_temp, p["wk"], p["wv"]], axis=1))
    wfc = cast(p["wfc"])

    def pack_gate(w, b):
        # w: (6, D, D) = [Wr, Ur, Wz, Uz, Wg, Ug]; b: (6, D) matching biases.
        wy = cast(jnp.concatenate([w[0], w[2], w[4]], axis=1))    # (D, 3D) [Wr|Wz|Wg]
        wu = cast(jnp.concatenate([w[1], w[3]], axis=1))          # (D, 2D) [Ur|Uz]
        bias = jnp.concatenate(
            [b[0] + b[1], b[2] + b[3] - BG, b[4] + b[5]])[None, :]    # (1,3D) f32
        return wy, wu, cast(w[5]), bias

    g1wy, g1wu, g1wg, g1b = pack_gate(p["g1w"], p["g1b"])
    g2wy, g2wu, g2wg, g2b = pack_gate(p["g2w"], p["g2b"])

    args = (x, p["ln"], wqkv, wfc,
            g1wy, g1wu, g1wg, g1b,
            g2wy, g2wu, g2wg, g2b,
            cast(p["ffn_w1"]), p["ffn_b1"], cast(p["ffn_w2"]), p["ffn_b2"])

    out_shape = (jax.ShapeDtypeStruct((B, L, D), jnp.float32),
                 jax.ShapeDtypeStruct((B, n_head, L, L), attn_dtype))
    out_specs = (pl.BlockSpec((bb, L, D), lambda i: (i, 0, 0)),
                 pl.BlockSpec((bb, n_head, L, L), lambda i: (i, 0, 0, 0)))
    kernel = functools.partial(_encoder_layer_kernel,
                               n_head=n_head, d_k=d_k, d_v=d_v)

    def build(single_buffer_weights):
        def weight_spec(arr):
            zeros = (0,) * arr.ndim
            if single_buffer_weights:
                # grid-invariant index_map -> one VMEM buffer is enough; halves
                # the resident weight footprint vs default double-buffering.
                return pl.BlockSpec(arr.shape, lambda i, z=zeros: z,
                                    pipeline_mode=pl.Buffered(1))
            return pl.BlockSpec(arr.shape, lambda i, z=zeros: z)

        in_specs = [pl.BlockSpec((bb, L, D), lambda i: (i, 0, 0))]
        in_specs += [weight_spec(a) for a in args[1:]]
        return pl.pallas_call(
            kernel,
            grid=(B // bb,),
            in_specs=in_specs,
            out_specs=out_specs,
            out_shape=out_shape,
            compiler_params=pltpu.CompilerParams(
                # batch blocks are independent -> shard across TCs on v7x
                dimension_semantics=("parallel",),
                vmem_limit_bytes=_vmem_limit_bytes()),
        )

    try:
        return build(True)(*args)
    except Exception:
        # Fallback for jax versions without pl.Buffered(1) support on
        # pallas_call inputs: default (double-buffered) weight BlockSpecs.
        return build(False)(*args)


def ref_encoder_layer(x, p, *, n_head, d_k, d_v):
    """Pure-JAX f32 reference (same math) for a correctness check."""
    def ln(v, g, b):
        mu = v.mean(-1, keepdims=True)
        var = ((v - mu) ** 2).mean(-1, keepdims=True)
        return (v - mu) * jax.lax.rsqrt(var + LN_EPS) * g + b

    def gate(W, bvec, xg, yg):
        Wr, Ur, Wz, Uz, Wg, Ug = W
        br, bur, bz, buz, bgg, bug = bvec
        r = jax.nn.sigmoid(yg @ Wr + br + xg @ Ur + bur)
        z = jax.nn.sigmoid(yg @ Wz + bz + xg @ Uz + buz - BG)
        hh = jnp.tanh(yg @ Wg + bgg + (r * xg) @ Ug + bug)
        return (1 - z) * xg + z * hh

    B, L, D = x.shape
    h = ln(x, p["ln"][0], p["ln"][1])
    q = (h @ p["wq"]).reshape(B, L, n_head, d_k).transpose(0, 2, 1, 3)
    k = (h @ p["wk"]).reshape(B, L, n_head, d_k).transpose(0, 2, 1, 3)
    v = (h @ p["wv"]).reshape(B, L, n_head, d_v).transpose(0, 2, 1, 3)
    scores = jnp.einsum("bhld,bhmd->bhlm", q, k) / (d_k ** 0.5)
    attn = jax.nn.softmax(scores, axis=-1)
    o = jnp.einsum("bhlm,bhmd->bhld", attn, v).transpose(0, 2, 1, 3)
    o = o.reshape(B, L, n_head * d_v) @ p["wfc"]
    x1 = gate(p["g1w"], p["g1b"], x, o)
    hn = ln(x1, p["ln"][2], p["ln"][3])
    ff = jnp.maximum(hn @ p["ffn_w1"] + p["ffn_b1"][0], 0.0) @ p["ffn_w2"] + p["ffn_b2"][0]
    out = gate(p["g2w"], p["g2b"], x1, ff)
    return out, attn


def make_params(key, d_model, d_hidden, n_head, d_k, d_v):
    ks = jax.random.split(key, 16)
    s = 0.1
    ln = jnp.concatenate([
        jnp.ones((1, d_model)), jnp.zeros((1, d_model)),   # norm1 gamma, beta
        jnp.ones((1, d_model)), jnp.zeros((1, d_model)),   # norm2 gamma, beta
    ], axis=0).astype(jnp.float32)
    p = dict(
        ln=ln,
        wq=s * jax.random.normal(ks[0], (d_model, n_head * d_k), jnp.float32),
        wk=s * jax.random.normal(ks[1], (d_model, n_head * d_k), jnp.float32),
        wv=s * jax.random.normal(ks[2], (d_model, n_head * d_v), jnp.float32),
        wfc=s * jax.random.normal(ks[3], (n_head * d_v, d_model), jnp.float32),
        g1w=s * jax.random.normal(ks[4], (6, d_model, d_model), jnp.float32),
        g1b=s * jax.random.normal(ks[5], (6, d_model), jnp.float32),
        g2w=s * jax.random.normal(ks[6], (6, d_model, d_model), jnp.float32),
        g2b=s * jax.random.normal(ks[7], (6, d_model), jnp.float32),
        ffn_w1=s * jax.random.normal(ks[8], (d_model, d_hidden), jnp.float32),
        ffn_b1=s * jax.random.normal(ks[9], (1, d_hidden), jnp.float32),
        ffn_w2=s * jax.random.normal(ks[10], (d_hidden, d_model), jnp.float32),
        ffn_b2=s * jax.random.normal(ks[11], (1, d_model), jnp.float32),
    )
    return p


if __name__ == "__main__":
    B, L = 2, 8
    d_model, d_hidden, n_head, d_k, d_v = 32, 64, 2, 16, 16

    key = jax.random.PRNGKey(0)
    kx, kp = jax.random.split(key)
    x = jax.random.normal(kx, (B, L, d_model), jnp.float32)
    params = make_params(kp, d_model, d_hidden, n_head, d_k, d_v)

    out, attn = encoder_layer(x, params, n_head=n_head, d_k=d_k, d_v=d_v)
    out, attn = jax.block_until_ready((out, attn))

    out_ref, attn_ref = ref_encoder_layer(x, params, n_head=n_head, d_k=d_k, d_v=d_v)
    assert out.shape == (B, L, d_model) and attn.shape == (B, n_head, L, L)
    # tolerances reflect bf16 MXU operands (f32 accumulation) vs the f32 reference
    assert jnp.allclose(out, out_ref, atol=2e-2, rtol=2e-2)
    assert jnp.allclose(attn, attn_ref, atol=5e-3, rtol=5e-3)

    print("KERNEL_OK")
</pallas_src>

<mosaic_0001>
module attributes {stable_mosaic.version = 11 : i64} {
  func.func @_encoder_layer_kernel(%arg0: i32, %arg1: memref<1x8x32xf32, #tpu.memory_space<vmem>>, %arg2: memref<4x32xf32, #tpu.memory_space<vmem>>, %arg3: memref<32x96xbf16, #tpu.memory_space<vmem>>, %arg4: memref<32x32xbf16, #tpu.memory_space<vmem>>, %arg5: memref<32x96xbf16, #tpu.memory_space<vmem>>, %arg6: memref<32x64xbf16, #tpu.memory_space<vmem>>, %arg7: memref<32x32xbf16, #tpu.memory_space<vmem>>, %arg8: memref<1x96xf32, #tpu.memory_space<vmem>>, %arg9: memref<32x96xbf16, #tpu.memory_space<vmem>>, %arg10: memref<32x64xbf16, #tpu.memory_space<vmem>>, %arg11: memref<32x32xbf16, #tpu.memory_space<vmem>>, %arg12: memref<1x96xf32, #tpu.memory_space<vmem>>, %arg13: memref<32x64xbf16, #tpu.memory_space<vmem>>, %arg14: memref<1x64xf32, #tpu.memory_space<vmem>>, %arg15: memref<64x32xbf16, #tpu.memory_space<vmem>>, %arg16: memref<1x32xf32, #tpu.memory_space<vmem>>, %arg17: memref<1x8x32xf32, #tpu.memory_space<vmem>>, %arg18: memref<1x2x8x8xf32, #tpu.memory_space<vmem>>) attributes {dimension_semantics = [#tpu.dimension_semantics<parallel>], iteration_bounds = array<i64: 2>, scalar_prefetch = 0 : i64, scratch_operands = 0 : i64, tpu.core_type = #tpu.core_type<tc>, window_params = [{transform_indices = @transform_0, window_bounds = array<i64: 1, 8, 32>}, {pipeline_mode = #tpu.pipeline_mode<synchronous>, transform_indices = @transform_1, window_bounds = array<i64: 4, 32>}, {pipeline_mode = #tpu.pipeline_mode<synchronous>, transform_indices = @transform_2, window_bounds = array<i64: 32, 96>}, {pipeline_mode = #tpu.pipeline_mode<synchronous>, transform_indices = @transform_3, window_bounds = array<i64: 32, 32>}, {pipeline_mode = #tpu.pipeline_mode<synchronous>, transform_indices = @transform_4, window_bounds = array<i64: 32, 96>}, {pipeline_mode = #tpu.pipeline_mode<synchronous>, transform_indices = @transform_5, window_bounds = array<i64: 32, 64>}, {pipeline_mode = #tpu.pipeline_mode<synchronous>, transform_indices = @transform_6, window_bounds = array<i64: 32, 32>}, {pipeline_mode = #tpu.pipeline_mode<synchronous>, transform_indices = @transform_7, window_bounds = array<i64: 1, 96>}, {pipeline_mode = #tpu.pipeline_mode<synchronous>, transform_indices = @transform_8, window_bounds = array<i64: 32, 96>}, {pipeline_mode = #tpu.pipeline_mode<synchronous>, transform_indices = @transform_9, window_bounds = array<i64: 32, 64>}, {pipeline_mode = #tpu.pipeline_mode<synchronous>, transform_indices = @transform_10, window_bounds = array<i64: 32, 32>}, {pipeline_mode = #tpu.pipeline_mode<synchronous>, transform_indices = @transform_11, window_bounds = array<i64: 1, 96>}, {pipeline_mode = #tpu.pipeline_mode<synchronous>, transform_indices = @transform_12, window_bounds = array<i64: 32, 64>}, {pipeline_mode = #tpu.pipeline_mode<synchronous>, transform_indices = @transform_13, window_bounds = array<i64: 1, 64>}, {pipeline_mode = #tpu.pipeline_mode<synchronous>, transform_indices = @transform_14, window_bounds = array<i64: 64, 32>}, {pipeline_mode = #tpu.pipeline_mode<synchronous>, transform_indices = @transform_15, window_bounds = array<i64: 1, 32>}, {transform_indices = @transform_16, window_bounds = array<i64: 1, 8, 32>}, {transform_indices = @transform_17, window_bounds = array<i64: 1, 2, 8, 8>}]} {
    %c0 = arith.constant 0 : index
    %c0_0 = arith.constant 0 : index
    %c0_1 = arith.constant 0 : index
    %0 = vector.load %arg1[%c0, %c0_0, %c0_1] : memref<1x8x32xf32, #tpu.memory_space<vmem>>, vector<1x8x32xf32>
    %1 = vector.shape_cast %0 : vector<1x8x32xf32> to vector<8x32xf32>
    %c0_2 = arith.constant 0 : index
    %c0_3 = arith.constant 0 : index
    %2 = vector.load %arg2[%c0_2, %c0_3] : memref<4x32xf32, #tpu.memory_space<vmem>>, vector<1x32xf32>
    %3 = vector.shape_cast %2 : vector<1x32xf32> to vector<32xf32>
    %c1 = arith.constant 1 : index
    %c0_4 = arith.constant 0 : index
    %4 = vector.load %arg2[%c1, %c0_4] : memref<4x32xf32, #tpu.memory_space<vmem>>, vector<1x32xf32>
    %5 = vector.shape_cast %4 : vector<1x32xf32> to vector<32xf32>
    %cst = arith.constant dense<0.000000e+00> : vector<8xf32>
    %6 = vector.multi_reduction <add>, %1, %cst [1] : vector<8x32xf32> to vector<8xf32>
    %7 = vector.shape_cast %6 : vector<8xf32> to vector<8x1xf32>
    %cst_5 = arith.constant 3.200000e+01 : f32
    %8 = vector.broadcast %cst_5 : f32 to vector<8x1xf32>
    %9 = arith.divf %7, %8 : vector<8x1xf32>
    %10 = vector.broadcast %9 : vector<8x1xf32> to vector<8x32xf32>
    %11 = arith.subf %1, %10 : vector<8x32xf32>
    %12 = arith.mulf %11, %11 : vector<8x32xf32>
    %cst_6 = arith.constant dense<0.000000e+00> : vector<8xf32>
    %13 = vector.multi_reduction <add>, %12, %cst_6 [1] : vector<8x32xf32> to vector<8xf32>
    %14 = vector.shape_cast %13 : vector<8xf32> to vector<8x1xf32>
    %cst_7 = arith.constant 3.200000e+01 : f32
    %15 = vector.broadcast %cst_7 : f32 to vector<8x1xf32>
    %16 = arith.divf %14, %15 : vector<8x1xf32>
    %17 = vector.broadcast %9 : vector<8x1xf32> to vector<8x32xf32>
    %18 = arith.subf %1, %17 : vector<8x32xf32>
    %cst_8 = arith.constant 9.99999997E-7 : f32
    %19 = vector.broadcast %cst_8 : f32 to vector<8x1xf32>
    %20 = arith.addf %16, %19 : vector<8x1xf32>
    %21 = math.rsqrt %20 : vector<8x1xf32>
    %22 = vector.broadcast %21 : vector<8x1xf32> to vector<8x32xf32>
    %23 = arith.mulf %18, %22 : vector<8x32xf32>
    %24 = vector.shape_cast %3 : vector<32xf32> to vector<1x32xf32>
    %25 = vector.broadcast %24 : vector<1x32xf32> to vector<8x32xf32>
    %26 = arith.mulf %23, %25 : vector<8x32xf32>
    %27 = vector.shape_cast %5 : vector<32xf32> to vector<1x32xf32>
    %28 = vector.broadcast %27 : vector<1x32xf32> to vector<8x32xf32>
    %29 = arith.addf %26, %28 : vector<8x32xf32>
    %30 = arith.truncf %29 : vector<8x32xf32> to vector<8x32xbf16>
    %c0_9 = arith.constant 0 : index
    %c0_10 = arith.constant 0 : index
    %31 = vector.load %arg3[%c0_9, %c0_10] : memref<32x96xbf16, #tpu.memory_space<vmem>>, vector<32x96xbf16>
    %cst_11 = arith.constant dense<0.000000e+00> : vector<8x96xf32>
    %32 = tpu.matmul %30, %31, %cst_11 {dimension_numbers = #tpu.dot_dimension_numbers<[1], [0], [0], [1], [0, 0, 1, 1], [], []>} : vector<8x32xbf16>, vector<32x96xbf16>, vector<8x96xf32> -> vector<8x96xf32>
    %33 = vector.extract_strided_slice %32 {offsets = [0, 0], sizes = [8, 32], strides = [1, 1]} : vector<8x96xf32> to vector<8x32xf32>
    %34 = vector.extract_strided_slice %32 {offsets = [0, 32], sizes = [8, 32], strides = [1, 1]} : vector<8x96xf32> to vector<8x32xf32>
    %35 = vector.extract_strided_slice %32 {offsets = [0, 64], sizes = [8, 32], strides = [1, 1]} : vector<8x96xf32> to vector<8x32xf32>
    %36 = vector.extract_strided_slice %33 {offsets = [0, 0], sizes = [8, 16], strides = [1, 1]} : vector<8x32xf32> to vector<8x16xf32>
    %37 = vector.shape_cast %36 : vector<8x16xf32> to vector<1x8x16xf32>
    %38 = arith.truncf %37 : vector<1x8x16xf32> to vector<1x8x16xbf16>
    %39 = vector.extract_strided_slice %34 {offsets = [0, 0], sizes = [8, 16], strides = [1, 1]} : vector<8x32xf32> to vector<8x16xf32>
    %40 = vector.shape_cast %39 : vector<8x16xf32> to vector<1x8x16xf32>
    %41 = arith.truncf %40 : vector<1x8x16xf32> to vector<1x8x16xbf16>
    %42 = vector.extract_strided_slice %35 {offsets = [0, 0], sizes = [8, 16], strides = [1, 1]} : vector<8x32xf32> to vector<8x16xf32>
    %43 = vector.shape_cast %42 : vector<8x16xf32> to vector<1x8x16xf32>
    %44 = arith.truncf %43 : vector<1x8x16xf32> to vector<1x8x16xbf16>
    "tpu.trace_start"() <{level = 10 : i32, message = "bld,bmd->blm"}> : () -> ()
    %cst_12 = arith.constant dense<0.000000e+00> : vector<1x8x8xf32>
    %45 = tpu.matmul %38, %41, %cst_12 {dimension_numbers = #tpu.dot_dimension_numbers<[2], [2], [1], [1], [0, 0, 0, 1, 1, 1], [0], [0]>} : vector<1x8x16xbf16>, vector<1x8x16xbf16>, vector<1x8x8xf32> -> vector<1x8x8xf32>
    "tpu.trace_stop"() : () -> ()
    %cst_13 = arith.constant dense<0xFF800000> : vector<1x8xf32>
    %46 = vector.multi_reduction <maximumf>, %45, %cst_13 [2] : vector<1x8x8xf32> to vector<1x8xf32>
    %47 = vector.shape_cast %46 : vector<1x8xf32> to vector<1x8x1xf32>
    %48 = vector.broadcast %47 : vector<1x8x1xf32> to vector<1x8x8xf32>
    %49 = arith.subf %45, %48 : vector<1x8x8xf32>
    %50 = math.exp %49 : vector<1x8x8xf32>
    %cst_14 = arith.constant dense<0.000000e+00> : vector<1x8xf32>
    %51 = vector.multi_reduction <add>, %50, %cst_14 [2] : vector<1x8x8xf32> to vector<1x8xf32>
    %52 = vector.shape_cast %51 : vector<1x8xf32> to vector<1x8x1xf32>
    %53 = tpu.reciprocal %52 {approx = true} : vector<1x8x1xf32> -> vector<1x8x1xf32>
    %54 = vector.broadcast %53 : vector<1x8x1xf32> to vector<1x8x8xf32>
    %55 = arith.mulf %50, %54 : vector<1x8x8xf32>
    %56 = vector.broadcast %52 : vector<1x8x1xf32> to vector<1x8x8xf32>
    %57 = arith.divf %50, %56 : vector<1x8x8xf32>
    %c0_15 = arith.constant 0 : index
    %c0_16 = arith.constant 0 : index
    %c0_17 = arith.constant 0 : index
    %c0_18 = arith.constant 0 : index
    %58 = vector.load %arg18[%c0_15, %c0_16, %c0_17, %c0_18] : memref<1x2x8x8xf32, #tpu.memory_space<vmem>>, vector<1x1x8x8xf32>
    %59 = vector.shape_cast %58 : vector<1x1x8x8xf32> to vector<1x8x8xf32>
    %60 = vector.shape_cast %57 : vector<1x8x8xf32> to vector<1x1x8x8xf32>
    tpu.vector_store %arg18[%c0_15, %c0_16, %c0_17, %c0_18], %60 {strides = array<i32>} : memref<1x2x8x8xf32, #tpu.memory_space<vmem>>, vector<1x1x8x8xf32>,
    %61 = arith.truncf %55 : vector<1x8x8xf32> to vector<1x8x8xbf16>
    "tpu.trace_start"() <{level = 10 : i32, message = "blm,bmd->bld"}> : () -> ()
    %cst_19 = arith.constant dense<0.000000e+00> : vector<1x8x16xf32>
    %62 = tpu.matmul %61, %44, %cst_19 {dimension_numbers = #tpu.dot_dimension_numbers<[2], [1], [1], [2], [0, 0, 0, 1, 1, 2], [0], [0]>} : vector<1x8x8xbf16>, vector<1x8x16xbf16>, vector<1x8x16xf32> -> vector<1x8x16xf32>
    "tpu.trace_stop"() : () -> ()
    %63 = vector.shape_cast %62 : vector<1x8x16xf32> to vector<8x16xf32>
    %64 = vector.extract_strided_slice %33 {offsets = [0, 16], sizes = [8, 16], strides = [1, 1]} : vector<8x32xf32> to vector<8x16xf32>
    %65 = vector.shape_cast %64 : vector<8x16xf32> to vector<1x8x16xf32>
    %66 = arith.truncf %65 : vector<1x8x16xf32> to vector<1x8x16xbf16>
    %67 = vector.extract_strided_slice %34 {offsets = [0, 16], sizes = [8, 16], strides = [1, 1]} : vector<8x32xf32> to vector<8x16xf32>
    %68 = vector.shape_cast %67 : vector<8x16xf32> to vector<1x8x16xf32>
    %69 = arith.truncf %68 : vector<1x8x16xf32> to vector<1x8x16xbf16>
    %70 = vector.extract_strided_slice %35 {offsets = [0, 16], sizes = [8, 16], strides = [1, 1]} : vector<8x32xf32> to vector<8x16xf32>
    %71 = vector.shape_cast %70 : vector<8x16xf32> to vector<1x8x16xf32>
    %72 = arith.truncf %71 : vector<1x8x16xf32> to vector<1x8x16xbf16>
    "tpu.trace_start"() <{level = 10 : i32, message = "bld,bmd->blm"}> : () -> ()
    %cst_20 = arith.constant dense<0.000000e+00> : vector<1x8x8xf32>
    %73 = tpu.matmul %66, %69, %cst_20 {dimension_numbers = #tpu.dot_dimension_numbers<[2], [2], [1], [1], [0, 0, 0, 1, 1, 1], [0], [0]>} : vector<1x8x16xbf16>, vector<1x8x16xbf16>, vector<1x8x8xf32> -> vector<1x8x8xf32>
    "tpu.trace_stop"() : () -> ()
    %cst_21 = arith.constant dense<0xFF800000> : vector<1x8xf32>
    %74 = vector.multi_reduction <maximumf>, %73, %cst_21 [2] : vector<1x8x8xf32> to vector<1x8xf32>
    %75 = vector.shape_cast %74 : vector<1x8xf32> to vector<1x8x1xf32>
    %76 = vector.broadcast %75 : vector<1x8x1xf32> to vector<1x8x8xf32>
    %77 = arith.subf %73, %76 : vector<1x8x8xf32>
    %78 = math.exp %77 : vector<1x8x8xf32>
    %cst_22 = arith.constant dense<0.000000e+00> : vector<1x8xf32>
    %79 = vector.multi_reduction <add>, %78, %cst_22 [2] : vector<1x8x8xf32> to vector<1x8xf32>
    %80 = vector.shape_cast %79 : vector<1x8xf32> to vector<1x8x1xf32>
    %81 = tpu.reciprocal %80 {approx = true} : vector<1x8x1xf32> -> vector<1x8x1xf32>
    %82 = vector.broadcast %81 : vector<1x8x1xf32> to vector<1x8x8xf32>
    %83 = arith.mulf %78, %82 : vector<1x8x8xf32>
    %84 = vector.broadcast %80 : vector<1x8x1xf32> to vector<1x8x8xf32>
    %85 = arith.divf %78, %84 : vector<1x8x8xf32>
    %c0_23 = arith.constant 0 : index
    %c1_24 = arith.constant 1 : index
    %c0_25 = arith.constant 0 : index
    %c0_26 = arith.constant 0 : index
    %86 = vector.load %arg18[%c0_23, %c1_24, %c0_25, %c0_26] : memref<1x2x8x8xf32, #tpu.memory_space<vmem>>, vector<1x1x8x8xf32>
    %87 = vector.shape_cast %86 : vector<1x1x8x8xf32> to vector<1x8x8xf32>
    %88 = vector.shape_cast %85 : vector<1x8x8xf32> to vector<1x1x8x8xf32>
    tpu.vector_store %arg18[%c0_23, %c1_24, %c0_25, %c0_26], %88 {strides = array<i32>} : memref<1x2x8x8xf32, #tpu.memory_space<vmem>>, vector<1x1x8x8xf32>,
    %89 = arith.truncf %83 : vector<1x8x8xf32> to vector<1x8x8xbf16>
    "tpu.trace_start"() <{level = 10 : i32, message = "blm,bmd->bld"}> : () -> ()
    %cst_27 = arith.constant dense<0.000000e+00> : vector<1x8x16xf32>
    %90 = tpu.matmul %89, %72, %cst_27 {dimension_numbers = #tpu.dot_dimension_numbers<[2], [1], [1], [2], [0, 0, 0, 1, 1, 2], [0], [0]>} : vector<1x8x8xbf16>, vector<1x8x16xbf16>, vector<1x8x16xf32> -> vector<1x8x16xf32>
    "tpu.trace_stop"() : () -> ()
    %91 = vector.shape_cast %90 : vector<1x8x16xf32> to vector<8x16xf32>
    %92 = tpu.concatenate %63, %91 in 1 : vector<8x16xf32>, vector<8x16xf32> -> vector<8x32xf32>
    %93 = arith.truncf %92 : vector<8x32xf32> to vector<8x32xbf16>
    %c0_28 = arith.constant 0 : index
    %c0_29 = arith.constant 0 : index
    %94 = vector.load %arg4[%c0_28, %c0_29] : memref<32x32xbf16, #tpu.memory_space<vmem>>, vector<32x32xbf16>
    %cst_30 = arith.constant dense<0.000000e+00> : vector<8x32xf32>
    %95 = tpu.matmul %93, %94, %cst_30 {dimension_numbers = #tpu.dot_dimension_numbers<[1], [0], [0], [1], [0, 0, 1, 1], [], []>} : vector<8x32xbf16>, vector<32x32xbf16>, vector<8x32xf32> -> vector<8x32xf32>
    %96 = arith.truncf %1 : vector<8x32xf32> to vector<8x32xbf16>
    %97 = arith.truncf %95 : vector<8x32xf32> to vector<8x32xbf16>
    %c0_31 = arith.constant 0 : index
    %c0_32 = arith.constant 0 : index
    %98 = vector.load %arg5[%c0_31, %c0_32] : memref<32x96xbf16, #tpu.memory_space<vmem>>, vector<32x96xbf16>
    %cst_33 = arith.constant dense<0.000000e+00> : vector<8x96xf32>
    %99 = tpu.matmul %97, %98, %cst_33 {dimension_numbers = #tpu.dot_dimension_numbers<[1], [0], [0], [1], [0, 0, 1, 1], [], []>} : vector<8x32xbf16>, vector<32x96xbf16>, vector<8x96xf32> -> vector<8x96xf32>
    %c0_34 = arith.constant 0 : index
    %c0_35 = arith.constant 0 : index
    %100 = vector.load %arg8[%c0_34, %c0_35] : memref<1x96xf32, #tpu.memory_space<vmem>>, vector<1x96xf32>
    %101 = vector.broadcast %100 : vector<1x96xf32> to vector<8x96xf32>
    %102 = arith.addf %99, %101 : vector<8x96xf32>
    %c0_36 = arith.constant 0 : index
    %c0_37 = arith.constant 0 : index
    %103 = vector.load %arg6[%c0_36, %c0_37] : memref<32x64xbf16, #tpu.memory_space<vmem>>, vector<32x64xbf16>
    %cst_38 = arith.constant dense<0.000000e+00> : vector<8x64xf32>
    %104 = tpu.matmul %96, %103, %cst_38 {dimension_numbers = #tpu.dot_dimension_numbers<[1], [0], [0], [1], [0, 0, 1, 1], [], []>} : vector<8x32xbf16>, vector<32x64xbf16>, vector<8x64xf32> -> vector<8x64xf32>
    %105 = vector.extract_strided_slice %102 {offsets = [0, 0], sizes = [8, 32], strides = [1, 1]} : vector<8x96xf32> to vector<8x32xf32>
    %106 = vector.extract_strided_slice %104 {offsets = [0, 0], sizes = [8, 32], strides = [1, 1]} : vector<8x64xf32> to vector<8x32xf32>
    %107 = arith.addf %105, %106 : vector<8x32xf32>
    %108 = arith.negf %107 : vector<8x32xf32>
    %109 = math.exp %108 : vector<8x32xf32>
    %cst_39 = arith.constant 1.000000e+00 : f32
    %110 = vector.broadcast %cst_39 : f32 to vector<8x32xf32>
    %111 = arith.addf %110, %109 : vector<8x32xf32>
    %112 = arith.divf %110, %111 : vector<8x32xf32>
    %113 = vector.extract_strided_slice %102 {offsets = [0, 32], sizes = [8, 32], strides = [1, 1]} : vector<8x96xf32> to vector<8x32xf32>
    %114 = vector.extract_strided_slice %104 {offsets = [0, 32], sizes = [8, 32], strides = [1, 1]} : vector<8x64xf32> to vector<8x32xf32>
    %115 = arith.addf %113, %114 : vector<8x32xf32>
    %116 = arith.negf %115 : vector<8x32xf32>
    %117 = math.exp %116 : vector<8x32xf32>
    %cst_40 = arith.constant 1.000000e+00 : f32
    %118 = vector.broadcast %cst_40 : f32 to vector<8x32xf32>
    %119 = arith.addf %118, %117 : vector<8x32xf32>
    %120 = arith.divf %118, %119 : vector<8x32xf32>
    %121 = vector.extract_strided_slice %102 {offsets = [0, 64], sizes = [8, 32], strides = [1, 1]} : vector<8x96xf32> to vector<8x32xf32>
    %122 = arith.mulf %112, %1 : vector<8x32xf32>
    %123 = arith.truncf %122 : vector<8x32xf32> to vector<8x32xbf16>
    %c0_41 = arith.constant 0 : index
    %c0_42 = arith.constant 0 : index
    %124 = vector.load %arg7[%c0_41, %c0_42] : memref<32x32xbf16, #tpu.memory_space<vmem>>, vector<32x32xbf16>
    %cst_43 = arith.constant dense<0.000000e+00> : vector<8x32xf32>
    %125 = tpu.matmul %123, %124, %cst_43 {dimension_numbers = #tpu.dot_dimension_numbers<[1], [0], [0], [1], [0, 0, 1, 1], [], []>} : vector<8x32xbf16>, vector<32x32xbf16>, vector<8x32xf32> -> vector<8x32xf32>
    %126 = arith.addf %121, %125 : vector<8x32xf32>
    %127 = math.tanh %126 : vector<8x32xf32>
    %cst_44 = arith.constant 1.000000e+00 : f32
    %128 = vector.broadcast %cst_44 : f32 to vector<8x32xf32>
    %129 = arith.subf %128, %120 : vector<8x32xf32>
    %130 = arith.mulf %129, %1 : vector<8x32xf32>
    %131 = arith.mulf %120, %127 : vector<8x32xf32>
    %132 = arith.addf %130, %131 : vector<8x32xf32>
    %c2 = arith.constant 2 : index
    %c0_45 = arith.constant 0 : index
    %133 = vector.load %arg2[%c2, %c0_45] : memref<4x32xf32, #tpu.memory_space<vmem>>, vector<1x32xf32>
    %134 = vector.shape_cast %133 : vector<1x32xf32> to vector<32xf32>
    %c3 = arith.constant 3 : index
    %c0_46 = arith.constant 0 : index
    %135 = vector.load %arg2[%c3, %c0_46] : memref<4x32xf32, #tpu.memory_space<vmem>>, vector<1x32xf32>
    %136 = vector.shape_cast %135 : vector<1x32xf32> to vector<32xf32>
    %cst_47 = arith.constant dense<0.000000e+00> : vector<8xf32>
    %137 = vector.multi_reduction <add>, %132, %cst_47 [1] : vector<8x32xf32> to vector<8xf32>
    %138 = vector.shape_cast %137 : vector<8xf32> to vector<8x1xf32>
    %cst_48 = arith.constant 3.200000e+01 : f32
    %139 = vector.broadcast %cst_48 : f32 to vector<8x1xf32>
    %140 = arith.divf %138, %139 : vector<8x1xf32>
    %141 = vector.broadcast %140 : vector<8x1xf32> to vector<8x32xf32>
    %142 = arith.subf %132, %141 : vector<8x32xf32>
    %143 = arith.mulf %142, %142 : vector<8x32xf32>
    %cst_49 = arith.constant dense<0.000000e+00> : vector<8xf32>
    %144 = vector.multi_reduction <add>, %143, %cst_49 [1] : vector<8x32xf32> to vector<8xf32>
    %145 = vector.shape_cast %144 : vector<8xf32> to vector<8x1xf32>
    %cst_50 = arith.constant 3.200000e+01 : f32
    %146 = vector.broadcast %cst_50 : f32 to vector<8x1xf32>
    %147 = arith.divf %145, %146 : vector<8x1xf32>
    %148 = vector.broadcast %140 : vector<8x1xf32> to vector<8x32xf32>
    %149 = arith.subf %132, %148 : vector<8x32xf32>
    %cst_51 = arith.constant 9.99999997E-7 : f32
    %150 = vector.broadcast %cst_51 : f32 to vector<8x1xf32>
    %151 = arith.addf %147, %150 : vector<8x1xf32>
    %152 = math.rsqrt %151 : vector<8x1xf32>
    %153 = vector.broadcast %152 : vector<8x1xf32> to vector<8x32xf32>
    %154 = arith.mulf %149, %153 : vector<8x32xf32>
    %155 = vector.shape_cast %134 : vector<32xf32> to vector<1x32xf32>
    %156 = vector.broadcast %155 : vector<1x32xf32> to vector<8x32xf32>
    %157 = arith.mulf %154, %156 : vector<8x32xf32>
    %158 = vector.shape_cast %136 : vector<32xf32> to vector<1x32xf32>
    %159 = vector.broadcast %158 : vector<1x32xf32> to vector<8x32xf32>
    %160 = arith.addf %157, %159 : vector<8x32xf32>
    %161 = arith.truncf %160 : vector<8x32xf32> to vector<8x32xbf16>
    %c0_52 = arith.constant 0 : index
    %c0_53 = arith.constant 0 : index
    %162 = vector.load %arg13[%c0_52, %c0_53] : memref<32x64xbf16, #tpu.memory_space<vmem>>, vector<32x64xbf16>
    %cst_54 = arith.constant dense<0.000000e+00> : vector<8x64xf32>
    %163 = tpu.matmul %161, %162, %cst_54 {dimension_numbers = #tpu.dot_dimension_numbers<[1], [0], [0], [1], [0, 0, 1, 1], [], []>} : vector<8x32xbf16>, vector<32x64xbf16>, vector<8x64xf32> -> vector<8x64xf32>
    %c0_55 = arith.constant 0 : index
    %c0_56 = arith.constant 0 : index
    %164 = vector.load %arg14[%c0_55, %c0_56] : memref<1x64xf32, #tpu.memory_space<vmem>>, vector<1x64xf32>
    %165 = vector.broadcast %164 : vector<1x64xf32> to vector<8x64xf32>
    %166 = arith.addf %163, %165 : vector<8x64xf32>
    %cst_57 = arith.constant 0.000000e+00 : f32
    %167 = vector.broadcast %cst_57 : f32 to vector<8x64xf32>
    %168 = arith.maximumf %166, %167 : vector<8x64xf32>
    %169 = arith.truncf %168 : vector<8x64xf32> to vector<8x64xbf16>
    %c0_58 = arith.constant 0 : index
    %c0_59 = arith.constant 0 : index
    %170 = vector.load %arg15[%c0_58, %c0_59] : memref<64x32xbf16, #tpu.memory_space<vmem>>, vector<64x32xbf16>
    %cst_60 = arith.constant dense<0.000000e+00> : vector<8x32xf32>
    %171 = tpu.matmul %169, %170, %cst_60 {dimension_numbers = #tpu.dot_dimension_numbers<[1], [0], [0], [1], [0, 0, 1, 1], [], []>} : vector<8x64xbf16>, vector<64x32xbf16>, vector<8x32xf32> -> vector<8x32xf32>
    %c0_61 = arith.constant 0 : index
    %c0_62 = arith.constant 0 : index
    %172 = vector.load %arg16[%c0_61, %c0_62] : memref<1x32xf32, #tpu.memory_space<vmem>>, vector<1x32xf32>
    %173 = vector.broadcast %172 : vector<1x32xf32> to vector<8x32xf32>
    %174 = arith.addf %171, %173 : vector<8x32xf32>
    %175 = arith.truncf %132 : vector<8x32xf32> to vector<8x32xbf16>
    %176 = arith.truncf %174 : vector<8x32xf32> to vector<8x32xbf16>
    %c0_63 = arith.constant 0 : index
    %c0_64 = arith.constant 0 : index
    %177 = vector.load %arg9[%c0_63, %c0_64] : memref<32x96xbf16, #tpu.memory_space<vmem>>, vector<32x96xbf16>
    %cst_65 = arith.constant dense<0.000000e+00> : vector<8x96xf32>
    %178 = tpu.matmul %176, %177, %cst_65 {dimension_numbers = #tpu.dot_dimension_numbers<[1], [0], [0], [1], [0, 0, 1, 1], [], []>} : vector<8x32xbf16>, vector<32x96xbf16>, vector<8x96xf32> -> vector<8x96xf32>
    %c0_66 = arith.constant 0 : index
    %c0_67 = arith.constant 0 : index
    %179 = vector.load %arg12[%c0_66, %c0_67] : memref<1x96xf32, #tpu.memory_space<vmem>>, vector<1x96xf32>
    %180 = vector.broadcast %179 : vector<1x96xf32> to vector<8x96xf32>
    %181 = arith.addf %178, %180 : vector<8x96xf32>
    %c0_68 = arith.constant 0 : index
    %c0_69 = arith.constant 0 : index
    %182 = vector.load %arg10[%c0_68, %c0_69] : memref<32x64xbf16, #tpu.memory_space<vmem>>, vector<32x64xbf16>
    %cst_70 = arith.constant dense<0.000000e+00> : vector<8x64xf32>
    %183 = tpu.matmul %175, %182, %cst_70 {dimension_numbers = #tpu.dot_dimension_numbers<[1], [0], [0], [1], [0, 0, 1, 1], [], []>} : vector<8x32xbf16>, vector<32x64xbf16>, vector<8x64xf32> -> vector<8x64xf32>
    %184 = vector.extract_strided_slice %181 {offsets = [0, 0], sizes = [8, 32], strides = [1, 1]} : vector<8x96xf32> to vector<8x32xf32>
    %185 = vector.extract_strided_slice %183 {offsets = [0, 0], sizes = [8, 32], strides = [1, 1]} : vector<8x64xf32> to vector<8x32xf32>
    %186 = arith.addf %184, %185 : vector<8x32xf32>
    %187 = arith.negf %186 : vector<8x32xf32>
    %188 = math.exp %187 : vector<8x32xf32>
    %cst_71 = arith.constant 1.000000e+00 : f32
    %189 = vector.broadcast %cst_71 : f32 to vector<8x32xf32>
    %190 = arith.addf %189, %188 : vector<8x32xf32>
    %191 = arith.divf %189, %190 : vector<8x32xf32>
    %192 = vector.extract_strided_slice %181 {offsets = [0, 32], sizes = [8, 32], strides = [1, 1]} : vector<8x96xf32> to vector<8x32xf32>
    %193 = vector.extract_strided_slice %183 {offsets = [0, 32], sizes = [8, 32], strides = [1, 1]} : vector<8x64xf32> to vector<8x32xf32>
    %194 = arith.addf %192, %193 : vector<8x32xf32>
    %195 = arith.negf %194 : vector<8x32xf32>
    %196 = math.exp %195 : vector<8x32xf32>
    %cst_72 = arith.constant 1.000000e+00 : f32
    %197 = vector.broadcast %cst_72 : f32 to vector<8x32xf32>
    %198 = arith.addf %197, %196 : vector<8x32xf32>
    %199 = arith.divf %197, %198 : vector<8x32xf32>
    %200 = vector.extract_strided_slice %181 {offsets = [0, 64], sizes = [8, 32], strides = [1, 1]} : vector<8x96xf32> to vector<8x32xf32>
    %201 = arith.mulf %191, %132 : vector<8x32xf32>
    %202 = arith.truncf %201 : vector<8x32xf32> to vector<8x32xbf16>
    %c0_73 = arith.constant 0 : index
    %c0_74 = arith.constant 0 : index
    %203 = vector.load %arg11[%c0_73, %c0_74] : memref<32x32xbf16, #tpu.memory_space<vmem>>, vector<32x32xbf16>
    %cst_75 = arith.constant dense<0.000000e+00> : vector<8x32xf32>
    %204 = tpu.matmul %202, %203, %cst_75 {dimension_numbers = #tpu.dot_dimension_numbers<[1], [0], [0], [1], [0, 0, 1, 1], [], []>} : vector<8x32xbf16>, vector<32x32xbf16>, vector<8x32xf32> -> vector<8x32xf32>
    %205 = arith.addf %200, %204 : vector<8x32xf32>
    %206 = math.tanh %205 : vector<8x32xf32>
    %cst_76 = arith.constant 1.000000e+00 : f32
    %207 = vector.broadcast %cst_76 : f32 to vector<8x32xf32>
    %208 = arith.subf %207, %199 : vector<8x32xf32>
    %209 = arith.mulf %208, %132 : vector<8x32xf32>
    %210 = arith.mulf %199, %206 : vector<8x32xf32>
    %211 = arith.addf %209, %210 : vector<8x32xf32>
    %212 = vector.shape_cast %211 : vector<8x32xf32> to vector<1x8x32xf32>
    %c0_77 = arith.constant 0 : index
    %c0_78 = arith.constant 0 : index
    %c0_79 = arith.constant 0 : index
    %213 = vector.load %arg17[%c0_77, %c0_78, %c0_79] : memref<1x8x32xf32, #tpu.memory_space<vmem>>, vector<1x8x32xf32>
    tpu.vector_store %arg17[%c0_77, %c0_78, %c0_79], %212 {strides = array<i32>} : memref<1x8x32xf32, #tpu.memory_space<vmem>>, vector<1x8x32xf32>,
    return
  }
  func.func @transform_0(%arg0: i32) -> (i32, i32, i32) {
    %c0_i32 = arith.constant 0 : i32
    %c0_i32_0 = arith.constant 0 : i32
    %c0_i32_1 = arith.constant 0 : i32
    return %arg0, %c0_i32, %c0_i32_0 : i32, i32, i32
  }
  func.func @transform_1(%arg0: i32) -> (i32, i32) {
    %c0_i32 = arith.constant 0 : i32
    %c0_i32_0 = arith.constant 0 : i32
    %c0_i32_1 = arith.constant 0 : i32
    return %c0_i32, %c0_i32_0 : i32, i32
  }
  func.func @transform_2(%arg0: i32) -> (i32, i32) {
    %c0_i32 = arith.constant 0 : i32
    %c0_i32_0 = arith.constant 0 : i32
    %c0_i32_1 = arith.constant 0 : i32
    return %c0_i32, %c0_i32_0 : i32, i32
  }
  func.func @transform_3(%arg0: i32) -> (i32, i32) {
    %c0_i32 = arith.constant 0 : i32
    %c0_i32_0 = arith.constant 0 : i32
    %c0_i32_1 = arith.constant 0 : i32
    return %c0_i32, %c0_i32_0 : i32, i32
  }
  func.func @transform_4(%arg0: i32) -> (i32, i32) {
    %c0_i32 = arith.constant 0 : i32
    %c0_i32_0 = arith.constant 0 : i32
    %c0_i32_1 = arith.constant 0 : i32
    return %c0_i32, %c0_i32_0 : i32, i32
  }
  func.func @transform_5(%arg0: i32) -> (i32, i32) {
    %c0_i32 = arith.constant 0 : i32
    %c0_i32_0 = arith.constant 0 : i32
    %c0_i32_1 = arith.constant 0 : i32
    return %c0_i32, %c0_i32_0 : i32, i32
  }
  func.func @transform_6(%arg0: i32) -> (i32, i32) {
    %c0_i32 = arith.constant 0 : i32
    %c0_i32_0 = arith.constant 0 : i32
    %c0_i32_1 = arith.constant 0 : i32
    return %c0_i32, %c0_i32_0 : i32, i32
  }
  func.func @transform_7(%arg0: i32) -> (i32, i32) {
    %c0_i32 = arith.constant 0 : i32
    %c0_i32_0 = arith.constant 0 : i32
    %c0_i32_1 = arith.constant 0 : i32
    return %c0_i32, %c0_i32_0 : i32, i32
  }
  func.func @transform_8(%arg0: i32) -> (i32, i32) {
    %c0_i32 = arith.constant 0 : i32
    %c0_i32_0 = arith.constant 0 : i32
    %c0_i32_1 = arith.constant 0 : i32
    return %c0_i32, %c0_i32_0 : i32, i32
  }
  func.func @transform_9(%arg0: i32) -> (i32, i32) {
    %c0_i32 = arith.constant 0 : i32
    %c0_i32_0 = arith.constant 0 : i32
    %c0_i32_1 = arith.constant 0 : i32
    return %c0_i32, %c0_i32_0 : i32, i32
  }
  func.func @transform_10(%arg0: i32) -> (i32, i32) {
    %c0_i32 = arith.constant 0 : i32
    %c0_i32_0 = arith.constant 0 : i32
    %c0_i32_1 = arith.constant 0 : i32
    return %c0_i32, %c0_i32_0 : i32, i32
  }
  func.func @transform_11(%arg0: i32) -> (i32, i32) {
    %c0_i32 = arith.constant 0 : i32
    %c0_i32_0 = arith.constant 0 : i32
    %c0_i32_1 = arith.constant 0 : i32
    return %c0_i32, %c0_i32_0 : i32, i32
  }
  func.func @transform_12(%arg0: i32) -> (i32, i32) {
    %c0_i32 = arith.constant 0 : i32
    %c0_i32_0 = arith.constant 0 : i32
    %c0_i32_1 = arith.constant 0 : i32
    return %c0_i32, %c0_i32_0 : i32, i32
  }
  func.func @transform_13(%arg0: i32) -> (i32, i32) {
    %c0_i32 = arith.constant 0 : i32
    %c0_i32_0 = arith.constant 0 : i32
    %c0_i32_1 = arith.constant 0 : i32
    return %c0_i32, %c0_i32_0 : i32, i32
  }
  func.func @transform_14(%arg0: i32) -> (i32, i32) {
    %c0_i32 = arith.constant 0 : i32
    %c0_i32_0 = arith.constant 0 : i32
    %c0_i32_1 = arith.constant 0 : i32
    return %c0_i32, %c0_i32_0 : i32, i32
  }
  func.func @transform_15(%arg0: i32) -> (i32, i32) {
    %c0_i32 = arith.constant 0 : i32
    %c0_i32_0 = arith.constant 0 : i32
    %c0_i32_1 = arith.constant 0 : i32
    return %c0_i32, %c0_i32_0 : i32, i32
  }
  func.func @transform_16(%arg0: i32) -> (i32, i32, i32) {
    %c0_i32 = arith.constant 0 : i32
    %c0_i32_0 = arith.constant 0 : i32
    %c0_i32_1 = arith.constant 0 : i32
    return %arg0, %c0_i32, %c0_i32_0 : i32, i32, i32
  }
  func.func @transform_17(%arg0: i32) -> (i32, i32, i32, i32) {
    %c0_i32 = arith.constant 0 : i32
    %c0_i32_0 = arith.constant 0 : i32
    %c0_i32_1 = arith.constant 0 : i32
    %c0_i32_2 = arith.constant 0 : i32
    return %arg0, %c0_i32, %c0_i32_0, %c0_i32_1 : i32, i32, i32, i32
  }
}

module attributes {stable_mosaic.version = 11 : i64} {
  func.func @_encoder_layer_kernel(%arg0: i32, %arg1: memref<1x8x32xf32, #tpu.memory_space<vmem>>, %arg2: memref<4x32xf32, #tpu.memory_space<vmem>>, %arg3: memref<32x96xbf16, #tpu.memory_space<vmem>>, %arg4: memref<32x32xbf16, #tpu.memory_space<vmem>>, %arg5: memref<32x96xbf16, #tpu.memory_space<vmem>>, %arg6: memref<32x64xbf16, #tpu.memory_space<vmem>>, %arg7: memref<32x32xbf16, #tpu.memory_space<vmem>>, %arg8: memref<1x96xf32, #tpu.memory_space<vmem>>, %arg9: memref<32x96xbf16, #tpu.memory_space<vmem>>, %arg10: memref<32x64xbf16, #tpu.memory_space<vmem>>, %arg11: memref<32x32xbf16, #tpu.memory_space<vmem>>, %arg12: memref<1x96xf32, #tpu.memory_space<vmem>>, %arg13: memref<32x64xbf16, #tpu.memory_space<vmem>>, %arg14: memref<1x64xf32, #tpu.memory_space<vmem>>, %arg15: memref<64x32xbf16, #tpu.memory_space<vmem>>, %arg16: memref<1x32xf32, #tpu.memory_space<vmem>>, %arg17: memref<1x8x32xf32, #tpu.memory_space<vmem>>, %arg18: memref<1x2x8x8xf32, #tpu.memory_space<vmem>>) attributes {dimension_semantics = [#tpu.dimension_semantics<parallel>], iteration_bounds = array<i64: 2>, scalar_prefetch = 0 : i64, scratch_operands = 0 : i64, tpu.core_type = #tpu.core_type<tc>, window_params = [{transform_indices = @transform_0, window_bounds = array<i64: 1, 8, 32>}, {pipeline_mode = #tpu.pipeline_mode<synchronous>, transform_indices = @transform_1, window_bounds = array<i64: 4, 32>}, {pipeline_mode = #tpu.pipeline_mode<synchronous>, transform_indices = @transform_2, window_bounds = array<i64: 32, 96>}, {pipeline_mode = #tpu.pipeline_mode<synchronous>, transform_indices = @transform_3, window_bounds = array<i64: 32, 32>}, {pipeline_mode = #tpu.pipeline_mode<synchronous>, transform_indices = @transform_4, window_bounds = array<i64: 32, 96>}, {pipeline_mode = #tpu.pipeline_mode<synchronous>, transform_indices = @transform_5, window_bounds = array<i64: 32, 64>}, {pipeline_mode = #tpu.pipeline_mode<synchronous>, transform_indices = @transform_6, window_bounds = array<i64: 32, 32>}, {pipeline_mode = #tpu.pipeline_mode<synchronous>, transform_indices = @transform_7, window_bounds = array<i64: 1, 96>}, {pipeline_mode = #tpu.pipeline_mode<synchronous>, transform_indices = @transform_8, window_bounds = array<i64: 32, 96>}, {pipeline_mode = #tpu.pipeline_mode<synchronous>, transform_indices = @transform_9, window_bounds = array<i64: 32, 64>}, {pipeline_mode = #tpu.pipeline_mode<synchronous>, transform_indices = @transform_10, window_bounds = array<i64: 32, 32>}, {pipeline_mode = #tpu.pipeline_mode<synchronous>, transform_indices = @transform_11, window_bounds = array<i64: 1, 96>}, {pipeline_mode = #tpu.pipeline_mode<synchronous>, transform_indices = @transform_12, window_bounds = array<i64: 32, 64>}, {pipeline_mode = #tpu.pipeline_mode<synchronous>, transform_indices = @transform_13, window_bounds = array<i64: 1, 64>}, {pipeline_mode = #tpu.pipeline_mode<synchronous>, transform_indices = @transform_14, window_bounds = array<i64: 64, 32>}, {pipeline_mode = #tpu.pipeline_mode<synchronous>, transform_indices = @transform_15, window_bounds = array<i64: 1, 32>}, {transform_indices = @transform_16, window_bounds = array<i64: 1, 8, 32>}, {transform_indices = @transform_17, window_bounds = array<i64: 1, 2, 8, 8>}]} {
    %c0 = arith.constant 0 : index
    %c0_0 = arith.constant 0 : index
    %c0_1 = arith.constant 0 : index
    %0 = vector.load %arg1[%c0, %c0_0, %c0_1] : memref<1x8x32xf32, #tpu.memory_space<vmem>>, vector<1x8x32xf32>
    %1 = vector.shape_cast %0 : vector<1x8x32xf32> to vector<8x32xf32>
    %c0_2 = arith.constant 0 : index
    %c0_3 = arith.constant 0 : index
    %2 = vector.load %arg2[%c0_2, %c0_3] : memref<4x32xf32, #tpu.memory_space<vmem>>, vector<1x32xf32>
    %3 = vector.shape_cast %2 : vector<1x32xf32> to vector<32xf32>
    %c1 = arith.constant 1 : index
    %c0_4 = arith.constant 0 : index
    %4 = vector.load %arg2[%c1, %c0_4] : memref<4x32xf32, #tpu.memory_space<vmem>>, vector<1x32xf32>
    %5 = vector.shape_cast %4 : vector<1x32xf32> to vector<32xf32>
    %cst = arith.constant dense<0.000000e+00> : vector<8xf32>
    %6 = vector.multi_reduction <add>, %1, %cst [1] : vector<8x32xf32> to vector<8xf32>
    %7 = vector.shape_cast %6 : vector<8xf32> to vector<8x1xf32>
    %cst_5 = arith.constant 3.200000e+01 : f32
    %8 = vector.broadcast %cst_5 : f32 to vector<8x1xf32>
    %9 = arith.divf %7, %8 : vector<8x1xf32>
    %10 = vector.broadcast %9 : vector<8x1xf32> to vector<8x32xf32>
    %11 = arith.subf %1, %10 : vector<8x32xf32>
    %12 = arith.mulf %11, %11 : vector<8x32xf32>
    %cst_6 = arith.constant dense<0.000000e+00> : vector<8xf32>
    %13 = vector.multi_reduction <add>, %12, %cst_6 [1] : vector<8x32xf32> to vector<8xf32>
    %14 = vector.shape_cast %13 : vector<8xf32> to vector<8x1xf32>
    %cst_7 = arith.constant 3.200000e+01 : f32
    %15 = vector.broadcast %cst_7 : f32 to vector<8x1xf32>
    %16 = arith.divf %14, %15 : vector<8x1xf32>
    %17 = vector.broadcast %9 : vector<8x1xf32> to vector<8x32xf32>
    %18 = arith.subf %1, %17 : vector<8x32xf32>
    %cst_8 = arith.constant 9.99999997E-7 : f32
    %19 = vector.broadcast %cst_8 : f32 to vector<8x1xf32>
    %20 = arith.addf %16, %19 : vector<8x1xf32>
    %21 = math.rsqrt %20 : vector<8x1xf32>
    %22 = vector.broadcast %21 : vector<8x1xf32> to vector<8x32xf32>
    %23 = arith.mulf %18, %22 : vector<8x32xf32>
    %24 = vector.shape_cast %3 : vector<32xf32> to vector<1x32xf32>
    %25 = vector.broadcast %24 : vector<1x32xf32> to vector<8x32xf32>
    %26 = arith.mulf %23, %25 : vector<8x32xf32>
    %27 = vector.shape_cast %5 : vector<32xf32> to vector<1x32xf32>
    %28 = vector.broadcast %27 : vector<1x32xf32> to vector<8x32xf32>
    %29 = arith.addf %26, %28 : vector<8x32xf32>
    %30 = arith.truncf %29 : vector<8x32xf32> to vector<8x32xbf16>
    %c0_9 = arith.constant 0 : index
    %c0_10 = arith.constant 0 : index
    %31 = vector.load %arg3[%c0_9, %c0_10] : memref<32x96xbf16, #tpu.memory_space<vmem>>, vector<32x96xbf16>
    %cst_11 = arith.constant dense<0.000000e+00> : vector<8x96xf32>
    %32 = tpu.matmul %30, %31, %cst_11 {dimension_numbers = #tpu.dot_dimension_numbers<[1], [0], [0], [1], [0, 0, 1, 1], [], []>} : vector<8x32xbf16>, vector<32x96xbf16>, vector<8x96xf32> -> vector<8x96xf32>
    %33 = vector.extract_strided_slice %32 {offsets = [0, 0], sizes = [8, 32], strides = [1, 1]} : vector<8x96xf32> to vector<8x32xf32>
    %34 = vector.extract_strided_slice %32 {offsets = [0, 32], sizes = [8, 32], strides = [1, 1]} : vector<8x96xf32> to vector<8x32xf32>
    %35 = vector.extract_strided_slice %32 {offsets = [0, 64], sizes = [8, 32], strides = [1, 1]} : vector<8x96xf32> to vector<8x32xf32>
    %36 = vector.extract_strided_slice %33 {offsets = [0, 0], sizes = [8, 16], strides = [1, 1]} : vector<8x32xf32> to vector<8x16xf32>
    %37 = vector.shape_cast %36 : vector<8x16xf32> to vector<1x8x16xf32>
    %38 = arith.truncf %37 : vector<1x8x16xf32> to vector<1x8x16xbf16>
    %39 = vector.extract_strided_slice %34 {offsets = [0, 0], sizes = [8, 16], strides = [1, 1]} : vector<8x32xf32> to vector<8x16xf32>
    %40 = vector.shape_cast %39 : vector<8x16xf32> to vector<1x8x16xf32>
    %41 = arith.truncf %40 : vector<1x8x16xf32> to vector<1x8x16xbf16>
    %42 = vector.extract_strided_slice %35 {offsets = [0, 0], sizes = [8, 16], strides = [1, 1]} : vector<8x32xf32> to vector<8x16xf32>
    %43 = vector.shape_cast %42 : vector<8x16xf32> to vector<1x8x16xf32>
    %44 = arith.truncf %43 : vector<1x8x16xf32> to vector<1x8x16xbf16>
    "tpu.trace_start"() <{level = 10 : i32, message = "bld,bmd->blm"}> : () -> ()
    %cst_12 = arith.constant dense<0.000000e+00> : vector<1x8x8xf32>
    %45 = tpu.matmul %38, %41, %cst_12 {dimension_numbers = #tpu.dot_dimension_numbers<[2], [2], [1], [1], [0, 0, 0, 1, 1, 1], [0], [0]>} : vector<1x8x16xbf16>, vector<1x8x16xbf16>, vector<1x8x8xf32> -> vector<1x8x8xf32>
    "tpu.trace_stop"() : () -> ()
    %cst_13 = arith.constant dense<0xFF800000> : vector<1x8xf32>
    %46 = vector.multi_reduction <maximumf>, %45, %cst_13 [2] : vector<1x8x8xf32> to vector<1x8xf32>
    %47 = vector.shape_cast %46 : vector<1x8xf32> to vector<1x8x1xf32>
    %48 = vector.broadcast %47 : vector<1x8x1xf32> to vector<1x8x8xf32>
    %49 = arith.subf %45, %48 : vector<1x8x8xf32>
    %50 = math.exp %49 : vector<1x8x8xf32>
    %cst_14 = arith.constant dense<0.000000e+00> : vector<1x8xf32>
    %51 = vector.multi_reduction <add>, %50, %cst_14 [2] : vector<1x8x8xf32> to vector<1x8xf32>
    %52 = vector.shape_cast %51 : vector<1x8xf32> to vector<1x8x1xf32>
    %53 = tpu.reciprocal %52 {approx = true} : vector<1x8x1xf32> -> vector<1x8x1xf32>
    %54 = vector.broadcast %53 : vector<1x8x1xf32> to vector<1x8x8xf32>
    %55 = arith.mulf %50, %54 : vector<1x8x8xf32>
    %56 = vector.broadcast %52 : vector<1x8x1xf32> to vector<1x8x8xf32>
    %57 = arith.divf %50, %56 : vector<1x8x8xf32>
    %c0_15 = arith.constant 0 : index
    %c0_16 = arith.constant 0 : index
    %c0_17 = arith.constant 0 : index
    %c0_18 = arith.constant 0 : index
    %58 = vector.load %arg18[%c0_15, %c0_16, %c0_17, %c0_18] : memref<1x2x8x8xf32, #tpu.memory_space<vmem>>, vector<1x1x8x8xf32>
    %59 = vector.shape_cast %58 : vector<1x1x8x8xf32> to vector<1x8x8xf32>
    %60 = vector.shape_cast %57 : vector<1x8x8xf32> to vector<1x1x8x8xf32>
    tpu.vector_store %arg18[%c0_15, %c0_16, %c0_17, %c0_18], %60 {strides = array<i32>} : memref<1x2x8x8xf32, #tpu.memory_space<vmem>>, vector<1x1x8x8xf32>,
    %61 = arith.truncf %55 : vector<1x8x8xf32> to vector<1x8x8xbf16>
    "tpu.trace_start"() <{level = 10 : i32, message = "blm,bmd->bld"}> : () -> ()
    %cst_19 = arith.constant dense<0.000000e+00> : vector<1x8x16xf32>
    %62 = tpu.matmul %61, %44, %cst_19 {dimension_numbers = #tpu.dot_dimension_numbers<[2], [1], [1], [2], [0, 0, 0, 1, 1, 2], [0], [0]>} : vector<1x8x8xbf16>, vector<1x8x16xbf16>, vector<1x8x16xf32> -> vector<1x8x16xf32>
    "tpu.trace_stop"() : () -> ()
    %63 = vector.shape_cast %62 : vector<1x8x16xf32> to vector<8x16xf32>
    %64 = vector.extract_strided_slice %33 {offsets = [0, 16], sizes = [8, 16], strides = [1, 1]} : vector<8x32xf32> to vector<8x16xf32>
    %65 = vector.shape_cast %64 : vector<8x16xf32> to vector<1x8x16xf32>
    %66 = arith.truncf %65 : vector<1x8x16xf32> to vector<1x8x16xbf16>
    %67 = vector.extract_strided_slice %34 {offsets = [0, 16], sizes = [8, 16], strides = [1, 1]} : vector<8x32xf32> to vector<8x16xf32>
    %68 = vector.shape_cast %67 : vector<8x16xf32> to vector<1x8x16xf32>
    %69 = arith.truncf %68 : vector<1x8x16xf32> to vector<1x8x16xbf16>
    %70 = vector.extract_strided_slice %35 {offsets = [0, 16], sizes = [8, 16], strides = [1, 1]} : vector<8x32xf32> to vector<8x16xf32>
    %71 = vector.shape_cast %70 : vector<8x16xf32> to vector<1x8x16xf32>
    %72 = arith.truncf %71 : vector<1x8x16xf32> to vector<1x8x16xbf16>
    "tpu.trace_start"() <{level = 10 : i32, message = "bld,bmd->blm"}> : () -> ()
    %cst_20 = arith.constant dense<0.000000e+00> : vector<1x8x8xf32>
    %73 = tpu.matmul %66, %69, %cst_20 {dimension_numbers = #tpu.dot_dimension_numbers<[2], [2], [1], [1], [0, 0, 0, 1, 1, 1], [0], [0]>} : vector<1x8x16xbf16>, vector<1x8x16xbf16>, vector<1x8x8xf32> -> vector<1x8x8xf32>
    "tpu.trace_stop"() : () -> ()
    %cst_21 = arith.constant dense<0xFF800000> : vector<1x8xf32>
    %74 = vector.multi_reduction <maximumf>, %73, %cst_21 [2] : vector<1x8x8xf32> to vector<1x8xf32>
    %75 = vector.shape_cast %74 : vector<1x8xf32> to vector<1x8x1xf32>
    %76 = vector.broadcast %75 : vector<1x8x1xf32> to vector<1x8x8xf32>
    %77 = arith.subf %73, %76 : vector<1x8x8xf32>
    %78 = math.exp %77 : vector<1x8x8xf32>
    %cst_22 = arith.constant dense<0.000000e+00> : vector<1x8xf32>
    %79 = vector.multi_reduction <add>, %78, %cst_22 [2] : vector<1x8x8xf32> to vector<1x8xf32>
    %80 = vector.shape_cast %79 : vector<1x8xf32> to vector<1x8x1xf32>
    %81 = tpu.reciprocal %80 {approx = true} : vector<1x8x1xf32> -> vector<1x8x1xf32>
    %82 = vector.broadcast %81 : vector<1x8x1xf32> to vector<1x8x8xf32>
    %83 = arith.mulf %78, %82 : vector<1x8x8xf32>
    %84 = vector.broadcast %80 : vector<1x8x1xf32> to vector<1x8x8xf32>
    %85 = arith.divf %78, %84 : vector<1x8x8xf32>
    %c0_23 = arith.constant 0 : index
    %c1_24 = arith.constant 1 : index
    %c0_25 = arith.constant 0 : index
    %c0_26 = arith.constant 0 : index
    %86 = vector.load %arg18[%c0_23, %c1_24, %c0_25, %c0_26] : memref<1x2x8x8xf32, #tpu.memory_space<vmem>>, vector<1x1x8x8xf32>
    %87 = vector.shape_cast %86 : vector<1x1x8x8xf32> to vector<1x8x8xf32>
    %88 = vector.shape_cast %85 : vector<1x8x8xf32> to vector<1x1x8x8xf32>
    tpu.vector_store %arg18[%c0_23, %c1_24, %c0_25, %c0_26], %88 {strides = array<i32>} : memref<1x2x8x8xf32, #tpu.memory_space<vmem>>, vector<1x1x8x8xf32>,
    %89 = arith.truncf %83 : vector<1x8x8xf32> to vector<1x8x8xbf16>
    "tpu.trace_start"() <{level = 10 : i32, message = "blm,bmd->bld"}> : () -> ()
    %cst_27 = arith.constant dense<0.000000e+00> : vector<1x8x16xf32>
    %90 = tpu.matmul %89, %72, %cst_27 {dimension_numbers = #tpu.dot_dimension_numbers<[2], [1], [1], [2], [0, 0, 0, 1, 1, 2], [0], [0]>} : vector<1x8x8xbf16>, vector<1x8x16xbf16>, vector<1x8x16xf32> -> vector<1x8x16xf32>
    "tpu.trace_stop"() : () -> ()
    %91 = vector.shape_cast %90 : vector<1x8x16xf32> to vector<8x16xf32>
    %92 = tpu.concatenate %63, %91 in 1 : vector<8x16xf32>, vector<8x16xf32> -> vector<8x32xf32>
    %93 = arith.truncf %92 : vector<8x32xf32> to vector<8x32xbf16>
    %c0_28 = arith.constant 0 : index
    %c0_29 = arith.constant 0 : index
    %94 = vector.load %arg4[%c0_28, %c0_29] : memref<32x32xbf16, #tpu.memory_space<vmem>>, vector<32x32xbf16>
    %cst_30 = arith.constant dense<0.000000e+00> : vector<8x32xf32>
    %95 = tpu.matmul %93, %94, %cst_30 {dimension_numbers = #tpu.dot_dimension_numbers<[1], [0], [0], [1], [0, 0, 1, 1], [], []>} : vector<8x32xbf16>, vector<32x32xbf16>, vector<8x32xf32> -> vector<8x32xf32>
    %96 = arith.truncf %1 : vector<8x32xf32> to vector<8x32xbf16>
    %97 = arith.truncf %95 : vector<8x32xf32> to vector<8x32xbf16>
    %c0_31 = arith.constant 0 : index
    %c0_32 = arith.constant 0 : index
    %98 = vector.load %arg5[%c0_31, %c0_32] : memref<32x96xbf16, #tpu.memory_space<vmem>>, vector<32x96xbf16>
    %cst_33 = arith.constant dense<0.000000e+00> : vector<8x96xf32>
    %99 = tpu.matmul %97, %98, %cst_33 {dimension_numbers = #tpu.dot_dimension_numbers<[1], [0], [0], [1], [0, 0, 1, 1], [], []>} : vector<8x32xbf16>, vector<32x96xbf16>, vector<8x96xf32> -> vector<8x96xf32>
    %c0_34 = arith.constant 0 : index
    %c0_35 = arith.constant 0 : index
    %100 = vector.load %arg8[%c0_34, %c0_35] : memref<1x96xf32, #tpu.memory_space<vmem>>, vector<1x96xf32>
    %101 = vector.broadcast %100 : vector<1x96xf32> to vector<8x96xf32>
    %102 = arith.addf %99, %101 : vector<8x96xf32>
    %c0_36 = arith.constant 0 : index
    %c0_37 = arith.constant 0 : index
    %103 = vector.load %arg6[%c0_36, %c0_37] : memref<32x64xbf16, #tpu.memory_space<vmem>>, vector<32x64xbf16>
    %cst_38 = arith.constant dense<0.000000e+00> : vector<8x64xf32>
    %104 = tpu.matmul %96, %103, %cst_38 {dimension_numbers = #tpu.dot_dimension_numbers<[1], [0], [0], [1], [0, 0, 1, 1], [], []>} : vector<8x32xbf16>, vector<32x64xbf16>, vector<8x64xf32> -> vector<8x64xf32>
    %105 = vector.extract_strided_slice %102 {offsets = [0, 0], sizes = [8, 32], strides = [1, 1]} : vector<8x96xf32> to vector<8x32xf32>
    %106 = vector.extract_strided_slice %104 {offsets = [0, 0], sizes = [8, 32], strides = [1, 1]} : vector<8x64xf32> to vector<8x32xf32>
    %107 = arith.addf %105, %106 : vector<8x32xf32>
    %108 = arith.negf %107 : vector<8x32xf32>
    %109 = math.exp %108 : vector<8x32xf32>
    %cst_39 = arith.constant 1.000000e+00 : f32
    %110 = vector.broadcast %cst_39 : f32 to vector<8x32xf32>
    %111 = arith.addf %110, %109 : vector<8x32xf32>
    %112 = arith.divf %110, %111 : vector<8x32xf32>
    %113 = vector.extract_strided_slice %102 {offsets = [0, 32], sizes = [8, 32], strides = [1, 1]} : vector<8x96xf32> to vector<8x32xf32>
    %114 = vector.extract_strided_slice %104 {offsets = [0, 32], sizes = [8, 32], strides = [1, 1]} : vector<8x64xf32> to vector<8x32xf32>
    %115 = arith.addf %113, %114 : vector<8x32xf32>
    %116 = arith.negf %115 : vector<8x32xf32>
    %117 = math.exp %116 : vector<8x32xf32>
    %cst_40 = arith.constant 1.000000e+00 : f32
    %118 = vector.broadcast %cst_40 : f32 to vector<8x32xf32>
    %119 = arith.addf %118, %117 : vector<8x32xf32>
    %120 = arith.divf %118, %119 : vector<8x32xf32>
    %121 = vector.extract_strided_slice %102 {offsets = [0, 64], sizes = [8, 32], strides = [1, 1]} : vector<8x96xf32> to vector<8x32xf32>
    %122 = arith.mulf %112, %1 : vector<8x32xf32>
    %123 = arith.truncf %122 : vector<8x32xf32> to vector<8x32xbf16>
    %c0_41 = arith.constant 0 : index
    %c0_42 = arith.constant 0 : index
    %124 = vector.load %arg7[%c0_41, %c0_42] : memref<32x32xbf16, #tpu.memory_space<vmem>>, vector<32x32xbf16>
    %cst_43 = arith.constant dense<0.000000e+00> : vector<8x32xf32>
    %125 = tpu.matmul %123, %124, %cst_43 {dimension_numbers = #tpu.dot_dimension_numbers<[1], [0], [0], [1], [0, 0, 1, 1], [], []>} : vector<8x32xbf16>, vector<32x32xbf16>, vector<8x32xf32> -> vector<8x32xf32>
    %126 = arith.addf %121, %125 : vector<8x32xf32>
    %127 = math.tanh %126 : vector<8x32xf32>
    %cst_44 = arith.constant 1.000000e+00 : f32
    %128 = vector.broadcast %cst_44 : f32 to vector<8x32xf32>
    %129 = arith.subf %128, %120 : vector<8x32xf32>
    %130 = arith.mulf %129, %1 : vector<8x32xf32>
    %131 = arith.mulf %120, %127 : vector<8x32xf32>
    %132 = arith.addf %130, %131 : vector<8x32xf32>
    %c2 = arith.constant 2 : index
    %c0_45 = arith.constant 0 : index
    %133 = vector.load %arg2[%c2, %c0_45] : memref<4x32xf32, #tpu.memory_space<vmem>>, vector<1x32xf32>
    %134 = vector.shape_cast %133 : vector<1x32xf32> to vector<32xf32>
    %c3 = arith.constant 3 : index
    %c0_46 = arith.constant 0 : index
    %135 = vector.load %arg2[%c3, %c0_46] : memref<4x32xf32, #tpu.memory_space<vmem>>, vector<1x32xf32>
    %136 = vector.shape_cast %135 : vector<1x32xf32> to vector<32xf32>
    %cst_47 = arith.constant dense<0.000000e+00> : vector<8xf32>
    %137 = vector.multi_reduction <add>, %132, %cst_47 [1] : vector<8x32xf32> to vector<8xf32>
    %138 = vector.shape_cast %137 : vector<8xf32> to vector<8x1xf32>
    %cst_48 = arith.constant 3.200000e+01 : f32
    %139 = vector.broadcast %cst_48 : f32 to vector<8x1xf32>
    %140 = arith.divf %138, %139 : vector<8x1xf32>
    %141 = vector.broadcast %140 : vector<8x1xf32> to vector<8x32xf32>
    %142 = arith.subf %132, %141 : vector<8x32xf32>
    %143 = arith.mulf %142, %142 : vector<8x32xf32>
    %cst_49 = arith.constant dense<0.000000e+00> : vector<8xf32>
    %144 = vector.multi_reduction <add>, %143, %cst_49 [1] : vector<8x32xf32> to vector<8xf32>
    %145 = vector.shape_cast %144 : vector<8xf32> to vector<8x1xf32>
    %cst_50 = arith.constant 3.200000e+01 : f32
    %146 = vector.broadcast %cst_50 : f32 to vector<8x1xf32>
    %147 = arith.divf %145, %146 : vector<8x1xf32>
    %148 = vector.broadcast %140 : vector<8x1xf32> to vector<8x32xf32>
    %149 = arith.subf %132, %148 : vector<8x32xf32>
    %cst_51 = arith.constant 9.99999997E-7 : f32
    %150 = vector.broadcast %cst_51 : f32 to vector<8x1xf32>
    %151 = arith.addf %147, %150 : vector<8x1xf32>
    %152 = math.rsqrt %151 : vector<8x1xf32>
    %153 = vector.broadcast %152 : vector<8x1xf32> to vector<8x32xf32>
    %154 = arith.mulf %149, %153 : vector<8x32xf32>
    %155 = vector.shape_cast %134 : vector<32xf32> to vector<1x32xf32>
    %156 = vector.broadcast %155 : vector<1x32xf32> to vector<8x32xf32>
    %157 = arith.mulf %154, %156 : vector<8x32xf32>
    %158 = vector.shape_cast %136 : vector<32xf32> to vector<1x32xf32>
    %159 = vector.broadcast %158 : vector<1x32xf32> to vector<8x32xf32>
    %160 = arith.addf %157, %159 : vector<8x32xf32>
    %161 = arith.truncf %160 : vector<8x32xf32> to vector<8x32xbf16>
    %c0_52 = arith.constant 0 : index
    %c0_53 = arith.constant 0 : index
    %162 = vector.load %arg13[%c0_52, %c0_53] : memref<32x64xbf16, #tpu.memory_space<vmem>>, vector<32x64xbf16>
    %cst_54 = arith.constant dense<0.000000e+00> : vector<8x64xf32>
    %163 = tpu.matmul %161, %162, %cst_54 {dimension_numbers = #tpu.dot_dimension_numbers<[1], [0], [0], [1], [0, 0, 1, 1], [], []>} : vector<8x32xbf16>, vector<32x64xbf16>, vector<8x64xf32> -> vector<8x64xf32>
    %c0_55 = arith.constant 0 : index
    %c0_56 = arith.constant 0 : index
    %164 = vector.load %arg14[%c0_55, %c0_56] : memref<1x64xf32, #tpu.memory_space<vmem>>, vector<1x64xf32>
    %165 = vector.broadcast %164 : vector<1x64xf32> to vector<8x64xf32>
    %166 = arith.addf %163, %165 : vector<8x64xf32>
    %cst_57 = arith.constant 0.000000e+00 : f32
    %167 = vector.broadcast %cst_57 : f32 to vector<8x64xf32>
    %168 = arith.maximumf %166, %167 : vector<8x64xf32>
    %169 = arith.truncf %168 : vector<8x64xf32> to vector<8x64xbf16>
    %c0_58 = arith.constant 0 : index
    %c0_59 = arith.constant 0 : index
    %170 = vector.load %arg15[%c0_58, %c0_59] : memref<64x32xbf16, #tpu.memory_space<vmem>>, vector<64x32xbf16>
    %cst_60 = arith.constant dense<0.000000e+00> : vector<8x32xf32>
    %171 = tpu.matmul %169, %170, %cst_60 {dimension_numbers = #tpu.dot_dimension_numbers<[1], [0], [0], [1], [0, 0, 1, 1], [], []>} : vector<8x64xbf16>, vector<64x32xbf16>, vector<8x32xf32> -> vector<8x32xf32>
    %c0_61 = arith.constant 0 : index
    %c0_62 = arith.constant 0 : index
    %172 = vector.load %arg16[%c0_61, %c0_62] : memref<1x32xf32, #tpu.memory_space<vmem>>, vector<1x32xf32>
    %173 = vector.broadcast %172 : vector<1x32xf32> to vector<8x32xf32>
    %174 = arith.addf %171, %173 : vector<8x32xf32>
    %175 = arith.truncf %132 : vector<8x32xf32> to vector<8x32xbf16>
    %176 = arith.truncf %174 : vector<8x32xf32> to vector<8x32xbf16>
    %c0_63 = arith.constant 0 : index
    %c0_64 = arith.constant 0 : index
    %177 = vector.load %arg9[%c0_63, %c0_64] : memref<32x96xbf16, #tpu.memory_space<vmem>>, vector<32x96xbf16>
    %cst_65 = arith.constant dense<0.000000e+00> : vector<8x96xf32>
    %178 = tpu.matmul %176, %177, %cst_65 {dimension_numbers = #tpu.dot_dimension_numbers<[1], [0], [0], [1], [0, 0, 1, 1], [], []>} : vector<8x32xbf16>, vector<32x96xbf16>, vector<8x96xf32> -> vector<8x96xf32>
    %c0_66 = arith.constant 0 : index
    %c0_67 = arith.constant 0 : index
    %179 = vector.load %arg12[%c0_66, %c0_67] : memref<1x96xf32, #tpu.memory_space<vmem>>, vector<1x96xf32>
    %180 = vector.broadcast %179 : vector<1x96xf32> to vector<8x96xf32>
    %181 = arith.addf %178, %180 : vector<8x96xf32>
    %c0_68 = arith.constant 0 : index
    %c0_69 = arith.constant 0 : index
    %182 = vector.load %arg10[%c0_68, %c0_69] : memref<32x64xbf16, #tpu.memory_space<vmem>>, vector<32x64xbf16>
    %cst_70 = arith.constant dense<0.000000e+00> : vector<8x64xf32>
    %183 = tpu.matmul %175, %182, %cst_70 {dimension_numbers = #tpu.dot_dimension_numbers<[1], [0], [0], [1], [0, 0, 1, 1], [], []>} : vector<8x32xbf16>, vector<32x64xbf16>, vector<8x64xf32> -> vector<8x64xf32>
    %184 = vector.extract_strided_slice %181 {offsets = [0, 0], sizes = [8, 32], strides = [1, 1]} : vector<8x96xf32> to vector<8x32xf32>
    %185 = vector.extract_strided_slice %183 {offsets = [0, 0], sizes = [8, 32], strides = [1, 1]} : vector<8x64xf32> to vector<8x32xf32>
    %186 = arith.addf %184, %185 : vector<8x32xf32>
    %187 = arith.negf %186 : vector<8x32xf32>
    %188 = math.exp %187 : vector<8x32xf32>
    %cst_71 = arith.constant 1.000000e+00 : f32
    %189 = vector.broadcast %cst_71 : f32 to vector<8x32xf32>
    %190 = arith.addf %189, %188 : vector<8x32xf32>
    %191 = arith.divf %189, %190 : vector<8x32xf32>
    %192 = vector.extract_strided_slice %181 {offsets = [0, 32], sizes = [8, 32], strides = [1, 1]} : vector<8x96xf32> to vector<8x32xf32>
    %193 = vector.extract_strided_slice %183 {offsets = [0, 32], sizes = [8, 32], strides = [1, 1]} : vector<8x64xf32> to vector<8x32xf32>
    %194 = arith.addf %192, %193 : vector<8x32xf32>
    %195 = arith.negf %194 : vector<8x32xf32>
    %196 = math.exp %195 : vector<8x32xf32>
    %cst_72 = arith.constant 1.000000e+00 : f32
    %197 = vector.broadcast %cst_72 : f32 to vector<8x32xf32>
    %198 = arith.addf %197, %196 : vector<8x32xf32>
    %199 = arith.divf %197, %198 : vector<8x32xf32>
    %200 = vector.extract_strided_slice %181 {offsets = [0, 64], sizes = [8, 32], strides = [1, 1]} : vector<8x96xf32> to vector<8x32xf32>
    %201 = arith.mulf %191, %132 : vector<8x32xf32>
    %202 = arith.truncf %201 : vector<8x32xf32> to vector<8x32xbf16>
    %c0_73 = arith.constant 0 : index
    %c0_74 = arith.constant 0 : index
    %203 = vector.load %arg11[%c0_73, %c0_74] : memref<32x32xbf16, #tpu.memory_space<vmem>>, vector<32x32xbf16>
    %cst_75 = arith.constant dense<0.000000e+00> : vector<8x32xf32>
    %204 = tpu.matmul %202, %203, %cst_75 {dimension_numbers = #tpu.dot_dimension_numbers<[1], [0], [0], [1], [0, 0, 1, 1], [], []>} : vector<8x32xbf16>, vector<32x32xbf16>, vector<8x32xf32> -> vector<8x32xf32>
    %205 = arith.addf %200, %204 : vector<8x32xf32>
    %206 = math.tanh %205 : vector<8x32xf32>
    %cst_76 = arith.constant 1.000000e+00 : f32
    %207 = vector.broadcast %cst_76 : f32 to vector<8x32xf32>
    %208 = arith.subf %207, %199 : vector<8x32xf32>
    %209 = arith.mulf %208, %132 : vector<8x32xf32>
    %210 = arith.mulf %199, %206 : vector<8x32xf32>
    %211 = arith.addf %209, %210 : vector<8x32xf32>
    %212 = vector.shape_cast %211 : vector<8x32xf32> to vector<1x8x32xf32>
    %c0_77 = arith.constant 0 : index
    %c0_78 = arith.constant 0 : index
    %c0_79 = arith.constant 0 : index
    %213 = vector.load %arg17[%c0_77, %c0_78, %c0_79] : memref<1x8x32xf32, #tpu.memory_space<vmem>>, vector<1x8x32xf32>
    tpu.vector_store %arg17[%c0_77, %c0_78, %c0_79], %212 {strides = array<i32>} : memref<1x8x32xf32, #tpu.memory_space<vmem>>, vector<1x8x32xf32>,
    return
  }
  func.func @transform_0(%arg0: i32) -> (i32, i32, i32) {
    %c0_i32 = arith.constant 0 : i32
    %c0_i32_0 = arith.constant 0 : i32
    %c0_i32_1 = arith.constant 0 : i32
    return %arg0, %c0_i32, %c0_i32_0 : i32, i32, i32
  }
  func.func @transform_1(%arg0: i32) -> (i32, i32) {
    %c0_i32 = arith.constant 0 : i32
    %c0_i32_0 = arith.constant 0 : i32
    %c0_i32_1 = arith.constant 0 : i32
    return %c0_i32, %c0_i32_0 : i32, i32
  }
  func.func @transform_2(%arg0: i32) -> (i32, i32) {
    %c0_i32 = arith.constant 0 : i32
    %c0_i32_0 = arith.constant 0 : i32
    %c0_i32_1 = arith.constant 0 : i32
    return %c0_i32, %c0_i32_0 : i32, i32
  }
  func.func @transform_3(%arg0: i32) -> (i32, i32) {
    %c0_i32 = arith.constant 0 : i32
    %c0_i32_0 = arith.constant 0 : i32
    %c0_i32_1 = arith.constant 0 : i32
    return %c0_i32, %c0_i32_0 : i32, i32
  }
  func.func @transform_4(%arg0: i32) -> (i32, i32) {
    %c0_i32 = arith.constant 0 : i32
    %c0_i32_0 = arith.constant 0 : i32
    %c0_i32_1 = arith.constant 0 : i32
    return %c0_i32, %c0_i32_0 : i32, i32
  }
  func.func @transform_5(%arg0: i32) -> (i32, i32) {
    %c0_i32 = arith.constant 0 : i32
    %c0_i32_0 = arith.constant 0 : i32
    %c0_i32_1 = arith.constant 0 : i32
    return %c0_i32, %c0_i32_0 : i32, i32
  }
  func.func @transform_6(%arg0: i32) -> (i32, i32) {
    %c0_i32 = arith.constant 0 : i32
    %c0_i32_0 = arith.constant 0 : i32
    %c0_i32_1 = arith.constant 0 : i32
    return %c0_i32, %c0_i32_0 : i32, i32
  }
  func.func @transform_7(%arg0: i32) -> (i32, i32) {
    %c0_i32 = arith.constant 0 : i32
    %c0_i32_0 = arith.constant 0 : i32
    %c0_i32_1 = arith.constant 0 : i32
    return %c0_i32, %c0_i32_0 : i32, i32
  }
  func.func @transform_8(%arg0: i32) -> (i32, i32) {
    %c0_i32 = arith.constant 0 : i32
    %c0_i32_0 = arith.constant 0 : i32
    %c0_i32_1 = arith.constant 0 : i32
    return %c0_i32, %c0_i32_0 : i32, i32
  }
  func.func @transform_9(%arg0: i32) -> (i32, i32) {
    %c0_i32 = arith.constant 0 : i32
    %c0_i32_0 = arith.constant 0 : i32
    %c0_i32_1 = arith.constant 0 : i32
    return %c0_i32, %c0_i32_0 : i32, i32
  }
  func.func @transform_10(%arg0: i32) -> (i32, i32) {
    %c0_i32 = arith.constant 0 : i32
    %c0_i32_0 = arith.constant 0 : i32
    %c0_i32_1 = arith.constant 0 : i32
    return %c0_i32, %c0_i32_0 : i32, i32
  }
  func.func @transform_11(%arg0: i32) -> (i32, i32) {
    %c0_i32 = arith.constant 0 : i32
    %c0_i32_0 = arith.constant 0 : i32
    %c0_i32_1 = arith.constant 0 : i32
    return %c0_i32, %c0_i32_0 : i32, i32
  }
  func.func @transform_12(%arg0: i32) -> (i32, i32) {
    %c0_i32 = arith.constant 0 : i32
    %c0_i32_0 = arith.constant 0 : i32
    %c0_i32_1 = arith.constant 0 : i32
    return %c0_i32, %c0_i32_0 : i32, i32
  }
  func.func @transform_13(%arg0: i32) -> (i32, i32) {
    %c0_i32 = arith.constant 0 : i32
    %c0_i32_0 = arith.constant 0 : i32
    %c0_i32_1 = arith.constant 0 : i32
    return %c0_i32, %c0_i32_0 : i32, i32
  }
  func.func @transform_14(%arg0: i32) -> (i32, i32) {
    %c0_i32 = arith.constant 0 : i32
    %c0_i32_0 = arith.constant 0 : i32
    %c0_i32_1 = arith.constant 0 : i32
    return %c0_i32, %c0_i32_0 : i32, i32
  }
  func.func @transform_15(%arg0: i32) -> (i32, i32) {
    %c0_i32 = arith.constant 0 : i32
    %c0_i32_0 = arith.constant 0 : i32
    %c0_i32_1 = arith.constant 0 : i32
    return %c0_i32, %c0_i32_0 : i32, i32
  }
  func.func @transform_16(%arg0: i32) -> (i32, i32, i32) {
    %c0_i32 = arith.constant 0 : i32
    %c0_i32_0 = arith.constant 0 : i32
    %c0_i32_1 = arith.constant 0 : i32
    return %arg0, %c0_i32, %c0_i32_0 : i32, i32, i32
  }
  func.func @transform_17(%arg0: i32) -> (i32, i32, i32, i32) {
    %c0_i32 = arith.constant 0 : i32
    %c0_i32_0 = arith.constant 0 : i32
    %c0_i32_1 = arith.constant 0 : i32
    %c0_i32_2 = arith.constant 0 : i32
    return %arg0, %c0_i32, %c0_i32_0, %c0_i32_1 : i32, i32, i32, i32
  }
}

</mosaic_0001>

<llo_original>
// kernel: tpu_custom_call.1
$region0: #{tpu_custom_call.1}
  #allocation0 [shape = 'u32[]', space=smem, size = 0x4, offset = 0x4, fixed_abs, tag = 'smem constant byte address 0x4 - core index']
  #allocation1 [shape = 'u32[144,128]{1,0:T(1,128)}', space=vmem, size = 0x12000, scoped, tag = 'internal scratch']
  %s0 = inlined_call_operand.vmem [shape: f32[2,8,32], index: 0, kind: input, shape index: {}]
  %s1 = inlined_call_operand.hbm [shape: f32[4,32], index: 1, kind: input, shape index: {}]
  %s2 = inlined_call_operand.vmem [shape: bf16[32,96], index: 2, kind: input, shape index: {}]
  %s3 = inlined_call_operand.vmem [shape: bf16[32,32], index: 3, kind: input, shape index: {}]
  %s4 = inlined_call_operand.hbm [shape: bf16[32,96], index: 4, kind: input, shape index: {}]
  %s5 = inlined_call_operand.hbm [shape: bf16[32,64], index: 5, kind: input, shape index: {}]
  %s6 = inlined_call_operand.hbm [shape: bf16[32,32], index: 6, kind: input, shape index: {}]
  %s7 = inlined_call_operand.vmem [shape: f32[1,96], index: 7, kind: input, shape index: {}]
  %s8 = inlined_call_operand.hbm [shape: bf16[32,96], index: 8, kind: input, shape index: {}]
  %s9 = inlined_call_operand.vmem [shape: bf16[32,64], index: 9, kind: input, shape index: {}]
  %s10 = inlined_call_operand.hbm [shape: bf16[32,32], index: 10, kind: input, shape index: {}]
  %s11 = inlined_call_operand.vmem [shape: f32[1,96], index: 11, kind: input, shape index: {}]
  %s12 = inlined_call_operand.hbm [shape: bf16[32,64], index: 12, kind: input, shape index: {}]
  %s13 = inlined_call_operand.vmem [shape: f32[1,64], index: 13, kind: input, shape index: {}]
  %s14 = inlined_call_operand.vmem [shape: bf16[64,32], index: 14, kind: input, shape index: {}]
  %s15 = inlined_call_operand.vmem [shape: f32[1,32], index: 15, kind: input, shape index: {}]
  %s16 = inlined_call_operand.hbm [shape: f32[2,8,32], index: 16, kind: output, shape index: {0}]
  %s17 = inlined_call_operand.hbm [shape: f32[2,2,8,8], index: 17, kind: output, shape index: {1}]
  %18 = xla_tuple %s16, %s17
  %s19 = sld [smem:[#allocation0]]
  $region133: #{tpu_custom_call.1} parent=0
    _
  %s21 = ssub.s32 1, %s19
  %s22 = scalar_select 0, %s21, %s19
  $region1: #{tpu_custom_call.1} parent=0
    #allocation2 [shape = 'u8[2048]{0}', space=vmem, size = 0x800, scoped, tag = 'input window, operand 1, single buffered']
    #allocation3 [shape = 's32[2]{0}', space=sflag, size = 0x8, scoped, tag = 'scoped memory for tpu_custom_call.1']
    #allocation4 [shape = 's32[2]{0}', space=sflag, size = 0x8, scoped, tag = 'scoped memory for tpu_custom_call.1']
    #allocation5 [shape = 'u8[8192]{0}', space=vmem, size = 0x2000, scoped, tag = 'input window, operand 4, single buffered']
    #allocation6 [shape = 's32[1]{0}', space=sflag, size = 0x4, scoped, tag = 'scoped memory for tpu_custom_call.1']
    #allocation7 [shape = 'u8[8192]{0}', space=vmem, size = 0x2000, scoped, tag = 'input window, operand 5, single buffered']
    #allocation8 [shape = 'u8[8192]{0}', space=vmem, size = 0x2000, scoped, tag = 'input window, operand 6, single buffered']
    #allocation9 [shape = 's32[1]{0}', space=sflag, size = 0x4, scoped, tag = 'scoped memory for tpu_custom_call.1']
    #allocation10 [shape = 'u8[8192]{0}', space=vmem, size = 0x2000, scoped, tag = 'input window, operand 8, single buffered']
    #allocation11 [shape = 'u8[8192]{0}', space=vmem, size = 0x2000, scoped, tag = 'input window, operand 10, single buffered']
    #allocation12 [shape = 's32[1]{0}', space=sflag, size = 0x4, scoped, tag = 'scoped memory for tpu_custom_call.1']
    #allocation13 [shape = 'u8[8192]{0}', space=vmem, size = 0x2000, scoped, tag = 'input window, operand 12, single buffered']
    #allocation14 [shape = 'u8[8192]{0}', space=vmem, size = 0x2000, scoped, tag = 'output window, operand 0']
    #allocation15 [shape = 'u8[16384]{0}', space=vmem, size = 0x4000, scoped, tag = 'output window, operand 1']
    #allocation16 [shape = 's32[2]{0}', space=sflag, size = 0x8, scoped, tag = 'scoped memory for tpu_custom_call.1']
    %23 = vsyncpa [#allocation3], 0
    %24 = vsyncpa [#allocation6], 0
    %25 = vsyncpa [#allocation9], 0
    %26 = vsyncpa [#allocation12], 0
    %27 = vsyncpa [#allocation4], 0
    %s28 = scalar_lea.sflag [#allocation4], 1
    %29 = vsyncpa %s28, 0
    %30 = vsyncpa [#allocation16], 0
    %s31 = scalar_lea.sflag [#allocation16], 1
    %32 = vsyncpa %s31, 0
    loop: start=0, step=1, limit=4
    $region2: #{tpu_custom_call.1} parent=1 // loop_pre_header
      _
    $region3: #{tpu_custom_call.1} parent=1 // loop_header
      %s34 = sphi 0, %s38
      %p35 = scmp.ge.s32.totalorder %s34, 4
      %s44 = sphi 0, %s46
      %s47 = sphi 0, %s44
      %s48 = sphi 0, %s47
      %s64 = sphi 0, %s48
      %s68 = sphi 0, %s68
      %s70 = sphi 0, %s68
      %s71 = sphi 0, %s70
      %s85 = sphi 0, %s71
      %s89 = sphi 0, %s89
      %s91 = sphi 0, %s89
      %s92 = sphi 0, %s91
      %s106 = sphi 0, %s92
      %s110 = sphi 0, %s110
      %s112 = sphi 0, %s110
      %s113 = sphi 0, %s112
      %s127 = sphi 0, %s113
      %s131 = sphi 0, %s131
      %s133 = sphi 0, %s131
      %s134 = sphi 0, %s133
      %s148 = sphi 0, %s134
      %s152 = sphi 0, %s152
      %s154 = sphi 0, %s152
      %s155 = sphi 0, %s154
      %s169 = sphi 0, %s155
      %s173 = sphi 0, %s173
      %s175 = sphi 0, %s173
      %s176 = sphi 0, %s175
      %s190 = sphi 0, %s176
      %s194 = sphi 0, %s194
      %s196 = sphi 0, %s194
      %s197 = sphi 0, %s196
      %s211 = sphi 0, %s197
      %s215 = sphi 0, %s215
      %s217 = sphi 0, %s215
      %s218 = sphi 0, %s217
      %s232 = sphi 0, %s218
      %s236 = sphi 0, %s236
      %s238 = sphi 0, %s236
      %s239 = sphi 0, %s238
      %s253 = sphi 0, %s239
      %s257 = sphi 0, %s257
      %s259 = sphi 0, %s257
      %s260 = sphi 0, %s259
      %s274 = sphi 0, %s260
      %s278 = sphi 0, %s278
      %s280 = sphi 0, %s278
      %s281 = sphi 0, %s280
      %s295 = sphi 0, %s281
      %s299 = sphi 0, %s299
      %s301 = sphi 0, %s299
      %s302 = sphi 0, %s301
      %s316 = sphi 0, %s302
      %s320 = sphi 0, %s320
      %s322 = sphi 0, %s320
      %s323 = sphi 0, %s322
      %s337 = sphi 0, %s323
      %s341 = sphi 0, %s341
      %s343 = sphi 0, %s341
      %s344 = sphi 0, %s343
      %s358 = sphi 0, %s344
      %s362 = sphi 0, %s362
      %s364 = sphi 0, %s362
      %s365 = sphi 0, %s364
      %s379 = sphi 0, %s365
      %s385 = sphi 0, %s387
      %s388 = sphi 0, %s385
      %s389 = sphi 0, %s388
      %s405 = sphi 0, %s389
      %s411 = sphi 0, %s413
      %s414 = sphi 0, %s411
      %s415 = sphi 0, %s414
      %s431 = sphi 0, %s415
    $region4: #{tpu_custom_call.1} parent=1 // loop_header_branch
      %37 = sbr.rel (%p35) target = $region8
    $region5: #{tpu_custom_call.1} parent=1 // loop_body
      %s39 = ssub.s32 %s34, 1
      %s40 = ssub.s32 %s34, 2
      %s41 = sadd.s32 %s34, 1
      %s42 = ssub.s32 %s34, %s41
      %p43 = scmp.eq.s32.totalorder %s42, 0
      %s45 = sadd.s32 %s44, 1
      %s46 = scalar_select %p43, %s44, %s45
      %p49 = pneg %p43
      %p50 = scmp.eq.s32.totalorder %s34, 1
      %p51 = por %p49, %p50
      %p52 = scmp.ne.s32.totalorder %s44, %s47
      %p53 = scmp.eq.s32.totalorder %s34, 0
      %p54 = por %p52, %p53
      %p55 = scmp.ne.s32.totalorder %s44, %s47
      %p56 = scmp.eq.s32.totalorder %s39, 1
      %p57 = por %p55, %p56
      %p58 = scmp.ne.s32.totalorder %s47, %s48
      %p59 = scmp.eq.s32.totalorder %s39, 0
      %p60 = por %p58, %p59
      %p61 = scmp.ne.s32.totalorder %s47, %s48
      %p62 = scmp.eq.s32.totalorder %s40, 1
      %p63 = por %p61, %p62
      %p65 = scmp.ne.s32.totalorder %s48, %s64
      %p66 = scmp.eq.s32.totalorder %s40, 0
      %p67 = por %p65, %p66
      %s69 = sadd.s32 %s68, 1
      %p72 = scmp.eq.s32.totalorder %s34, 1
      %p73 = scmp.ne.s32.totalorder %s68, %s70
      %p74 = scmp.eq.s32.totalorder %s34, 0
      %p75 = por %p73, %p74
      %p76 = scmp.ne.s32.totalorder %s68, %s70
      %p77 = scmp.eq.s32.totalorder %s39, 1
      %p78 = por %p76, %p77
      %p79 = scmp.ne.s32.totalorder %s70, %s71
      %p80 = scmp.eq.s32.totalorder %s39, 0
      %p81 = por %p79, %p80
      %p82 = scmp.ne.s32.totalorder %s70, %s71
      %p83 = scmp.eq.s32.totalorder %s40, 1
      %p84 = por %p82, %p83
      %p86 = scmp.ne.s32.totalorder %s71, %s85
      %p87 = scmp.eq.s32.totalorder %s40, 0
      %p88 = por %p86, %p87
      %s90 = sadd.s32 %s89, 1
      %p93 = scmp.eq.s32.totalorder %s34, 1
      %p94 = scmp.ne.s32.totalorder %s89, %s91
      %p95 = scmp.eq.s32.totalorder %s34, 0
      %p96 = por %p94, %p95
      %p97 = scmp.ne.s32.totalorder %s89, %s91
      %p98 = scmp.eq.s32.totalorder %s39, 1
      %p99 = por %p97, %p98
      %p100 = scmp.ne.s32.totalorder %s91, %s92
      %p101 = scmp.eq.s32.totalorder %s39, 0
      %p102 = por %p100, %p101
      %p103 = scmp.ne.s32.totalorder %s91, %s92
      %p104 = scmp.eq.s32.totalorder %s40, 1
      %p105 = por %p103, %p104
      %p107 = scmp.ne.s32.totalorder %s92, %s106
      %p108 = scmp.eq.s32.totalorder %s40, 0
      %p109 = por %p107, %p108
      %s111 = sadd.s32 %s110, 1
      %p114 = scmp.eq.s32.totalorder %s34, 1
      %p115 = scmp.ne.s32.totalorder %s110, %s112
      %p116 = scmp.eq.s32.totalorder %s34, 0
      %p117 = por %p115, %p116
      %p118 = scmp.ne.s32.totalorder %s110, %s112
      %p119 = scmp.eq.s32.totalorder %s39, 1
      %p120 = por %p118, %p119
      %p121 = scmp.ne.s32.totalorder %s112, %s113
      %p122 = scmp.eq.s32.totalorder %s39, 0
      %p123 = por %p121, %p122
      %p124 = scmp.ne.s32.totalorder %s112, %s113
      %p125 = scmp.eq.s32.totalorder %s40, 1
      %p126 = por %p124, %p125
      %p128 = scmp.ne.s32.totalorder %s113, %s127
      %p129 = scmp.eq.s32.totalorder %s40, 0
      %p130 = por %p128, %p129
      %s132 = sadd.s32 %s131, 1
      %p135 = scmp.eq.s32.totalorder %s34, 1
      %p136 = scmp.ne.s32.totalorder %s131, %s133
      %p137 = scmp.eq.s32.totalorder %s34, 0
      %p138 = por %p136, %p137
      %p139 = scmp.ne.s32.totalorder %s131, %s133
      %p140 = scmp.eq.s32.totalorder %s39, 1
      %p141 = por %p139, %p140
      %p142 = scmp.ne.s32.totalorder %s133, %s134
      %p143 = scmp.eq.s32.totalorder %s39, 0
      %p144 = por %p142, %p143
      %p145 = scmp.ne.s32.totalorder %s133, %s134
      %p146 = scmp.eq.s32.totalorder %s40, 1
      %p147 = por %p145, %p146
      %p149 = scmp.ne.s32.totalorder %s134, %s148
      %p150 = scmp.eq.s32.totalorder %s40, 0
      %p151 = por %p149, %p150
      %s153 = sadd.s32 %s152, 1
      %p156 = scmp.eq.s32.totalorder %s34, 1
      %p157 = scmp.ne.s32.totalorder %s152, %s154
      %p158 = scmp.eq.s32.totalorder %s34, 0
      %p159 = por %p157, %p158
      %p160 = scmp.ne.s32.totalorder %s152, %s154
      %p161 = scmp.eq.s32.totalorder %s39, 1
      %p162 = por %p160, %p161
      %p163 = scmp.ne.s32.totalorder %s154, %s155
      %p164 = scmp.eq.s32.totalorder %s39, 0
      %p165 = por %p163, %p164
      %p166 = scmp.ne.s32.totalorder %s154, %s155
      %p167 = scmp.eq.s32.totalorder %s40, 1
      %p168 = por %p166, %p167
      %p170 = scmp.ne.s32.totalorder %s155, %s169
      %p171 = scmp.eq.s32.totalorder %s40, 0
      %p172 = por %p170, %p171
      %s174 = sadd.s32 %s173, 1
      %p177 = scmp.eq.s32.totalorder %s34, 1
      %p178 = scmp.ne.s32.totalorder %s173, %s175
      %p179 = scmp.eq.s32.totalorder %s34, 0
      %p180 = por %p178, %p179
      %p181 = scmp.ne.s32.totalorder %s173, %s175
      %p182 = scmp.eq.s32.totalorder %s39, 1
      %p183 = por %p181, %p182
      %p184 = scmp.ne.s32.totalorder %s175, %s176
      %p185 = scmp.eq.s32.totalorder %s39, 0
      %p186 = por %p184, %p185
      %p187 = scmp.ne.s32.totalorder %s175, %s176
      %p188 = scmp.eq.s32.totalorder %s40, 1
      %p189 = por %p187, %p188
      %p191 = scmp.ne.s32.totalorder %s176, %s190
      %p192 = scmp.eq.s32.totalorder %s40, 0
      %p193 = por %p191, %p192
      %s195 = sadd.s32 %s194, 1
      %p198 = scmp.eq.s32.totalorder %s34, 1
      %p199 = scmp.ne.s32.totalorder %s194, %s196
      %p200 = scmp.eq.s32.totalorder %s34, 0
      %p201 = por %p199, %p200
      %p202 = scmp.ne.s32.totalorder %s194, %s196
      %p203 = scmp.eq.s32.totalorder %s39, 1
      %p204 = por %p202, %p203
      %p205 = scmp.ne.s32.totalorder %s196, %s197
      %p206 = scmp.eq.s32.totalorder %s39, 0
      %p207 = por %p205, %p206
      %p208 = scmp.ne.s32.totalorder %s196, %s197
      %p209 = scmp.eq.s32.totalorder %s40, 1
      %p210 = por %p208, %p209
      %p212 = scmp.ne.s32.totalorder %s197, %s211
      %p213 = scmp.eq.s32.totalorder %s40, 0
      %p214 = por %p212, %p213
      %s216 = sadd.s32 %s215, 1
      %p219 = scmp.eq.s32.totalorder %s34, 1
      %p220 = scmp.ne.s32.totalorder %s215, %s217
      %p221 = scmp.eq.s32.totalorder %s34, 0
      %p222 = por %p220, %p221
      %p223 = scmp.ne.s32.totalorder %s215, %s217
      %p224 = scmp.eq.s32.totalorder %s39, 1
      %p225 = por %p223, %p224
      %p226 = scmp.ne.s32.totalorder %s217, %s218
      %p227 = scmp.eq.s32.totalorder %s39, 0
      %p228 = por %p226, %p227
      %p229 = scmp.ne.s32.totalorder %s217, %s218
      %p230 = scmp.eq.s32.totalorder %s40, 1
      %p231 = por %p229, %p230
      %p233 = scmp.ne.s32.totalorder %s218, %s232
      %p234 = scmp.eq.s32.totalorder %s40, 0
      %p235 = por %p233, %p234
      %s237 = sadd.s32 %s236, 1
      %p240 = scmp.eq.s32.totalorder %s34, 1
      %p241 = scmp.ne.s32.totalorder %s236, %s238
      %p242 = scmp.eq.s32.totalorder %s34, 0
      %p243 = por %p241, %p242
      %p244 = scmp.ne.s32.totalorder %s236, %s238
      %p245 = scmp.eq.s32.totalorder %s39, 1
      %p246 = por %p244, %p245
      %p247 = scmp.ne.s32.totalorder %s238, %s239
      %p248 = scmp.eq.s32.totalorder %s39, 0
      %p249 = por %p247, %p248
      %p250 = scmp.ne.s32.totalorder %s238, %s239
      %p251 = scmp.eq.s32.totalorder %s40, 1
      %p252 = por %p250, %p251
      %p254 = scmp.ne.s32.totalorder %s239, %s253
      %p255 = scmp.eq.s32.totalorder %s40, 0
      %p256 = por %p254, %p255
      %s258 = sadd.s32 %s257, 1
      %p261 = scmp.eq.s32.totalorder %s34, 1
      %p262 = scmp.ne.s32.totalorder %s257, %s259
      %p263 = scmp.eq.s32.totalorder %s34, 0
      %p264 = por %p262, %p263
      %p265 = scmp.ne.s32.totalorder %s257, %s259
      %p266 = scmp.eq.s32.totalorder %s39, 1
      %p267 = por %p265, %p266
      %p268 = scmp.ne.s32.totalorder %s259, %s260
      %p269 = scmp.eq.s32.totalorder %s39, 0
      %p270 = por %p268, %p269
      %p271 = scmp.ne.s32.totalorder %s259, %s260
      %p272 = scmp.eq.s32.totalorder %s40, 1
      %p273 = por %p271, %p272
      %p275 = scmp.ne.s32.totalorder %s260, %s274
      %p276 = scmp.eq.s32.totalorder %s40, 0
      %p277 = por %p275, %p276
      %s279 = sadd.s32 %s278, 1
      %p282 = scmp.eq.s32.totalorder %s34, 1
      %p283 = scmp.ne.s32.totalorder %s278, %s280
      %p284 = scmp.eq.s32.totalorder %s34, 0
      %p285 = por %p283, %p284
      %p286 = scmp.ne.s32.totalorder %s278, %s280
      %p287 = scmp.eq.s32.totalorder %s39, 1
      %p288 = por %p286, %p287
      %p289 = scmp.ne.s32.totalorder %s280, %s281
      %p290 = scmp.eq.s32.totalorder %s39, 0
      %p291 = por %p289, %p290
      %p292 = scmp.ne.s32.totalorder %s280, %s281
      %p293 = scmp.eq.s32.totalorder %s40, 1
      %p294 = por %p292, %p293
      %p296 = scmp.ne.s32.totalorder %s281, %s295
      %p297 = scmp.eq.s32.totalorder %s40, 0
      %p298 = por %p296, %p297
      %s300 = sadd.s32 %s299, 1
      %p303 = scmp.eq.s32.totalorder %s34, 1
      %p304 = scmp.ne.s32.totalorder %s299, %s301
      %p305 = scmp.eq.s32.totalorder %s34, 0
      %p306 = por %p304, %p305
      %p307 = scmp.ne.s32.totalorder %s299, %s301
      %p308 = scmp.eq.s32.totalorder %s39, 1
      %p309 = por %p307, %p308
      %p310 = scmp.ne.s32.totalorder %s301, %s302
      %p311 = scmp.eq.s32.totalorder %s39, 0
      %p312 = por %p310, %p311
      %p313 = scmp.ne.s32.totalorder %s301, %s302
      %p314 = scmp.eq.s32.totalorder %s40, 1
      %p315 = por %p313, %p314
      %p317 = scmp.ne.s32.totalorder %s302, %s316
      %p318 = scmp.eq.s32.totalorder %s40, 0
      %p319 = por %p317, %p318
      %s321 = sadd.s32 %s320, 1
      %p324 = scmp.eq.s32.totalorder %s34, 1
      %p325 = scmp.ne.s32.totalorder %s320, %s322
      %p326 = scmp.eq.s32.totalorder %s34, 0
      %p327 = por %p325, %p326
      %p328 = scmp.ne.s32.totalorder %s320, %s322
      %p329 = scmp.eq.s32.totalorder %s39, 1
      %p330 = por %p328, %p329
      %p331 = scmp.ne.s32.totalorder %s322, %s323
      %p332 = scmp.eq.s32.totalorder %s39, 0
      %p333 = por %p331, %p332
      %p334 = scmp.ne.s32.totalorder %s322, %s323
      %p335 = scmp.eq.s32.totalorder %s40, 1
      %p336 = por %p334, %p335
      %p338 = scmp.ne.s32.totalorder %s323, %s337
      %p339 = scmp.eq.s32.totalorder %s40, 0
      %p340 = por %p338, %p339
      %s342 = sadd.s32 %s341, 1
      %p345 = scmp.eq.s32.totalorder %s34, 1
      %p346 = scmp.ne.s32.totalorder %s341, %s343
      %p347 = scmp.eq.s32.totalorder %s34, 0
      %p348 = por %p346, %p347
      %p349 = scmp.ne.s32.totalorder %s341, %s343
      %p350 = scmp.eq.s32.totalorder %s39, 1
      %p351 = por %p349, %p350
      %p352 = scmp.ne.s32.totalorder %s343, %s344
      %p353 = scmp.eq.s32.totalorder %s39, 0
      %p354 = por %p352, %p353
      %p355 = scmp.ne.s32.totalorder %s343, %s344
      %p356 = scmp.eq.s32.totalorder %s40, 1
      %p357 = por %p355, %p356
      %p359 = scmp.ne.s32.totalorder %s344, %s358
      %p360 = scmp.eq.s32.totalorder %s40, 0
      %p361 = por %p359, %p360
      %s363 = sadd.s32 %s362, 1
      %p366 = scmp.eq.s32.totalorder %s34, 1
      %p367 = scmp.ne.s32.totalorder %s362, %s364
      %p368 = scmp.eq.s32.totalorder %s34, 0
      %p369 = por %p367, %p368
      %p370 = scmp.ne.s32.totalorder %s362, %s364
      %p371 = scmp.eq.s32.totalorder %s39, 1
      %p372 = por %p370, %p371
      %p373 = scmp.ne.s32.totalorder %s364, %s365
      %p374 = scmp.eq.s32.totalorder %s39, 0
      %p375 = por %p373, %p374
      %p376 = scmp.ne.s32.totalorder %s364, %s365
      %p377 = scmp.eq.s32.totalorder %s40, 1
      %p378 = por %p376, %p377
      %p380 = scmp.ne.s32.totalorder %s365, %s379
      %p381 = scmp.eq.s32.totalorder %s40, 0
      %p382 = por %p380, %p381
      %s383 = ssub.s32 %s34, %s41
      %p384 = scmp.eq.s32.totalorder %s383, 0
      %s386 = sadd.s32 %s385, 1
      %s387 = scalar_select %p384, %s385, %s386
      %p390 = pneg %p384
      %p391 = scmp.eq.s32.totalorder %s34, 1
      %p392 = por %p390, %p391
      %p393 = scmp.ne.s32.totalorder %s385, %s388
      %p394 = scmp.eq.s32.totalorder %s34, 0
      %p395 = por %p393, %p394
      %p396 = scmp.ne.s32.totalorder %s385, %s388
      %p397 = scmp.eq.s32.totalorder %s39, 1
      %p398 = por %p396, %p397
      %p399 = scmp.ne.s32.totalorder %s388, %s389
      %p400 = scmp.eq.s32.totalorder %s39, 0
      %p401 = por %p399, %p400
      %p402 = scmp.ne.s32.totalorder %s388, %s389
      %p403 = scmp.eq.s32.totalorder %s40, 1
      %p404 = por %p402, %p403
      %p406 = scmp.ne.s32.totalorder %s389, %s405
      %p407 = scmp.eq.s32.totalorder %s40, 0
      %p408 = por %p406, %p407
      %s409 = ssub.s32 %s34, %s41
      %p410 = scmp.eq.s32.totalorder %s409, 0
      %s412 = sadd.s32 %s411, 1
      %s413 = scalar_select %p410, %s411, %s412
      %p416 = pneg %p410
      %p417 = scmp.eq.s32.totalorder %s34, 1
      %p418 = por %p416, %p417
      %p419 = scmp.ne.s32.totalorder %s411, %s414
      %p420 = scmp.eq.s32.totalorder %s34, 0
      %p421 = por %p419, %p420
      %p422 = scmp.ne.s32.totalorder %s411, %s414
      %p423 = scmp.eq.s32.totalorder %s39, 1
      %p424 = por %p422, %p423
      %p425 = scmp.ne.s32.totalorder %s414, %s415
      %p426 = scmp.eq.s32.totalorder %s39, 0
      %p427 = por %p425, %p426
      %p428 = scmp.ne.s32.totalorder %s414, %s415
      %p429 = scmp.eq.s32.totalorder %s40, 1
      %p430 = por %p428, %p429
      %p432 = scmp.ne.s32.totalorder %s415, %s431
      %p433 = scmp.eq.s32.totalorder %s40, 0
      %p434 = por %p432, %p433
      %p435 = scmp.le.s32.totalorder 1, %s34
      %p436 = scmp.lt.s32.totalorder %s34, 3
      %p437 = pnand %p435, %p436
      %p438 = pneg %p437
      // Predicated region
      $region9: #{tpu_custom_call.1} parent=5 // pred_check
        _
      $region10: #{tpu_custom_call.1} parent=5 // pred_check_branch
        %440 = sbr.rel (%p437) target = $region12
      $region11: #{tpu_custom_call.1} parent=5 // pred_region
        %s441 = ssub.s32 %s34, 1
        // Predicated region
        $region13: #{tpu_custom_call.1} parent=11 // pred_check
          %p442 = pneg %p81
        $region14: #{tpu_custom_call.1} parent=11 // pred_check_branch
          %444 = sbr.rel (%p442) target = $region16
        $region15: #{tpu_custom_call.1} parent=11 // pred_region
          %s446 = ssub.s32 64, 64
          %447 = vsyncadd [#allocation3], %s446
          %s449 = sshll.u32 [#allocation2], 4
          %s450 = int_to_ptr.vmem [resolvable:$true] %s449
          %452 = dma.hbm_to_vmem [thread:$0]  %s1, 64, %s450, [#allocation3]
        $region16: #{tpu_custom_call.1} parent=11 // pred_fallthru
          _
        // Predicated region
        $region17: #{tpu_custom_call.1} parent=11 // pred_check
          %p453 = pneg %p102
        $region18: #{tpu_custom_call.1} parent=11 // pred_check_branch
          %455 = sbr.rel (%p453) target = $region20
        $region19: #{tpu_custom_call.1} parent=11 // pred_region
          _
        $region20: #{tpu_custom_call.1} parent=11 // pred_fallthru
          _
        // Predicated region
        $region21: #{tpu_custom_call.1} parent=11 // pred_check
          %p456 = pneg %p123
        $region22: #{tpu_custom_call.1} parent=11 // pred_check_branch
          %458 = sbr.rel (%p456) target = $region24
        $region23: #{tpu_custom_call.1} parent=11 // pred_region
          _
        $region24: #{tpu_custom_call.1} parent=11 // pred_fallthru
          _
        // Predicated region
        $region25: #{tpu_custom_call.1} parent=11 // pred_check
          %p459 = pneg %p144
        $region26: #{tpu_custom_call.1} parent=11 // pred_check_branch
          %461 = sbr.rel (%p459) target = $region28
        $region27: #{tpu_custom_call.1} parent=11 // pred_region
          %s463 = ssub.s32 256, 256
          %464 = vsyncadd [#allocation6], %s463
          %s465 = sshll.u32 [#allocation5], 4
          %s466 = int_to_ptr.vmem [resolvable:$true] %s465
          %471 = dma.hbm_to_vmem [thread:$0]  %s4, 256, %s466, [#allocation6], 64, 64, 4
        $region28: #{tpu_custom_call.1} parent=11 // pred_fallthru
          _
        // Predicated region
        $region29: #{tpu_custom_call.1} parent=11 // pred_check
          %p472 = pneg %p165
        $region30: #{tpu_custom_call.1} parent=11 // pred_check_branch
          %474 = sbr.rel (%p472) target = $region32
        $region31: #{tpu_custom_call.1} parent=11 // pred_region
          %s476 = ssub.s32 256, 256
          %477 = vsyncadd [#allocation6], %s476
          %s478 = sshll.u32 [#allocation7], 4
          %s479 = int_to_ptr.vmem [resolvable:$true] %s478
          %484 = dma.hbm_to_vmem [thread:$0]  %s5, 256, %s479, [#allocation6], 64, 64, 4
        $region32: #{tpu_custom_call.1} parent=11 // pred_fallthru
          _
        // Predicated region
        $region33: #{tpu_custom_call.1} parent=11 // pred_check
          %p485 = pneg %p186
        $region34: #{tpu_custom_call.1} parent=11 // pred_check_branch
          %487 = sbr.rel (%p485) target = $region36
        $region35: #{tpu_custom_call.1} parent=11 // pred_region
          %s489 = ssub.s32 256, 256
          %490 = vsyncadd [#allocation9], %s489
          %s491 = sshll.u32 [#allocation8], 4
          %s492 = int_to_ptr.vmem [resolvable:$true] %s491
          %497 = dma.hbm_to_vmem [thread:$0]  %s6, 256, %s492, [#allocation9], 64, 64, 4
        $region36: #{tpu_custom_call.1} parent=11 // pred_fallthru
          _
        // Predicated region
        $region37: #{tpu_custom_call.1} parent=11 // pred_check
          %p498 = pneg %p207
        $region38: #{tpu_custom_call.1} parent=11 // pred_check_branch
          %500 = sbr.rel (%p498) target = $region40
        $region39: #{tpu_custom_call.1} parent=11 // pred_region
          _
        $region40: #{tpu_custom_call.1} parent=11 // pred_fallthru
          _
        // Predicated region
        $region41: #{tpu_custom_call.1} parent=11 // pred_check
          %p501 = pneg %p228
        $region42: #{tpu_custom_call.1} parent=11 // pred_check_branch
          %503 = sbr.rel (%p501) target = $region44
        $region43: #{tpu_custom_call.1} parent=11 // pred_region
          %s505 = ssub.s32 256, 256
          %506 = vsyncadd [#allocation9], %s505
          %s507 = sshll.u32 [#allocation10], 4
          %s508 = int_to_ptr.vmem [resolvable:$true] %s507
          %513 = dma.hbm_to_vmem [thread:$0]  %s8, 256, %s508, [#allocation9], 64, 64, 4
        $region44: #{tpu_custom_call.1} parent=11 // pred_fallthru
          _
        // Predicated region
        $region45: #{tpu_custom_call.1} parent=11 // pred_check
          %p514 = pneg %p249
        $region46: #{tpu_custom_call.1} parent=11 // pred_check_branch
          %516 = sbr.rel (%p514) target = $region48
        $region47: #{tpu_custom_call.1} parent=11 // pred_region
          _
        $region48: #{tpu_custom_call.1} parent=11 // pred_fallthru
          _
        // Predicated region
        $region49: #{tpu_custom_call.1} parent=11 // pred_check
          %p517 = pneg %p270
        $region50: #{tpu_custom_call.1} parent=11 // pred_check_branch
          %519 = sbr.rel (%p517) target = $region52
        $region51: #{tpu_custom_call.1} parent=11 // pred_region
          %s521 = ssub.s32 256, 256
          %522 = vsyncadd [#allocation12], %s521
          %s523 = sshll.u32 [#allocation11], 4
          %s524 = int_to_ptr.vmem [resolvable:$true] %s523
          %529 = dma.hbm_to_vmem [thread:$0]  %s10, 256, %s524, [#allocation12], 64, 64, 4
        $region52: #{tpu_custom_call.1} parent=11 // pred_fallthru
          _
        // Predicated region
        $region53: #{tpu_custom_call.1} parent=11 // pred_check
          %p530 = pneg %p291
        $region54: #{tpu_custom_call.1} parent=11 // pred_check_branch
          %532 = sbr.rel (%p530) target = $region56
        $region55: #{tpu_custom_call.1} parent=11 // pred_region
          _
        $region56: #{tpu_custom_call.1} parent=11 // pred_fallthru
          _
        // Predicated region
        $region57: #{tpu_custom_call.1} parent=11 // pred_check
          %p533 = pneg %p312
        $region58: #{tpu_custom_call.1} parent=11 // pred_check_branch
          %535 = sbr.rel (%p533) target = $region60
        $region59: #{tpu_custom_call.1} parent=11 // pred_region
          %s537 = ssub.s32 256, 256
          %538 = vsyncadd [#allocation12], %s537
          %s539 = sshll.u32 [#allocation13], 4
          %s540 = int_to_ptr.vmem [resolvable:$true] %s539
          %545 = dma.hbm_to_vmem [thread:$0]  %s12, 256, %s540, [#allocation12], 64, 64, 4
        $region60: #{tpu_custom_call.1} parent=11 // pred_fallthru
          _
        // Predicated region
        $region61: #{tpu_custom_call.1} parent=11 // pred_check
          %p546 = pneg %p333
        $region62: #{tpu_custom_call.1} parent=11 // pred_check_branch
          %548 = sbr.rel (%p546) target = $region64
        $region63: #{tpu_custom_call.1} parent=11 // pred_region
          _
        $region64: #{tpu_custom_call.1} parent=11 // pred_fallthru
          _
        // Predicated region
        $region65: #{tpu_custom_call.1} parent=11 // pred_check
          %p549 = pneg %p354
        $region66: #{tpu_custom_call.1} parent=11 // pred_check_branch
          %551 = sbr.rel (%p549) target = $region68
        $region67: #{tpu_custom_call.1} parent=11 // pred_region
          _
        $region68: #{tpu_custom_call.1} parent=11 // pred_fallthru
          _
        // Predicated region
        $region69: #{tpu_custom_call.1} parent=11 // pred_check
          %p552 = pneg %p375
        $region70: #{tpu_custom_call.1} parent=11 // pred_check_branch
          %554 = sbr.rel (%p552) target = $region72
        $region71: #{tpu_custom_call.1} parent=11 // pred_region
          _
        $region72: #{tpu_custom_call.1} parent=11 // pred_fallthru
          _
      $region12: #{tpu_custom_call.1} parent=5 // pred_fallthru
        _
      %p555 = scmp.lt.s32.totalorder %s34, 2
      // Predicated region
      $region73: #{tpu_custom_call.1} parent=5 // pred_check
        %p556 = pneg %p555
      $region74: #{tpu_custom_call.1} parent=5 // pred_check_branch
        %558 = sbr.rel (%p556) target = $region76
      $region75: #{tpu_custom_call.1} parent=5 // pred_region
        // Predicated region
        $region77: #{tpu_custom_call.1} parent=75 // pred_check
          %p559 = pneg %p54
        $region78: #{tpu_custom_call.1} parent=75 // pred_check_branch
          %561 = sbr.rel (%p559) target = $region80
        $region79: #{tpu_custom_call.1} parent=75 // pred_region
          %p562 = scmp.lt.s32.totalorder %s34, 1
          %s563 = scalar_select %p562, %s34, 1
          %s564 = smul.addr %s563, 8
          %s565 = scalar_lea.vmem %s0, %s564
        $region80: #{tpu_custom_call.1} parent=75 // pred_fallthru
          _
      $region76: #{tpu_custom_call.1} parent=5 // pred_fallthru
        _
      %p566 = scmp.le.s32.totalorder 1, %s34
      %p567 = scmp.lt.s32.totalorder %s34, 3
      %p568 = pnand %p566, %p567
      %p569 = pneg %p568
      // Predicated region
      $region81: #{tpu_custom_call.1} parent=5 // pred_check
        _
      $region82: #{tpu_custom_call.1} parent=5 // pred_check_branch
        %571 = sbr.rel (%p568) target = $region84
      $region83: #{tpu_custom_call.1} parent=5 // pred_region
        %s572 = ssub.s32 %s34, 1
        // Predicated region
        $region85: #{tpu_custom_call.1} parent=83 // pred_check
          %p573 = pneg %p81
        $region86: #{tpu_custom_call.1} parent=83 // pred_check_branch
          %575 = sbr.rel (%p573) target = $region88
        $region87: #{tpu_custom_call.1} parent=83 // pred_region
          %576 = dma.done [#allocation3], 64
        $region88: #{tpu_custom_call.1} parent=83 // pred_fallthru
          _
        // Predicated region
        $region89: #{tpu_custom_call.1} parent=83 // pred_check
          %p577 = pneg %p144
        $region90: #{tpu_custom_call.1} parent=83 // pred_check_branch
          %579 = sbr.rel (%p577) target = $region92
        $region91: #{tpu_custom_call.1} parent=83 // pred_region
          %580 = dma.done [#allocation6], 256
        $region92: #{tpu_custom_call.1} parent=83 // pred_fallthru
          _
        // Predicated region
        $region93: #{tpu_custom_call.1} parent=83 // pred_check
          %p581 = pneg %p165
        $region94: #{tpu_custom_call.1} parent=83 // pred_check_branch
          %583 = sbr.rel (%p581) target = $region96
        $region95: #{tpu_custom_call.1} parent=83 // pred_region
          %584 = dma.done [#allocation6], 256
        $region96: #{tpu_custom_call.1} parent=83 // pred_fallthru
          _
        // Predicated region
        $region97: #{tpu_custom_call.1} parent=83 // pred_check
          %p585 = pneg %p186
        $region98: #{tpu_custom_call.1} parent=83 // pred_check_branch
          %587 = sbr.rel (%p585) target = $region100
        $region99: #{tpu_custom_call.1} parent=83 // pred_region
          %588 = dma.done [#allocation9], 256
        $region100: #{tpu_custom_call.1} parent=83 // pred_fallthru
          _
        // Predicated region
        $region101: #{tpu_custom_call.1} parent=83 // pred_check
          %p589 = pneg %p228
        $region102: #{tpu_custom_call.1} parent=83 // pred_check_branch
          %591 = sbr.rel (%p589) target = $region104
        $region103: #{tpu_custom_call.1} parent=83 // pred_region
          %592 = dma.done [#allocation9], 256
        $region104: #{tpu_custom_call.1} parent=83 // pred_fallthru
          _
        // Predicated region
        $region105: #{tpu_custom_call.1} parent=83 // pred_check
          %p593 = pneg %p270
        $region106: #{tpu_custom_call.1} parent=83 // pred_check_branch
          %595 = sbr.rel (%p593) target = $region108
        $region107: #{tpu_custom_call.1} parent=83 // pred_region
          %596 = dma.done [#allocation12], 256
        $region108: #{tpu_custom_call.1} parent=83 // pred_fallthru
          _
        // Predicated region
        $region109: #{tpu_custom_call.1} parent=83 // pred_check
          %p597 = pneg %p312
        $region110: #{tpu_custom_call.1} parent=83 // pred_check_branch
          %599 = sbr.rel (%p597) target = $region112
        $region111: #{tpu_custom_call.1} parent=83 // pred_region
          %600 = dma.done [#allocation12], 256
        $region112: #{tpu_custom_call.1} parent=83 // pred_fallthru
          _
        %p601 = scmp.lt.s32.totalorder %s39, 1
        %s602 = scalar_select %p601, %s39, 1
        %s603 = smul.addr %s602, 8
        %s604 = scalar_lea.vmem %s0, %s603
        %p605 = pneg %p60
        %p606 = pneg %p57
        %p607 = pneg %p81
        %p608 = pneg %p78
        %p609 = pneg %p102
        %p610 = pneg %p99
        %p611 = pneg %p123
        %p612 = pneg %p120
        %p613 = pneg %p144
        %p614 = pneg %p141
        %p615 = pneg %p165
        %p616 = pneg %p162
        %p617 = pneg %p186
        %p618 = pneg %p183
        %p619 = pneg %p207
        %p620 = pneg %p204
        %p621 = pneg %p228
        %p622 = pneg %p225
        %p623 = pneg %p249
        %p624 = pneg %p246
        %p625 = pneg %p270
        %p626 = pneg %p267
        %p627 = pneg %p291
        %p628 = pneg %p288
        %p629 = pneg %p312
        %p630 = pneg %p309
        %p631 = pneg %p333
        %p632 = pneg %p330
        %p633 = pneg %p354
        %p634 = pneg %p351
        %p635 = pneg %p375
        %p636 = pneg %p372
        %p637 = pneg %p401
        %p638 = pneg %p398
        %s639 = sand.u32 %s388, 1
        %s640 = scalar_lea.sflag [#allocation4], %s639
        %s641 = sand.u32 %s388, 1
        %s642 = smul.addr %s641, 8
        %s643 = scalar_lea.vmem [#allocation14], %s642
        %p644 = pneg %p427
        %p645 = pneg %p424
        %s646 = sand.u32 %s414, 1
        %s647 = scalar_lea.sflag [#allocation16], %s646
        %s648 = sand.u32 %s414, 1
        %s649 = smul.addr %s648, 16
        %s650 = scalar_lea.vmem [#allocation15], %s649
        %p651 = scmp.lt.s32.totalorder %s39, 1
        %s652 = scalar_select %p651, %s39, 1
        %s653 = smul.addr %s652, 8
        %s654 = scalar_lea.vmem %s0, %s653
        %v656 = vld [vmem:[%s654] sm:$0xff]
        %v657 = vld [vmem:[#allocation2] sm:$0x1]
        %v658 = vld [vmem:[#allocation2 + $0x1] sm:$0x1]
        %vm659 = vcmask 261120
        %v660 = vsel %vm659, %v656, 0.0
        %661 = vadd.xlane.f32.xlu0 %v660
        %v662 = vpop.xlane.xlu0 %661
        %v663 = vrcp.pop 32.0
        %v664 = vmul.f32 %v662, %v663
        %v665 = vsub.f32 %v656, %v664
        %v666 = vmul.f32 %v665, %v665
        %v667 = vsel %vm659, %v666, 0.0
        %668 = vadd.xlane.f32.xlu0 %v667
        %v669 = vpop.xlane.xlu0 %668
        %v670 = vmul.f32 %v669, %v663
        %v671 = vadd.f32 %v670, 1e-06
        %v672 = vrsqrt.pop %v671
        %v673 = vmul.f32 %v665, %v672
        %v674 = vlaneseq
        %v675 = vshrl.u32 %v674, 7
        %v676 = vsub.s32 0, %v675
        %v677 = vrot.slane %v657, %v676
        %v678 = vmul.f32 %v673, %v677
        %v679 = vlaneseq
        %v680 = vshrl.u32 %v679, 7
        %v681 = vsub.s32 0, %v680
        %v682 = vrot.slane %v658, %v681
        %v683 = vadd.f32 %v678, %v682
        %v684 = vpack.c.bf16 %v683, %v683
        %v685 = vld [vmem:[%s2] sm:$0xf]
        %v686 = vld [vmem:[%s2 + $0x4] sm:$0xf]
        %v687 = vld [vmem:[%s2 + $0x8] sm:$0xf]
        %v688 = vld [vmem:[%s2 + $0xc] sm:$0xf]
        %v693 = vunpack.c.l.b16 %v685
        %v694 = vunpack.c.l.b16 %v686
        %v695 = vunpack.c.l.b16 %v687
        %v696 = vunpack.c.l.b16 %v688
        %v697 = vpack.c.b16 %v694, %v693
        %v698 = vpack.c.b16 %v696, %v695
        %v702 = vsel %vm659, %v684, 0
        %704 = vmatprep.subr.bf16.mxu0 0
        %705 = vmatpush1.bf16.msra.mxu0 %v697
        %706 = vmatprep.subr.bf16.mxu0 0
        %707 = vmatpush1.bf16.msra.mxu0 %v698
        %708 = vmatprep.subr.bf16.mxu0 0
        %709 = vmatpush1.bf16.msra.mxu0 0
        %710 = vmatprep.subr.bf16.mxu0 0
        %711 = vmatpush1.bf16.msra.mxu0 0
        %712 = vmatprep.subr.bf16.mxu0 0
        %713 = vmatpush1.bf16.msra.mxu0 0
        %714 = vmatprep.subr.bf16.mxu0 0
        %715 = vmatpush1.bf16.msra.mxu0 0
        %716 = vmatprep.subr.bf16.mxu0 0
        %717 = vmatpush1.bf16.msra.mxu0 0
        %718 = vmatprep.subr.bf16.mxu0 0
        %719 = vmatpush1.bf16.msra.mxu0 0
        %720 = vmatprep.subr.bf16.mxu0 0
        %721 = vmatpush1.bf16.msra.mxu0 0
        %722 = vmatprep.subr.bf16.mxu0 0
        %723 = vmatpush1.bf16.msra.mxu0 0
        %724 = vmatprep.subr.bf16.mxu0 0
        %725 = vmatpush1.bf16.msra.mxu0 0
        %726 = vmatprep.subr.bf16.mxu0 0
        %727 = vmatpush1.bf16.msra.mxu0 0
        %728 = vmatprep.subr.bf16.mxu0 0
        %729 = vmatpush1.bf16.msra.mxu0 0
        %730 = vmatprep.subr.bf16.mxu0 0
        %731 = vmatpush1.bf16.msra.mxu0 0
        %732 = vmatprep.subr.bf16.mxu0 0
        %733 = vmatpush1.bf16.msra.mxu0 0
        %734 = vmatprep.subr.bf16.mxu0 0
        %735 = vmatpush1.bf16.msra.mxu0 0
        %736 = vmatprep.mubr.bf16.mxu0 0
        %737 = vmatmul.mubr.bf16.gmra.mrb[0].mxu0 %v702
        %v738 = vpop.f32.mrb[0].mxu0
        %v739 = vadd.f32 0.0, %v738
        %v740 = vpop.f32.mrb[0].mxu0
        %v741 = vpop.f32.mrb[0].mxu0
        %v742 = vpop.f32.mrb[0].mxu0
        %743 = vdwg.mxu0
        %v744 = vpack.c.bf16 %v739, %v739
        %746 = vrot.lane.b32.xlu0 %v744, 96
        %v747 = vpop.permute.xlu0 %746
        %vm748 = vcmask 130048
        %v750 = vsel %vm748, %v744, 0
        %v753 = vsel %vm748, %v747, 0
        %755 = vmatprep.subr.bf16.mxu0 0
        %756 = vmatpush1.bf16.xpose.msra.mxu0 %v753
        %757 = vmatprep.subr.bf16.mxu0 0
        %758 = vmatpush1.bf16.xpose.msra.mxu0 0
        %759 = vmatprep.subr.bf16.mxu0 0
        %760 = vmatpush1.bf16.xpose.msra.mxu0 0
        %761 = vmatprep.subr.bf16.mxu0 0
        %762 = vmatpush1.bf16.xpose.msra.mxu0 0
        %763 = vmatprep.subr.bf16.mxu0 0
        %764 = vmatpush1.bf16.xpose.msra.mxu0 0
        %765 = vmatprep.subr.bf16.mxu0 0
        %766 = vmatpush1.bf16.xpose.msra.mxu0 0
        %767 = vmatprep.subr.bf16.mxu0 0
        %768 = vmatpush1.bf16.xpose.msra.mxu0 0
        %769 = vmatprep.subr.bf16.mxu0 0
        %770 = vmatpush1.bf16.xpose.msra.mxu0 0
        %771 = vmatprep.subr.bf16.mxu0 0
        %772 = vmatpush1.bf16.xpose.msra.mxu0 0
        %773 = vmatprep.subr.bf16.mxu0 0
        %774 = vmatpush1.bf16.xpose.msra.mxu0 0
        %775 = vmatprep.subr.bf16.mxu0 0
        %776 = vmatpush1.bf16.xpose.msra.mxu0 0
        %777 = vmatprep.subr.bf16.mxu0 0
        %778 = vmatpush1.bf16.xpose.msra.mxu0 0
        %779 = vmatprep.subr.bf16.mxu0 0
        %780 = vmatpush1.bf16.xpose.msra.mxu0 0
        %781 = vmatprep.subr.bf16.mxu0 0
        %782 = vmatpush1.bf16.xpose.msra.mxu0 0
        %783 = vmatprep.subr.bf16.mxu0 0
        %784 = vmatpush1.bf16.xpose.msra.mxu0 0
        %785 = vmatprep.subr.bf16.mxu0 0
        %786 = vmatpush1.bf16.xpose.msra.mxu0 0
        %787 = vmatprep.mubr.bf16.mxu0 0
        %788 = vmatmul.mubr.bf16.gmra.mrb[0].mxu0 %v750
        %v789 = vpop.f32.mrb[0].mxu0
        %v790 = vadd.f32 0.0, %v789
        %v791 = vpop.f32.mrb[0].mxu0
        %v792 = vpop.f32.mrb[0].mxu0
        %v793 = vpop.f32.mrb[0].mxu0
        %794 = vdwg.mxu0
        %vm795 = vcmask 64512
        %v796 = vsel %vm795, %v790, -inf
        %797 = vmax.xlane.f32.xlu0 %v796
        %v798 = vpop.xlane.xlu0 %797
        %v799 = vsub.f32 %v790, %v798
        %v800 = vmul.f32 %v799, 1.442695
        %v801 = vpow.pop %v800
        %v802 = vsel %vm795, %v801, 0.0
        %803 = vadd.xlane.f32.xlu0 %v802
        %v804 = vpop.xlane.xlu0 %803
        %v805 = vrcp.pop %v804
        %v806 = vmul.f32 %v801, %v805
        %v807 = vrcp.pop %v804
        %v808 = vmul.f32 %v801, %v807
        %809 = vst.msk [vmem:[%s650] sm:$0xff] %vm795, %v808
        %v810 = vpack.c.bf16 %v806, %v806
        %811 = vrot.lane.b32.xlu0 %v744, 64
        %v812 = vpop.permute.xlu0 %811
        %v814 = vsel %vm795, %v810, 0
        %vm816 = vcmask 1043456
        %v818 = vsel %vm816, %v812, 0
        %820 = vmatprep.subr.bf16.mxu0 0
        %821 = vmatpush1.bf16.msra.mxu0 %v818
        %822 = vmatprep.subr.bf16.mxu0 0
        %823 = vmatpush1.bf16.msra.mxu0 0
        %824 = vmatprep.subr.bf16.mxu0 0
        %825 = vmatpush1.bf16.msra.mxu0 0
        %826 = vmatprep.subr.bf16.mxu0 0
        %827 = vmatpush1.bf16.msra.mxu0 0
        %828 = vmatprep.subr.bf16.mxu0 0
        %829 = vmatpush1.bf16.msra.mxu0 0
        %830 = vmatprep.subr.bf16.mxu0 0
        %831 = vmatpush1.bf16.msra.mxu0 0
        %832 = vmatprep.subr.bf16.mxu0 0
        %833 = vmatpush1.bf16.msra.mxu0 0
        %834 = vmatprep.subr.bf16.mxu0 0
        %835 = vmatpush1.bf16.msra.mxu0 0
        %836 = vmatprep.subr.bf16.mxu0 0
        %837 = vmatpush1.bf16.msra.mxu0 0
        %838 = vmatprep.subr.bf16.mxu0 0
        %839 = vmatpush1.bf16.msra.mxu0 0
        %840 = vmatprep.subr.bf16.mxu0 0
        %841 = vmatpush1.bf16.msra.mxu0 0
        %842 = vmatprep.subr.bf16.mxu0 0
        %843 = vmatpush1.bf16.msra.mxu0 0
        %844 = vmatprep.subr.bf16.mxu0 0
        %845 = vmatpush1.bf16.msra.mxu0 0
        %846 = vmatprep.subr.bf16.mxu0 0
        %847 = vmatpush1.bf16.msra.mxu0 0
        %848 = vmatprep.subr.bf16.mxu0 0
        %849 = vmatpush1.bf16.msra.mxu0 0
        %850 = vmatprep.subr.bf16.mxu0 0
        %851 = vmatpush1.bf16.msra.mxu0 0
        %852 = vmatprep.mubr.bf16.mxu0 0
        %853 = vmatmul.mubr.bf16.gmra.mrb[0].mxu0 %v814
        %v854 = vpop.f32.mrb[0].mxu0
        %v855 = vadd.f32 0.0, %v854
        %v856 = vpop.f32.mrb[0].mxu0
        %v857 = vpop.f32.mrb[0].mxu0
        %v858 = vpop.f32.mrb[0].mxu0
        %859 = vdwg.mxu0
        %860 = vrot.lane.b32.xlu0 %v744, 112
        %v861 = vpop.permute.xlu0 %860
        %862 = vrot.lane.b32.xlu0 %v744, 80
        %v863 = vpop.permute.xlu0 %862
        %v865 = vsel %vm748, %v861, 0
        %v868 = vsel %vm748, %v863, 0
        %870 = vmatprep.subr.bf16.mxu0 0
        %871 = vmatpush1.bf16.xpose.msra.mxu0 %v868
        %872 = vmatprep.subr.bf16.mxu0 0
        %873 = vmatpush1.bf16.xpose.msra.mxu0 0
        %874 = vmatprep.subr.bf16.mxu0 0
        %875 = vmatpush1.bf16.xpose.msra.mxu0 0
        %876 = vmatprep.subr.bf16.mxu0 0
        %877 = vmatpush1.bf16.xpose.msra.mxu0 0
        %878 = vmatprep.subr.bf16.mxu0 0
        %879 = vmatpush1.bf16.xpose.msra.mxu0 0
        %880 = vmatprep.subr.bf16.mxu0 0
        %881 = vmatpush1.bf16.xpose.msra.mxu0 0
        %882 = vmatprep.subr.bf16.mxu0 0
        %883 = vmatpush1.bf16.xpose.msra.mxu0 0
        %884 = vmatprep.subr.bf16.mxu0 0
        %885 = vmatpush1.bf16.xpose.msra.mxu0 0
        %886 = vmatprep.subr.bf16.mxu0 0
        %887 = vmatpush1.bf16.xpose.msra.mxu0 0
        %888 = vmatprep.subr.bf16.mxu0 0
        %889 = vmatpush1.bf16.xpose.msra.mxu0 0
        %890 = vmatprep.subr.bf16.mxu0 0
        %891 = vmatpush1.bf16.xpose.msra.mxu0 0
        %892 = vmatprep.subr.bf16.mxu0 0
        %893 = vmatpush1.bf16.xpose.msra.mxu0 0
        %894 = vmatprep.subr.bf16.mxu0 0
        %895 = vmatpush1.bf16.xpose.msra.mxu0 0
        %896 = vmatprep.subr.bf16.mxu0 0
        %897 = vmatpush1.bf16.xpose.msra.mxu0 0
        %898 = vmatprep.subr.bf16.mxu0 0
        %899 = vmatpush1.bf16.xpose.msra.mxu0 0
        %900 = vmatprep.subr.bf16.mxu0 0
        %901 = vmatpush1.bf16.xpose.msra.mxu0 0
        %902 = vmatprep.mubr.bf16.mxu0 0
        %903 = vmatmul.mubr.bf16.gmra.mrb[0].mxu0 %v865
        %v904 = vpop.f32.mrb[0].mxu0
        %v905 = vadd.f32 0.0, %v904
        %v906 = vpop.f32.mrb[0].mxu0
        %v907 = vpop.f32.mrb[0].mxu0
        %v908 = vpop.f32.mrb[0].mxu0
        %909 = vdwg.mxu0
        %v910 = vsel %vm795, %v905, -inf
        %911 = vmax.xlane.f32.xlu0 %v910
        %v912 = vpop.xlane.xlu0 %911
        %v913 = vsub.f32 %v905, %v912
        %v914 = vmul.f32 %v913, 1.442695
        %v915 = vpow.pop %v914
        %v916 = vsel %vm795, %v915, 0.0
        %917 = vadd.xlane.f32.xlu0 %v916
        %v918 = vpop.xlane.xlu0 %917
        %v919 = vrcp.pop %v918
        %v920 = vmul.f32 %v915, %v919
        %v921 = vrcp.pop %v918
        %v922 = vmul.f32 %v915, %v921
        %s923 = scalar_lea.vmem %s650, 8 [#allocation15]
        %924 = vst.msk [vmem:[%s923] sm:$0xff] %vm795, %v922
        %v925 = vpack.c.bf16 %v920, %v920
        %926 = vrot.lane.b32.xlu0 %v744, 48
        %v927 = vpop.permute.xlu0 %926
        %v929 = vsel %vm795, %v925, 0
        %v932 = vsel %vm816, %v927, 0
        %934 = vmatprep.subr.bf16.mxu0 0
        %935 = vmatpush1.bf16.msra.mxu0 %v932
        %936 = vmatprep.subr.bf16.mxu0 0
        %937 = vmatpush1.bf16.msra.mxu0 0
        %938 = vmatprep.subr.bf16.mxu0 0
        %939 = vmatpush1.bf16.msra.mxu0 0
        %940 = vmatprep.subr.bf16.mxu0 0
        %941 = vmatpush1.bf16.msra.mxu0 0
        %942 = vmatprep.subr.bf16.mxu0 0
        %943 = vmatpush1.bf16.msra.mxu0 0
        %944 = vmatprep.subr.bf16.mxu0 0
        %945 = vmatpush1.bf16.msra.mxu0 0
        %946 = vmatprep.subr.bf16.mxu0 0
        %947 = vmatpush1.bf16.msra.mxu0 0
        %948 = vmatprep.subr.bf16.mxu0 0
        %949 = vmatpush1.bf16.msra.mxu0 0
        %950 = vmatprep.subr.bf16.mxu0 0
        %951 = vmatpush1.bf16.msra.mxu0 0
        %952 = vmatprep.subr.bf16.mxu0 0
        %953 = vmatpush1.bf16.msra.mxu0 0
        %954 = vmatprep.subr.bf16.mxu0 0
        %955 = vmatpush1.bf16.msra.mxu0 0
        %956 = vmatprep.subr.bf16.mxu0 0
        %957 = vmatpush1.bf16.msra.mxu0 0
        %958 = vmatprep.subr.bf16.mxu0 0
        %959 = vmatpush1.bf16.msra.mxu0 0
        %960 = vmatprep.subr.bf16.mxu0 0
        %961 = vmatpush1.bf16.msra.mxu0 0
        %962 = vmatprep.subr.bf16.mxu0 0
        %963 = vmatpush1.bf16.msra.mxu0 0
        %964 = vmatprep.subr.bf16.mxu0 0
        %965 = vmatpush1.bf16.msra.mxu0 0
        %966 = vmatprep.mubr.bf16.mxu0 0
        %967 = vmatmul.mubr.bf16.gmra.mrb[0].mxu0 %v929
        %v968 = vpop.f32.mrb[0].mxu0
        %v969 = vadd.f32 0.0, %v968
        %v970 = vpop.f32.mrb[0].mxu0
        %v971 = vpop.f32.mrb[0].mxu0
        %v972 = vpop.f32.mrb[0].mxu0
        %973 = vdwg.mxu0
        %975 = vrot.lane.b32.xlu0 %v969, 16
        %v976 = vpop.permute.xlu0 %975
        %v978 = vsel %vm748, %v855, %v976
        %v979 = vpack.c.bf16 %v978, %v978
        %v980 = vld [vmem:[%s3] sm:$0xf]
        %v981 = vld [vmem:[%s3 + $0x4] sm:$0xf]
        %v982 = vld [vmem:[%s3 + $0x8] sm:$0xf]
        %v983 = vld [vmem:[%s3 + $0xc] sm:$0xf]
        %v988 = vunpack.c.l.b16 %v980
        %v989 = vunpack.c.l.b16 %v981
        %v990 = vunpack.c.l.b16 %v982
        %v991 = vunpack.c.l.b16 %v983
        %v992 = vpack.c.b16 %v989, %v988
        %v993 = vpack.c.b16 %v991, %v990
        %v997 = vsel %vm659, %v979, 0
        %999 = vmatprep.subr.bf16.mxu0 0
        %1000 = vmatpush1.bf16.msra.mxu0 %v992
        %1001 = vmatprep.subr.bf16.mxu0 0
        %1002 = vmatpush1.bf16.msra.mxu0 %v993
        %1003 = vmatprep.subr.bf16.mxu0 0
        %1004 = vmatpush1.bf16.msra.mxu0 0
        %1005 = vmatprep.subr.bf16.mxu0 0
        %1006 = vmatpush1.bf16.msra.mxu0 0
        %1007 = vmatprep.subr.bf16.mxu0 0
        %1008 = vmatpush1.bf16.msra.mxu0 0
        %1009 = vmatprep.subr.bf16.mxu0 0
        %1010 = vmatpush1.bf16.msra.mxu0 0
        %1011 = vmatprep.subr.bf16.mxu0 0
        %1012 = vmatpush1.bf16.msra.mxu0 0
        %1013 = vmatprep.subr.bf16.mxu0 0
        %1014 = vmatpush1.bf16.msra.mxu0 0
        %1015 = vmatprep.subr.bf16.mxu0 0
        %1016 = vmatpush1.bf16.msra.mxu0 0
        %1017 = vmatprep.subr.bf16.mxu0 0
        %1018 = vmatpush1.bf16.msra.mxu0 0
        %1019 = vmatprep.subr.bf16.mxu0 0
        %1020 = vmatpush1.bf16.msra.mxu0 0
        %1021 = vmatprep.subr.bf16.mxu0 0
        %1022 = vmatpush1.bf16.msra.mxu0 0
        %1023 = vmatprep.subr.bf16.mxu0 0
        %1024 = vmatpush1.bf16.msra.mxu0 0
        %1025 = vmatprep.subr.bf16.mxu0 0
        %1026 = vmatpush1.bf16.msra.mxu0 0
        %1027 = vmatprep.subr.bf16.mxu0 0
        %1028 = vmatpush1.bf16.msra.mxu0 0
        %1029 = vmatprep.subr.bf16.mxu0 0
        %1030 = vmatpush1.bf16.msra.mxu0 0
        %1031 = vmatprep.mubr.bf16.mxu0 0
        %1032 = vmatmul.mubr.bf16.gmra.mrb[0].mxu0 %v997
        %v1033 = vpop.f32.mrb[0].mxu0
        %v1034 = vadd.f32 0.0, %v1033
        %v1035 = vpop.f32.mrb[0].mxu0
        %v1036 = vpop.f32.mrb[0].mxu0
        %v1037 = vpop.f32.mrb[0].mxu0
        %1038 = vdwg.mxu0
        %v1039 = vpack.c.bf16 %v656, %v656
        %v1040 = vpack.c.bf16 %v1034, %v1034
        %v1041 = vld [vmem:[#allocation5] sm:$0xf]
        %v1042 = vld [vmem:[#allocation5 + $0x4] sm:$0xf]
        %v1043 = vld [vmem:[#allocation5 + $0x8] sm:$0xf]
        %v1044 = vld [vmem:[#allocation5 + $0xc] sm:$0xf]
        %v1045 = vld [vmem:[%s7] sm:$0x1]
        %v1047 = vlaneseq
        %v1048 = vshrl.u32 %v1047, 7
        %v1049 = vsub.s32 0, %v1048
        %v1050 = vrot.slane %v1045, %v1049
        %v1056 = vunpack.c.l.b16 %v1041
        %v1057 = vunpack.c.l.b16 %v1042
        %v1058 = vunpack.c.l.b16 %v1043
        %v1059 = vunpack.c.l.b16 %v1044
        %v1060 = vpack.c.b16 %v1057, %v1056
        %v1061 = vpack.c.b16 %v1059, %v1058
        %v1065 = vsel %vm659, %v1040, 0
        %1067 = vmatprep.subr.bf16.mxu0 0
        %1068 = vmatpush1.bf16.msra.mxu0 %v1060
        %1069 = vmatprep.subr.bf16.mxu0 0
        %1070 = vmatpush1.bf16.msra.mxu0 %v1061
        %1071 = vmatprep.subr.bf16.mxu0 0
        %1072 = vmatpush1.bf16.msra.mxu0 0
        %1073 = vmatprep.subr.bf16.mxu0 0
        %1074 = vmatpush1.bf16.msra.mxu0 0
        %1075 = vmatprep.subr.bf16.mxu0 0
        %1076 = vmatpush1.bf16.msra.mxu0 0
        %1077 = vmatprep.subr.bf16.mxu0 0
        %1078 = vmatpush1.bf16.msra.mxu0 0
        %1079 = vmatprep.subr.bf16.mxu0 0
        %1080 = vmatpush1.bf16.msra.mxu0 0
        %1081 = vmatprep.subr.bf16.mxu0 0
        %1082 = vmatpush1.bf16.msra.mxu0 0
        %1083 = vmatprep.subr.bf16.mxu0 0
        %1084 = vmatpush1.bf16.msra.mxu0 0
        %1085 = vmatprep.subr.bf16.mxu0 0
        %1086 = vmatpush1.bf16.msra.mxu0 0
        %1087 = vmatprep.subr.bf16.mxu0 0
        %1088 = vmatpush1.bf16.msra.mxu0 0
        %1089 = vmatprep.subr.bf16.mxu0 0
        %1090 = vmatpush1.bf16.msra.mxu0 0
        %1091 = vmatprep.subr.bf16.mxu0 0
        %1092 = vmatpush1.bf16.msra.mxu0 0
        %1093 = vmatprep.subr.bf16.mxu0 0
        %1094 = vmatpush1.bf16.msra.mxu0 0
        %1095 = vmatprep.subr.bf16.mxu0 0
        %1096 = vmatpush1.bf16.msra.mxu0 0
        %1097 = vmatprep.subr.bf16.mxu0 0
        %1098 = vmatpush1.bf16.msra.mxu0 0
        %1099 = vmatprep.mubr.bf16.mxu0 0
        %1100 = vmatmul.mubr.bf16.gmra.mrb[0].mxu0 %v1065
        %v1101 = vpop.f32.mrb[0].mxu0
        %v1102 = vadd.f32 %v1050, %v1101
        %v1103 = vpop.f32.mrb[0].mxu0
        %v1104 = vpop.f32.mrb[0].mxu0
        %v1105 = vpop.f32.mrb[0].mxu0
        %1106 = vdwg.mxu0
        %v1107 = vld [vmem:[#allocation7] sm:$0xf]
        %v1108 = vld [vmem:[#allocation7 + $0x4] sm:$0xf]
        %v1109 = vld [vmem:[#allocation7 + $0x8] sm:$0xf]
        %v1110 = vld [vmem:[#allocation7 + $0xc] sm:$0xf]
        %v1115 = vunpack.c.l.b16 %v1107
        %v1116 = vunpack.c.l.b16 %v1108
        %v1117 = vunpack.c.l.b16 %v1109
        %v1118 = vunpack.c.l.b16 %v1110
        %v1119 = vpack.c.b16 %v1116, %v1115
        %v1120 = vpack.c.b16 %v1118, %v1117
        %v1124 = vsel %vm659, %v1039, 0
        %1126 = vmatprep.subr.bf16.mxu0 0
        %1127 = vmatpush1.bf16.msra.mxu0 %v1119
        %1128 = vmatprep.subr.bf16.mxu0 0
        %1129 = vmatpush1.bf16.msra.mxu0 %v1120
        %1130 = vmatprep.subr.bf16.mxu0 0
        %1131 = vmatpush1.bf16.msra.mxu0 0
        %1132 = vmatprep.subr.bf16.mxu0 0
        %1133 = vmatpush1.bf16.msra.mxu0 0
        %1134 = vmatprep.subr.bf16.mxu0 0
        %1135 = vmatpush1.bf16.msra.mxu0 0
        %1136 = vmatprep.subr.bf16.mxu0 0
        %1137 = vmatpush1.bf16.msra.mxu0 0
        %1138 = vmatprep.subr.bf16.mxu0 0
        %1139 = vmatpush1.bf16.msra.mxu0 0
        %1140 = vmatprep.subr.bf16.mxu0 0
        %1141 = vmatpush1.bf16.msra.mxu0 0
        %1142 = vmatprep.subr.bf16.mxu0 0
        %1143 = vmatpush1.bf16.msra.mxu0 0
        %1144 = vmatprep.subr.bf16.mxu0 0
        %1145 = vmatpush1.bf16.msra.mxu0 0
        %1146 = vmatprep.subr.bf16.mxu0 0
        %1147 = vmatpush1.bf16.msra.mxu0 0
        %1148 = vmatprep.subr.bf16.mxu0 0
        %1149 = vmatpush1.bf16.msra.mxu0 0
        %1150 = vmatprep.subr.bf16.mxu0 0
        %1151 = vmatpush1.bf16.msra.mxu0 0
        %1152 = vmatprep.subr.bf16.mxu0 0
        %1153 = vmatpush1.bf16.msra.mxu0 0
        %1154 = vmatprep.subr.bf16.mxu0 0
        %1155 = vmatpush1.bf16.msra.mxu0 0
        %1156 = vmatprep.subr.bf16.mxu0 0
        %1157 = vmatpush1.bf16.msra.mxu0 0
        %1158 = vmatprep.mubr.bf16.mxu0 0
        %1159 = vmatmul.mubr.bf16.gmra.mrb[0].mxu0 %v1124
        %v1160 = vpop.f32.mrb[0].mxu0
        %v1161 = vadd.f32 0.0, %v1160
        %v1162 = vpop.f32.mrb[0].mxu0
        %v1163 = vpop.f32.mrb[0].mxu0
        %v1164 = vpop.f32.mrb[0].mxu0
        %1165 = vdwg.mxu0
        %v1166 = vadd.f32 %v1102, %v1161
        %v1167 = vxor.u32 %v1166, 2147483648
        %v1168 = vmul.f32 %v1167, 1.442695
        %v1169 = vpow.pop %v1168
        %v1170 = vadd.f32 %v1169, 1.0
        %v1171 = vrcp.pop %v1170
        %v1172 = vmul.f32 1.0, %v1171
        %v1173 = vmul.f32 %v1172, %v656
        %v1174 = vpack.c.bf16 %v1173, %v1173
        %v1175 = vld [vmem:[#allocation8] sm:$0xf]
        %v1176 = vld [vmem:[#allocation8 + $0x4] sm:$0xf]
        %v1177 = vld [vmem:[#allocation8 + $0x8] sm:$0xf]
        %v1178 = vld [vmem:[#allocation8 + $0xc] sm:$0xf]
        %v1183 = vunpack.c.l.b16 %v1175
        %v1184 = vunpack.c.l.b16 %v1176
        %v1185 = vunpack.c.l.b16 %v1177
        %v1186 = vunpack.c.l.b16 %v1178
        %v1187 = vpack.c.b16 %v1184, %v1183
        %v1188 = vpack.c.b16 %v1186, %v1185
        %v1192 = vsel %vm659, %v1174, 0
        %1194 = vmatprep.subr.bf16.mxu0 0
        %1195 = vmatpush1.bf16.msra.mxu0 %v1187
        %1196 = vmatprep.subr.bf16.mxu0 0
        %1197 = vmatpush1.bf16.msra.mxu0 %v1188
        %1198 = vmatprep.subr.bf16.mxu0 0
        %1199 = vmatpush1.bf16.msra.mxu0 0
        %1200 = vmatprep.subr.bf16.mxu0 0
        %1201 = vmatpush1.bf16.msra.mxu0 0
        %1202 = vmatprep.subr.bf16.mxu0 0
        %1203 = vmatpush1.bf16.msra.mxu0 0
        %1204 = vmatprep.subr.bf16.mxu0 0
        %1205 = vmatpush1.bf16.msra.mxu0 0
        %1206 = vmatprep.subr.bf16.mxu0 0
        %1207 = vmatpush1.bf16.msra.mxu0 0
        %1208 = vmatprep.subr.bf16.mxu0 0
        %1209 = vmatpush1.bf16.msra.mxu0 0
        %1210 = vmatprep.subr.bf16.mxu0 0
        %1211 = vmatpush1.bf16.msra.mxu0 0
        %1212 = vmatprep.subr.bf16.mxu0 0
        %1213 = vmatpush1.bf16.msra.mxu0 0
        %1214 = vmatprep.subr.bf16.mxu0 0
        %1215 = vmatpush1.bf16.msra.mxu0 0
        %1216 = vmatprep.subr.bf16.mxu0 0
        %1217 = vmatpush1.bf16.msra.mxu0 0
        %1218 = vmatprep.subr.bf16.mxu0 0
        %1219 = vmatpush1.bf16.msra.mxu0 0
        %1220 = vmatprep.subr.bf16.mxu0 0
        %1221 = vmatpush1.bf16.msra.mxu0 0
        %1222 = vmatprep.subr.bf16.mxu0 0
        %1223 = vmatpush1.bf16.msra.mxu0 0
        %1224 = vmatprep.subr.bf16.mxu0 0
        %1225 = vmatpush1.bf16.msra.mxu0 0
        %1226 = vmatprep.mubr.bf16.mxu0 0
        %1227 = vmatmul.mubr.bf16.gmra.mrb[0].mxu0 %v1192
        %v1228 = vpop.f32.mrb[0].mxu0
        %v1229 = vadd.f32 0.0, %v1228
        %v1230 = vpop.f32.mrb[0].mxu0
        %v1231 = vpop.f32.mrb[0].mxu0
        %v1232 = vpop.f32.mrb[0].mxu0
        %1233 = vdwg.mxu0
        %1235 = vrot.lane.b32.xlu0 %v1229, 64
        %v1236 = vpop.permute.xlu0 %1235
        %v1238 = vadd.f32 %v1102, %v1236
        %v1239 = vtanh.pop %v1238
        %v1240 = vsub.f32 1.0, %v1172
        %1242 = vrot.lane.b32.xlu0 %v656, 32
        %v1243 = vpop.permute.xlu0 %1242
        %v1245 = vmul.f32 %v1240, %v1243
        %1247 = vrot.lane.b32.xlu0 %v1239, 96
        %v1248 = vpop.permute.xlu0 %1247
        %v1250 = vmul.f32 %v1172, %v1248
        %v1251 = vadd.f32 %v1245, %v1250
        %v1252 = vld [vmem:[#allocation2 + $0x2] sm:$0x1]
        %v1253 = vld [vmem:[#allocation2 + $0x3] sm:$0x1]
        %1255 = vrot.lane.b32.xlu0 %v1251, 96
        %v1256 = vpop.permute.xlu0 %1255
        %v1258 = vsel %vm659, %v1256, 0.0
        %1259 = vadd.xlane.f32.xlu0 %v1258
        %v1260 = vpop.xlane.xlu0 %1259
        %v1261 = vmul.f32 %v1260, %v663
        %v1262 = vsub.f32 %v1251, %v1261
        %v1263 = vmul.f32 %v1262, %v1262
        %1265 = vrot.lane.b32.xlu0 %v1263, 96
        %v1266 = vpop.permute.xlu0 %1265
        %v1268 = vsel %vm659, %v1266, 0.0
        %1269 = vadd.xlane.f32.xlu0 %v1268
        %v1270 = vpop.xlane.xlu0 %1269
        %v1271 = vmul.f32 %v1270, %v663
        %v1272 = vadd.f32 %v1271, 1e-06
        %v1273 = vrsqrt.pop %v1272
        %v1274 = vmul.f32 %v1262, %v1273
        %v1275 = vlaneseq
        %v1276 = vshrl.u32 %v1275, 7
        %v1277 = vsub.s32 0, %v1276
        %v1278 = vrot.slane %v1252, %v1277
        %1280 = vrot.lane.b32.xlu0 %v1278, 32
        %v1281 = vpop.permute.xlu0 %1280
        %v1283 = vmul.f32 %v1274, %v1281
        %v1284 = vlaneseq
        %v1285 = vshrl.u32 %v1284, 7
        %v1286 = vsub.s32 0, %v1285
        %v1287 = vrot.slane %v1253, %v1286
        %1289 = vrot.lane.b32.xlu0 %v1287, 32
        %v1290 = vpop.permute.xlu0 %1289
        %v1292 = vadd.f32 %v1283, %v1290
        %v1293 = vpack.c.bf16 %v1292, %v1292
        %v1294 = vld [vmem:[#allocation13] sm:$0xf]
        %v1295 = vld [vmem:[#allocation13 + $0x4] sm:$0xf]
        %v1296 = vld [vmem:[#allocation13 + $0x8] sm:$0xf]
        %v1297 = vld [vmem:[#allocation13 + $0xc] sm:$0xf]
        %v1298 = vld [vmem:[%s13] sm:$0x1]
        %v1300 = vlaneseq
        %v1301 = vshrl.u32 %v1300, 7
        %v1302 = vsub.s32 0, %v1301
        %v1303 = vrot.slane %v1298, %v1302
        %1306 = vrot.lane.b32.xlu0 %v1293, 96
        %v1307 = vpop.permute.xlu0 %1306
        %v1312 = vunpack.c.l.b16 %v1294
        %v1313 = vunpack.c.l.b16 %v1295
        %v1314 = vunpack.c.l.b16 %v1296
        %v1315 = vunpack.c.l.b16 %v1297
        %v1316 = vpack.c.b16 %v1313, %v1312
        %v1317 = vpack.c.b16 %v1315, %v1314
        %v1321 = vsel %vm659, %v1307, 0
        %1323 = vmatprep.subr.bf16.mxu0 0
        %1324 = vmatpush1.bf16.msra.mxu0 %v1316
        %1325 = vmatprep.subr.bf16.mxu0 0
        %1326 = vmatpush1.bf16.msra.mxu0 %v1317
        %1327 = vmatprep.subr.bf16.mxu0 0
        %1328 = vmatpush1.bf16.msra.mxu0 0
        %1329 = vmatprep.subr.bf16.mxu0 0
        %1330 = vmatpush1.bf16.msra.mxu0 0
        %1331 = vmatprep.subr.bf16.mxu0 0
        %1332 = vmatpush1.bf16.msra.mxu0 0
        %1333 = vmatprep.subr.bf16.mxu0 0
        %1334 = vmatpush1.bf16.msra.mxu0 0
        %1335 = vmatprep.subr.bf16.mxu0 0
        %1336 = vmatpush1.bf16.msra.mxu0 0
        %1337 = vmatprep.subr.bf16.mxu0 0
        %1338 = vmatpush1.bf16.msra.mxu0 0
        %1339 = vmatprep.subr.bf16.mxu0 0
        %1340 = vmatpush1.bf16.msra.mxu0 0
        %1341 = vmatprep.subr.bf16.mxu0 0
        %1342 = vmatpush1.bf16.msra.mxu0 0
        %1343 = vmatprep.subr.bf16.mxu0 0
        %1344 = vmatpush1.bf16.msra.mxu0 0
        %1345 = vmatprep.subr.bf16.mxu0 0
        %1346 = vmatpush1.bf16.msra.mxu0 0
        %1347 = vmatprep.subr.bf16.mxu0 0
        %1348 = vmatpush1.bf16.msra.mxu0 0
        %1349 = vmatprep.subr.bf16.mxu0 0
        %1350 = vmatpush1.bf16.msra.mxu0 0
        %1351 = vmatprep.subr.bf16.mxu0 0
        %1352 = vmatpush1.bf16.msra.mxu0 0
        %1353 = vmatprep.subr.bf16.mxu0 0
        %1354 = vmatpush1.bf16.msra.mxu0 0
        %1355 = vmatprep.mubr.bf16.mxu0 0
        %1356 = vmatmul.mubr.bf16.gmra.mrb[0].mxu0 %v1321
        %v1357 = vpop.f32.mrb[0].mxu0
        %v1358 = vadd.f32 %v1303, %v1357
        %v1359 = vpop.f32.mrb[0].mxu0
        %v1360 = vpop.f32.mrb[0].mxu0
        %v1361 = vpop.f32.mrb[0].mxu0
        %1362 = vdwg.mxu0
        %v1363 = vmax.f32 %v1358, 0.0
        %v1364 = vpack.c.bf16 %v1363, %v1363
        %v1365 = vld [vmem:[%s14] sm:$0xf]
        %v1366 = vld [vmem:[%s14 + $0x4] sm:$0xf]
        %v1367 = vld [vmem:[%s14 + $0x8] sm:$0xf]
        %v1368 = vld [vmem:[%s14 + $0xc] sm:$0xf]
        %v1369 = vld [vmem:[%s14 + $0x10] sm:$0xf]
        %v1370 = vld [vmem:[%s14 + $0x14] sm:$0xf]
        %v1371 = vld [vmem:[%s14 + $0x18] sm:$0xf]
        %v1372 = vld [vmem:[%s14 + $0x1c] sm:$0xf]
        %v1373 = vld [vmem:[%s15] sm:$0x1]
        %v1375 = vlaneseq
        %v1376 = vshrl.u32 %v1375, 7
        %v1377 = vsub.s32 0, %v1376
        %v1378 = vrot.slane %v1373, %v1377
        %v1388 = vunpack.c.l.b16 %v1365
        %v1389 = vunpack.c.l.b16 %v1366
        %v1390 = vunpack.c.l.b16 %v1367
        %v1391 = vunpack.c.l.b16 %v1368
        %v1392 = vunpack.c.l.b16 %v1369
        %v1393 = vunpack.c.l.b16 %v1370
        %v1394 = vunpack.c.l.b16 %v1371
        %v1395 = vunpack.c.l.b16 %v1372
        %v1396 = vpack.c.b16 %v1389, %v1388
        %v1397 = vpack.c.b16 %v1391, %v1390
        %v1398 = vpack.c.b16 %v1393, %v1392
        %v1399 = vpack.c.b16 %v1395, %v1394
        %vm1404 = vcmask 523264
        %v1406 = vsel %vm1404, %v1364, 0
        %1408 = vmatprep.subr.bf16.mxu0 0
        %1409 = vmatpush1.bf16.msra.mxu0 %v1396
        %1410 = vmatprep.subr.bf16.mxu0 0
        %1411 = vmatpush1.bf16.msra.mxu0 %v1397
        %1412 = vmatprep.subr.bf16.mxu0 0
        %1413 = vmatpush1.bf16.msra.mxu0 %v1398
        %1414 = vmatprep.subr.bf16.mxu0 0
        %1415 = vmatpush1.bf16.msra.mxu0 %v1399
        %1416 = vmatprep.subr.bf16.mxu0 0
        %1417 = vmatpush1.bf16.msra.mxu0 0
        %1418 = vmatprep.subr.bf16.mxu0 0
        %1419 = vmatpush1.bf16.msra.mxu0 0
        %1420 = vmatprep.subr.bf16.mxu0 0
        %1421 = vmatpush1.bf16.msra.mxu0 0
        %1422 = vmatprep.subr.bf16.mxu0 0
        %1423 = vmatpush1.bf16.msra.mxu0 0
        %1424 = vmatprep.subr.bf16.mxu0 0
        %1425 = vmatpush1.bf16.msra.mxu0 0
        %1426 = vmatprep.subr.bf16.mxu0 0
        %1427 = vmatpush1.bf16.msra.mxu0 0
        %1428 = vmatprep.subr.bf16.mxu0 0
        %1429 = vmatpush1.bf16.msra.mxu0 0
        %1430 = vmatprep.subr.bf16.mxu0 0
        %1431 = vmatpush1.bf16.msra.mxu0 0
        %1432 = vmatprep.subr.bf16.mxu0 0
        %1433 = vmatpush1.bf16.msra.mxu0 0
        %1434 = vmatprep.subr.bf16.mxu0 0
        %1435 = vmatpush1.bf16.msra.mxu0 0
        %1436 = vmatprep.subr.bf16.mxu0 0
        %1437 = vmatpush1.bf16.msra.mxu0 0
        %1438 = vmatprep.subr.bf16.mxu0 0
        %1439 = vmatpush1.bf16.msra.mxu0 0
        %1440 = vmatprep.mubr.bf16.mxu0 0
        %1441 = vmatmul.mubr.bf16.gmra.mrb[0].mxu0 %v1406
        %v1442 = vpop.f32.mrb[0].mxu0
        %v1443 = vadd.f32 %v1378, %v1442
        %v1444 = vpop.f32.mrb[0].mxu0
        %v1445 = vpop.f32.mrb[0].mxu0
        %v1446 = vpop.f32.mrb[0].mxu0
        %1447 = vdwg.mxu0
        %v1448 = vpack.c.bf16 %v1251, %v1251
        %v1449 = vpack.c.bf16 %v1443, %v1443
        %v1450 = vld [vmem:[#allocation10] sm:$0xf]
        %v1451 = vld [vmem:[#allocation10 + $0x4] sm:$0xf]
        %v1452 = vld [vmem:[#allocation10 + $0x8] sm:$0xf]
        %v1453 = vld [vmem:[#allocation10 + $0xc] sm:$0xf]
        %v1454 = vld [vmem:[%s11] sm:$0x1]
        %v1456 = vlaneseq
        %v1457 = vshrl.u32 %v1456, 7
        %v1458 = vsub.s32 0, %v1457
        %v1459 = vrot.slane %v1454, %v1458
        %v1465 = vunpack.c.l.b16 %v1450
        %v1466 = vunpack.c.l.b16 %v1451
        %v1467 = vunpack.c.l.b16 %v1452
        %v1468 = vunpack.c.l.b16 %v1453
        %v1469 = vpack.c.b16 %v1466, %v1465
        %v1470 = vpack.c.b16 %v1468, %v1467
        %v1474 = vsel %vm659, %v1449, 0
        %1476 = vmatprep.subr.bf16.mxu0 0
        %1477 = vmatpush1.bf16.msra.mxu0 %v1469
        %1478 = vmatprep.subr.bf16.mxu0 0
        %1479 = vmatpush1.bf16.msra.mxu0 %v1470
        %1480 = vmatprep.subr.bf16.mxu0 0
        %1481 = vmatpush1.bf16.msra.mxu0 0
        %1482 = vmatprep.subr.bf16.mxu0 0
        %1483 = vmatpush1.bf16.msra.mxu0 0
        %1484 = vmatprep.subr.bf16.mxu0 0
        %1485 = vmatpush1.bf16.msra.mxu0 0
        %1486 = vmatprep.subr.bf16.mxu0 0
        %1487 = vmatpush1.bf16.msra.mxu0 0
        %1488 = vmatprep.subr.bf16.mxu0 0
        %1489 = vmatpush1.bf16.msra.mxu0 0
        %1490 = vmatprep.subr.bf16.mxu0 0
        %1491 = vmatpush1.bf16.msra.mxu0 0
        %1492 = vmatprep.subr.bf16.mxu0 0
        %1493 = vmatpush1.bf16.msra.mxu0 0
        %1494 = vmatprep.subr.bf16.mxu0 0
        %1495 = vmatpush1.bf16.msra.mxu0 0
        %1496 = vmatprep.subr.bf16.mxu0 0
        %1497 = vmatpush1.bf16.msra.mxu0 0
        %1498 = vmatprep.subr.bf16.mxu0 0
        %1499 = vmatpush1.bf16.msra.mxu0 0
        %1500 = vmatprep.subr.bf16.mxu0 0
        %1501 = vmatpush1.bf16.msra.mxu0 0
        %1502 = vmatprep.subr.bf16.mxu0 0
        %1503 = vmatpush1.bf16.msra.mxu0 0
        %1504 = vmatprep.subr.bf16.mxu0 0
        %1505 = vmatpush1.bf16.msra.mxu0 0
        %1506 = vmatprep.subr.bf16.mxu0 0
        %1507 = vmatpush1.bf16.msra.mxu0 0
        %1508 = vmatprep.mubr.bf16.mxu0 0
        %1509 = vmatmul.mubr.bf16.gmra.mrb[0].mxu0 %v1474
        %v1510 = vpop.f32.mrb[0].mxu0
        %v1511 = vadd.f32 %v1459, %v1510
        %v1512 = vpop.f32.mrb[0].mxu0
        %v1513 = vpop.f32.mrb[0].mxu0
        %v1514 = vpop.f32.mrb[0].mxu0
        %1515 = vdwg.mxu0
        %v1516 = vld [vmem:[%s9] sm:$0xf]
        %v1517 = vld [vmem:[%s9 + $0x4] sm:$0xf]
        %v1518 = vld [vmem:[%s9 + $0x8] sm:$0xf]
        %v1519 = vld [vmem:[%s9 + $0xc] sm:$0xf]
        %1521 = vrot.lane.b32.xlu0 %v1448, 96
        %v1522 = vpop.permute.xlu0 %1521
        %v1527 = vunpack.c.l.b16 %v1516
        %v1528 = vunpack.c.l.b16 %v1517
        %v1529 = vunpack.c.l.b16 %v1518
        %v1530 = vunpack.c.l.b16 %v1519
        %v1531 = vpack.c.b16 %v1528, %v1527
        %v1532 = vpack.c.b16 %v1530, %v1529
        %v1536 = vsel %vm659, %v1522, 0
        %1538 = vmatprep.subr.bf16.mxu0 0
        %1539 = vmatpush1.bf16.msra.mxu0 %v1531
        %1540 = vmatprep.subr.bf16.mxu0 0
        %1541 = vmatpush1.bf16.msra.mxu0 %v1532
        %1542 = vmatprep.subr.bf16.mxu0 0
        %1543 = vmatpush1.bf16.msra.mxu0 0
        %1544 = vmatprep.subr.bf16.mxu0 0
        %1545 = vmatpush1.bf16.msra.mxu0 0
        %1546 = vmatprep.subr.bf16.mxu0 0
        %1547 = vmatpush1.bf16.msra.mxu0 0
        %1548 = vmatprep.subr.bf16.mxu0 0
        %1549 = vmatpush1.bf16.msra.mxu0 0
        %1550 = vmatprep.subr.bf16.mxu0 0
        %1551 = vmatpush1.bf16.msra.mxu0 0
        %1552 = vmatprep.subr.bf16.mxu0 0
        %1553 = vmatpush1.bf16.msra.mxu0 0
        %1554 = vmatprep.subr.bf16.mxu0 0
        %1555 = vmatpush1.bf16.msra.mxu0 0
        %1556 = vmatprep.subr.bf16.mxu0 0
        %1557 = vmatpush1.bf16.msra.mxu0 0
        %1558 = vmatprep.subr.bf16.mxu0 0
        %1559 = vmatpush1.bf16.msra.mxu0 0
        %1560 = vmatprep.subr.bf16.mxu0 0
        %1561 = vmatpush1.bf16.msra.mxu0 0
        %1562 = vmatprep.subr.bf16.mxu0 0
        %1563 = vmatpush1.bf16.msra.mxu0 0
        %1564 = vmatprep.subr.bf16.mxu0 0
        %1565 = vmatpush1.bf16.msra.mxu0 0
        %1566 = vmatprep.subr.bf16.mxu0 0
        %1567 = vmatpush1.bf16.msra.mxu0 0
        %1568 = vmatprep.subr.bf16.mxu0 0
        %1569 = vmatpush1.bf16.msra.mxu0 0
        %1570 = vmatprep.mubr.bf16.mxu0 0
        %1571 = vmatmul.mubr.bf16.gmra.mrb[0].mxu0 %v1536
        %v1572 = vpop.f32.mrb[0].mxu0
        %v1573 = vadd.f32 0.0, %v1572
        %v1574 = vpop.f32.mrb[0].mxu0
        %v1575 = vpop.f32.mrb[0].mxu0
        %v1576 = vpop.f32.mrb[0].mxu0
        %1577 = vdwg.mxu0
        %v1578 = vadd.f32 %v1511, %v1573
        %v1579 = vxor.u32 %v1578, 2147483648
        %v1580 = vmul.f32 %v1579, 1.442695
        %v1581 = vpow.pop %v1580
        %v1582 = vadd.f32 %v1581, 1.0
        %v1583 = vrcp.pop %v1582
        %v1584 = vmul.f32 1.0, %v1583
        %v1585 = vmul.f32 %v1584, %v1256
        %v1586 = vpack.c.bf16 %v1585, %v1585
        %v1587 = vld [vmem:[#allocation11] sm:$0xf]
        %v1588 = vld [vmem:[#allocation11 + $0x4] sm:$0xf]
        %v1589 = vld [vmem:[#allocation11 + $0x8] sm:$0xf]
        %v1590 = vld [vmem:[#allocation11 + $0xc] sm:$0xf]
        %v1595 = vunpack.c.l.b16 %v1587
        %v1596 = vunpack.c.l.b16 %v1588
        %v1597 = vunpack.c.l.b16 %v1589
        %v1598 = vunpack.c.l.b16 %v1590
        %v1599 = vpack.c.b16 %v1596, %v1595
        %v1600 = vpack.c.b16 %v1598, %v1597
        %v1604 = vsel %vm659, %v1586, 0
        %1606 = vmatprep.subr.bf16.mxu0 0
        %1607 = vmatpush1.bf16.msra.mxu0 %v1599
        %1608 = vmatprep.subr.bf16.mxu0 0
        %1609 = vmatpush1.bf16.msra.mxu0 %v1600
        %1610 = vmatprep.subr.bf16.mxu0 0
        %1611 = vmatpush1.bf16.msra.mxu0 0
        %1612 = vmatprep.subr.bf16.mxu0 0
        %1613 = vmatpush1.bf16.msra.mxu0 0
        %1614 = vmatprep.subr.bf16.mxu0 0
        %1615 = vmatpush1.bf16.msra.mxu0 0
        %1616 = vmatprep.subr.bf16.mxu0 0
        %1617 = vmatpush1.bf16.msra.mxu0 0
        %1618 = vmatprep.subr.bf16.mxu0 0
        %1619 = vmatpush1.bf16.msra.mxu0 0
        %1620 = vmatprep.subr.bf16.mxu0 0
        %1621 = vmatpush1.bf16.msra.mxu0 0
        %1622 = vmatprep.subr.bf16.mxu0 0
        %1623 = vmatpush1.bf16.msra.mxu0 0
        %1624 = vmatprep.subr.bf16.mxu0 0
        %1625 = vmatpush1.bf16.msra.mxu0 0
        %1626 = vmatprep.subr.bf16.mxu0 0
        %1627 = vmatpush1.bf16.msra.mxu0 0
        %1628 = vmatprep.subr.bf16.mxu0 0
        %1629 = vmatpush1.bf16.msra.mxu0 0
        %1630 = vmatprep.subr.bf16.mxu0 0
        %1631 = vmatpush1.bf16.msra.mxu0 0
        %1632 = vmatprep.subr.bf16.mxu0 0
        %1633 = vmatpush1.bf16.msra.mxu0 0
        %1634 = vmatprep.subr.bf16.mxu0 0
        %1635 = vmatpush1.bf16.msra.mxu0 0
        %1636 = vmatprep.subr.bf16.mxu0 0
        %1637 = vmatpush1.bf16.msra.mxu0 0
        %1638 = vmatprep.mubr.bf16.mxu0 0
        %1639 = vmatmul.mubr.bf16.gmra.mrb[0].mxu0 %v1604
        %v1640 = vpop.f32.mrb[0].mxu0
        %v1641 = vadd.f32 0.0, %v1640
        %v1642 = vpop.f32.mrb[0].mxu0
        %v1643 = vpop.f32.mrb[0].mxu0
        %v1644 = vpop.f32.mrb[0].mxu0
        %1645 = vdwg.mxu0
        %1647 = vrot.lane.b32.xlu0 %v1641, 64
        %v1648 = vpop.permute.xlu0 %1647
        %v1650 = vadd.f32 %v1511, %v1648
        %v1651 = vtanh.pop %v1650
        %v1652 = vsub.f32 1.0, %v1584
        %v1653 = vmul.f32 %v1652, %v1251
        %1655 = vrot.lane.b32.xlu0 %v1651, 96
        %v1656 = vpop.permute.xlu0 %1655
        %v1658 = vmul.f32 %v1584, %v1656
        %v1659 = vadd.f32 %v1653, %v1658
        %1661 = vrot.lane.b32.xlu0 %v1659, 96
        %v1662 = vpop.permute.xlu0 %1661
        %1664 = vst.msk [vmem:[%s643] sm:$0xff] %vm659, %v1662
        %s1665 = sand.u32 %s388, 1
        %s1666 = scalar_lea.sflag [#allocation4], %s1665
        %s1667 = sand.u32 %s388, 1
        %s1668 = smul.addr %s1667, 8
        %s1669 = scalar_lea.vmem [#allocation14], %s1668
        %s1670 = sand.u32 %s414, 1
        %s1671 = scalar_lea.sflag [#allocation16], %s1670
        %s1672 = sand.u32 %s414, 1
        %s1673 = smul.addr %s1672, 16
        %s1674 = scalar_lea.vmem [#allocation15], %s1673
        // Predicated region
        $region113: #{tpu_custom_call.1} parent=83 // pred_check
          %p1675 = pneg %p398
        $region114: #{tpu_custom_call.1} parent=83 // pred_check_branch
          %1677 = sbr.rel (%p1675) target = $region116
        $region115: #{tpu_custom_call.1} parent=83 // pred_region
          %s1679 = ssub.s32 128, 128
          %1680 = vsyncadd %s1666, %s1679
          %s1681 = smul.addr %s39, 128
          %s1682 = scalar_lea.hbm %s16, %s1681
          %s1684 = sshll.u32 %s1669, 4
          %s1685 = int_to_ptr.vmem [resolvable:$true] %s1684
          %1687 = dma.vmem_to_hbm [thread:$0]  %s1685, 128, %s1682, %s1666
        $region116: #{tpu_custom_call.1} parent=83 // pred_fallthru
          _
        // Predicated region
        $region117: #{tpu_custom_call.1} parent=83 // pred_check
          %p1688 = pneg %p424
        $region118: #{tpu_custom_call.1} parent=83 // pred_check_branch
          %1690 = sbr.rel (%p1688) target = $region120
        $region119: #{tpu_custom_call.1} parent=83 // pred_region
          %s1692 = ssub.s32 256, 256
          %1693 = vsyncadd %s1671, %s1692
          %s1694 = smul.addr %s39, 2
          %s1695 = smul.addr %s1694, 128
          %s1696 = scalar_lea.hbm %s17, %s1695
          %s1697 = sshll.u32 %s1674, 4
          %s1698 = int_to_ptr.vmem [resolvable:$true] %s1697
          %1703 = dma.vmem_to_hbm [thread:$0]  %s1698, 256, %s1696, %s1671, 128, 128, 8
        $region120: #{tpu_custom_call.1} parent=83 // pred_fallthru
          _
      $region84: #{tpu_custom_call.1} parent=5 // pred_fallthru
        _
      %p1704 = scmp.le.s32.totalorder 2, %s34
      // Predicated region
      $region121: #{tpu_custom_call.1} parent=5 // pred_check
        %p1705 = pneg %p1704
      $region122: #{tpu_custom_call.1} parent=5 // pred_check_branch
        %1707 = sbr.rel (%p1705) target = $region124
      $region123: #{tpu_custom_call.1} parent=5 // pred_region
        %s1708 = ssub.s32 %s34, 2
        // Predicated region
        $region125: #{tpu_custom_call.1} parent=123 // pred_check
          %p1709 = pneg %p404
        $region126: #{tpu_custom_call.1} parent=123 // pred_check_branch
          %1711 = sbr.rel (%p1709) target = $region128
        $region127: #{tpu_custom_call.1} parent=123 // pred_region
          %s1712 = sand.u32 %s389, 1
          %s1713 = scalar_lea.sflag [#allocation4], %s1712
          %s1714 = sand.u32 %s389, 1
          %s1715 = smul.addr %s1714, 8
          %s1716 = scalar_lea.vmem [#allocation14], %s1715
          %1717 = dma.done %s1713, 128
        $region128: #{tpu_custom_call.1} parent=123 // pred_fallthru
          _
        // Predicated region
        $region129: #{tpu_custom_call.1} parent=123 // pred_check
          %p1718 = pneg %p430
        $region130: #{tpu_custom_call.1} parent=123 // pred_check_branch
          %1720 = sbr.rel (%p1718) target = $region132
        $region131: #{tpu_custom_call.1} parent=123 // pred_region
          %s1721 = sand.u32 %s415, 1
          %s1722 = scalar_lea.sflag [#allocation16], %s1721
          %s1723 = sand.u32 %s415, 1
          %s1724 = smul.addr %s1723, 16
          %s1725 = scalar_lea.vmem [#allocation15], %s1724
          %1726 = dma.done %s1722, 256
        $region132: #{tpu_custom_call.1} parent=123 // pred_fallthru
          _
      $region124: #{tpu_custom_call.1} parent=5 // pred_fallthru
        _
    $region6: #{tpu_custom_call.1} parent=1 // loop_footer
      %s38 = sadd.s32 1, %s34
    $region7: #{tpu_custom_call.1} parent=1 // loop_footer_branch
      %33 = sbr.rel target = $region3
    $region8: #{tpu_custom_call.1} parent=1 // loop_exit
      _
    %1727 = vsyncpa [#allocation3], 1
    %s1728 = scalar_lea.sflag [#allocation3], 1
    %1729 = vsyncpa %s1728, 1
    %1730 = vsyncpa [#allocation6], 1
    %1731 = vsyncpa [#allocation9], 1
    %1732 = vsyncpa [#allocation12], 1
    %1733 = vsyncpa [#allocation4], 1
    %s1734 = scalar_lea.sflag [#allocation4], 1
    %1735 = vsyncpa %s1734, 1
    %1736 = vsyncpa [#allocation16], 1
    %s1737 = scalar_lea.sflag [#allocation16], 1
    %1738 = vsyncpa %s1737, 1

// kernel: tpu_custom_call.1
$region0: #{tpu_custom_call.1}
  #allocation0 [shape = 'u32[]', space=smem, size = 0x4, offset = 0x4, fixed_abs, tag = 'smem constant byte address 0x4 - core index']
  #allocation1 [shape = 'u32[144,128]{1,0:T(1,128)}', space=vmem, size = 0x12000, scoped, tag = 'internal scratch']
  %s0 = inlined_call_operand.vmem [shape: f32[2,8,32], index: 0, kind: input, shape index: {}]
  %s1 = inlined_call_operand.hbm [shape: f32[4,32], index: 1, kind: input, shape index: {}]
  %s2 = inlined_call_operand.vmem [shape: bf16[32,96], index: 2, kind: input, shape index: {}]
  %s3 = inlined_call_operand.vmem [shape: bf16[32,32], index: 3, kind: input, shape index: {}]
  %s4 = inlined_call_operand.hbm [shape: bf16[32,96], index: 4, kind: input, shape index: {}]
  %s5 = inlined_call_operand.hbm [shape: bf16[32,64], index: 5, kind: input, shape index: {}]
  %s6 = inlined_call_operand.hbm [shape: bf16[32,32], index: 6, kind: input, shape index: {}]
  %s7 = inlined_call_operand.vmem [shape: f32[1,96], index: 7, kind: input, shape index: {}]
  %s8 = inlined_call_operand.hbm [shape: bf16[32,96], index: 8, kind: input, shape index: {}]
  %s9 = inlined_call_operand.vmem [shape: bf16[32,64], index: 9, kind: input, shape index: {}]
  %s10 = inlined_call_operand.hbm [shape: bf16[32,32], index: 10, kind: input, shape index: {}]
  %s11 = inlined_call_operand.vmem [shape: f32[1,96], index: 11, kind: input, shape index: {}]
  %s12 = inlined_call_operand.hbm [shape: bf16[32,64], index: 12, kind: input, shape index: {}]
  %s13 = inlined_call_operand.vmem [shape: f32[1,64], index: 13, kind: input, shape index: {}]
  %s14 = inlined_call_operand.vmem [shape: bf16[64,32], index: 14, kind: input, shape index: {}]
  %s15 = inlined_call_operand.vmem [shape: f32[1,32], index: 15, kind: input, shape index: {}]
  %s16 = inlined_call_operand.hbm [shape: f32[2,8,32], index: 16, kind: output, shape index: {0}]
  %s17 = inlined_call_operand.hbm [shape: f32[2,2,8,8], index: 17, kind: output, shape index: {1}]
  %18 = xla_tuple %s16, %s17
  %s19 = sld [smem:[#allocation0]]
  $region133: #{tpu_custom_call.1} parent=0
    _
  %s21 = ssub.s32 1, %s19
  %s22 = scalar_select 0, %s21, %s19
  $region1: #{tpu_custom_call.1} parent=0
    #allocation2 [shape = 'u8[2048]{0}', space=vmem, size = 0x800, scoped, tag = 'input window, operand 1, single buffered']
    #allocation3 [shape = 's32[2]{0}', space=sflag, size = 0x8, scoped, tag = 'scoped memory for tpu_custom_call.1']
    #allocation4 [shape = 's32[2]{0}', space=sflag, size = 0x8, scoped, tag = 'scoped memory for tpu_custom_call.1']
    #allocation5 [shape = 'u8[8192]{0}', space=vmem, size = 0x2000, scoped, tag = 'input window, operand 4, single buffered']
    #allocation6 [shape = 's32[1]{0}', space=sflag, size = 0x4, scoped, tag = 'scoped memory for tpu_custom_call.1']
    #allocation7 [shape = 'u8[8192]{0}', space=vmem, size = 0x2000, scoped, tag = 'input window, operand 5, single buffered']
    #allocation8 [shape = 'u8[8192]{0}', space=vmem, size = 0x2000, scoped, tag = 'input window, operand 6, single buffered']
    #allocation9 [shape = 's32[1]{0}', space=sflag, size = 0x4, scoped, tag = 'scoped memory for tpu_custom_call.1']
    #allocation10 [shape = 'u8[8192]{0}', space=vmem, size = 0x2000, scoped, tag = 'input window, operand 8, single buffered']
    #allocation11 [shape = 'u8[8192]{0}', space=vmem, size = 0x2000, scoped, tag = 'input window, operand 10, single buffered']
    #allocation12 [shape = 's32[1]{0}', space=sflag, size = 0x4, scoped, tag = 'scoped memory for tpu_custom_call.1']
    #allocation13 [shape = 'u8[8192]{0}', space=vmem, size = 0x2000, scoped, tag = 'input window, operand 12, single buffered']
    #allocation14 [shape = 'u8[8192]{0}', space=vmem, size = 0x2000, scoped, tag = 'output window, operand 0']
    #allocation15 [shape = 'u8[16384]{0}', space=vmem, size = 0x4000, scoped, tag = 'output window, operand 1']
    #allocation16 [shape = 's32[2]{0}', space=sflag, size = 0x8, scoped, tag = 'scoped memory for tpu_custom_call.1']
    %23 = vsyncpa [#allocation3], 0
    %24 = vsyncpa [#allocation6], 0
    %25 = vsyncpa [#allocation9], 0
    %26 = vsyncpa [#allocation12], 0
    %27 = vsyncpa [#allocation4], 0
    %s28 = scalar_lea.sflag [#allocation4], 1
    %29 = vsyncpa %s28, 0
    %30 = vsyncpa [#allocation16], 0
    %s31 = scalar_lea.sflag [#allocation16], 1
    %32 = vsyncpa %s31, 0
    loop: start=0, step=1, limit=4
    $region2: #{tpu_custom_call.1} parent=1 // loop_pre_header
      _
    $region3: #{tpu_custom_call.1} parent=1 // loop_header
      %s34 = sphi 0, %s38
      %p35 = scmp.ge.s32.totalorder %s34, 4
      %s44 = sphi 0, %s46
      %s47 = sphi 0, %s44
      %s48 = sphi 0, %s47
      %s64 = sphi 0, %s48
      %s68 = sphi 0, %s68
      %s70 = sphi 0, %s68
      %s71 = sphi 0, %s70
      %s85 = sphi 0, %s71
      %s89 = sphi 0, %s89
      %s91 = sphi 0, %s89
      %s92 = sphi 0, %s91
      %s106 = sphi 0, %s92
      %s110 = sphi 0, %s110
      %s112 = sphi 0, %s110
      %s113 = sphi 0, %s112
      %s127 = sphi 0, %s113
      %s131 = sphi 0, %s131
      %s133 = sphi 0, %s131
      %s134 = sphi 0, %s133
      %s148 = sphi 0, %s134
      %s152 = sphi 0, %s152
      %s154 = sphi 0, %s152
      %s155 = sphi 0, %s154
      %s169 = sphi 0, %s155
      %s173 = sphi 0, %s173
      %s175 = sphi 0, %s173
      %s176 = sphi 0, %s175
      %s190 = sphi 0, %s176
      %s194 = sphi 0, %s194
      %s196 = sphi 0, %s194
      %s197 = sphi 0, %s196
      %s211 = sphi 0, %s197
      %s215 = sphi 0, %s215
      %s217 = sphi 0, %s215
      %s218 = sphi 0, %s217
      %s232 = sphi 0, %s218
      %s236 = sphi 0, %s236
      %s238 = sphi 0, %s236
      %s239 = sphi 0, %s238
      %s253 = sphi 0, %s239
      %s257 = sphi 0, %s257
      %s259 = sphi 0, %s257
      %s260 = sphi 0, %s259
      %s274 = sphi 0, %s260
      %s278 = sphi 0, %s278
      %s280 = sphi 0, %s278
      %s281 = sphi 0, %s280
      %s295 = sphi 0, %s281
      %s299 = sphi 0, %s299
      %s301 = sphi 0, %s299
      %s302 = sphi 0, %s301
      %s316 = sphi 0, %s302
      %s320 = sphi 0, %s320
      %s322 = sphi 0, %s320
      %s323 = sphi 0, %s322
      %s337 = sphi 0, %s323
      %s341 = sphi 0, %s341
      %s343 = sphi 0, %s341
      %s344 = sphi 0, %s343
      %s358 = sphi 0, %s344
      %s362 = sphi 0, %s362
      %s364 = sphi 0, %s362
      %s365 = sphi 0, %s364
      %s379 = sphi 0, %s365
      %s385 = sphi 0, %s387
      %s388 = sphi 0, %s385
      %s389 = sphi 0, %s388
      %s405 = sphi 0, %s389
      %s411 = sphi 0, %s413
      %s414 = sphi 0, %s411
      %s415 = sphi 0, %s414
      %s431 = sphi 0, %s415
    $region4: #{tpu_custom_call.1} parent=1 // loop_header_branch
      %37 = sbr.rel (%p35) target = $region8
    $region5: #{tpu_custom_call.1} parent=1 // loop_body
      %s39 = ssub.s32 %s34, 1
      %s40 = ssub.s32 %s34, 2
      %s41 = sadd.s32 %s34, 1
      %s42 = ssub.s32 %s34, %s41
      %p43 = scmp.eq.s32.totalorder %s42, 0
      %s45 = sadd.s32 %s44, 1
      %s46 = scalar_select %p43, %s44, %s45
      %p49 = pneg %p43
      %p50 = scmp.eq.s32.totalorder %s34, 1
      %p51 = por %p49, %p50
      %p52 = scmp.ne.s32.totalorder %s44, %s47
      %p53 = scmp.eq.s32.totalorder %s34, 0
      %p54 = por %p52, %p53
      %p55 = scmp.ne.s32.totalorder %s44, %s47
      %p56 = scmp.eq.s32.totalorder %s39, 1
      %p57 = por %p55, %p56
      %p58 = scmp.ne.s32.totalorder %s47, %s48
      %p59 = scmp.eq.s32.totalorder %s39, 0
      %p60 = por %p58, %p59
      %p61 = scmp.ne.s32.totalorder %s47, %s48
      %p62 = scmp.eq.s32.totalorder %s40, 1
      %p63 = por %p61, %p62
      %p65 = scmp.ne.s32.totalorder %s48, %s64
      %p66 = scmp.eq.s32.totalorder %s40, 0
      %p67 = por %p65, %p66
      %s69 = sadd.s32 %s68, 1
      %p72 = scmp.eq.s32.totalorder %s34, 1
      %p73 = scmp.ne.s32.totalorder %s68, %s70
      %p74 = scmp.eq.s32.totalorder %s34, 0
      %p75 = por %p73, %p74
      %p76 = scmp.ne.s32.totalorder %s68, %s70
      %p77 = scmp.eq.s32.totalorder %s39, 1
      %p78 = por %p76, %p77
      %p79 = scmp.ne.s32.totalorder %s70, %s71
      %p80 = scmp.eq.s32.totalorder %s39, 0
      %p81 = por %p79, %p80
      %p82 = scmp.ne.s32.totalorder %s70, %s71
      %p83 = scmp.eq.s32.totalorder %s40, 1
      %p84 = por %p82, %p83
      %p86 = scmp.ne.s32.totalorder %s71, %s85
      %p87 = scmp.eq.s32.totalorder %s40, 0
      %p88 = por %p86, %p87
      %s90 = sadd.s32 %s89, 1
      %p93 = scmp.eq.s32.totalorder %s34, 1
      %p94 = scmp.ne.s32.totalorder %s89, %s91
      %p95 = scmp.eq.s32.totalorder %s34, 0
      %p96 = por %p94, %p95
      %p97 = scmp.ne.s32.totalorder %s89, %s91
      %p98 = scmp.eq.s32.totalorder %s39, 1
      %p99 = por %p97, %p98
      %p100 = scmp.ne.s32.totalorder %s91, %s92
      %p101 = scmp.eq.s32.totalorder %s39, 0
      %p102 = por %p100, %p101
      %p103 = scmp.ne.s32.totalorder %s91, %s92
      %p104 = scmp.eq.s32.totalorder %s40, 1
      %p105 = por %p103, %p104
      %p107 = scmp.ne.s32.totalorder %s92, %s106
      %p108 = scmp.eq.s32.totalorder %s40, 0
      %p109 = por %p107, %p108
      %s111 = sadd.s32 %s110, 1
      %p114 = scmp.eq.s32.totalorder %s34, 1
      %p115 = scmp.ne.s32.totalorder %s110, %s112
      %p116 = scmp.eq.s32.totalorder %s34, 0
      %p117 = por %p115, %p116
      %p118 = scmp.ne.s32.totalorder %s110, %s112
      %p119 = scmp.eq.s32.totalorder %s39, 1
      %p120 = por %p118, %p119
      %p121 = scmp.ne.s32.totalorder %s112, %s113
      %p122 = scmp.eq.s32.totalorder %s39, 0
      %p123 = por %p121, %p122
      %p124 = scmp.ne.s32.totalorder %s112, %s113
      %p125 = scmp.eq.s32.totalorder %s40, 1
      %p126 = por %p124, %p125
      %p128 = scmp.ne.s32.totalorder %s113, %s127
      %p129 = scmp.eq.s32.totalorder %s40, 0
      %p130 = por %p128, %p129
      %s132 = sadd.s32 %s131, 1
      %p135 = scmp.eq.s32.totalorder %s34, 1
      %p136 = scmp.ne.s32.totalorder %s131, %s133
      %p137 = scmp.eq.s32.totalorder %s34, 0
      %p138 = por %p136, %p137
      %p139 = scmp.ne.s32.totalorder %s131, %s133
      %p140 = scmp.eq.s32.totalorder %s39, 1
      %p141 = por %p139, %p140
      %p142 = scmp.ne.s32.totalorder %s133, %s134
      %p143 = scmp.eq.s32.totalorder %s39, 0
      %p144 = por %p142, %p143
      %p145 = scmp.ne.s32.totalorder %s133, %s134
      %p146 = scmp.eq.s32.totalorder %s40, 1
      %p147 = por %p145, %p146
      %p149 = scmp.ne.s32.totalorder %s134, %s148
      %p150 = scmp.eq.s32.totalorder %s40, 0
      %p151 = por %p149, %p150
      %s153 = sadd.s32 %s152, 1
      %p156 = scmp.eq.s32.totalorder %s34, 1
      %p157 = scmp.ne.s32.totalorder %s152, %s154
      %p158 = scmp.eq.s32.totalorder %s34, 0
      %p159 = por %p157, %p158
      %p160 = scmp.ne.s32.totalorder %s152, %s154
      %p161 = scmp.eq.s32.totalorder %s39, 1
      %p162 = por %p160, %p161
      %p163 = scmp.ne.s32.totalorder %s154, %s155
      %p164 = scmp.eq.s32.totalorder %s39, 0
      %p165 = por %p163, %p164
      %p166 = scmp.ne.s32.totalorder %s154, %s155
      %p167 = scmp.eq.s32.totalorder %s40, 1
      %p168 = por %p166, %p167
      %p170 = scmp.ne.s32.totalorder %s155, %s169
      %p171 = scmp.eq.s32.totalorder %s40, 0
      %p172 = por %p170, %p171
      %s174 = sadd.s32 %s173, 1
      %p177 = scmp.eq.s32.totalorder %s34, 1
      %p178 = scmp.ne.s32.totalorder %s173, %s175
      %p179 = scmp.eq.s32.totalorder %s34, 0
      %p180 = por %p178, %p179
      %p181 = scmp.ne.s32.totalorder %s173, %s175
      %p182 = scmp.eq.s32.totalorder %s39, 1
      %p183 = por %p181, %p182
      %p184 = scmp.ne.s32.totalorder %s175, %s176
      %p185 = scmp.eq.s32.totalorder %s39, 0
      %p186 = por %p184, %p185
      %p187 = scmp.ne.s32.totalorder %s175, %s176
      %p188 = scmp.eq.s32.totalorder %s40, 1
      %p189 = por %p187, %p188
      %p191 = scmp.ne.s32.totalorder %s176, %s190
      %p192 = scmp.eq.s32.totalorder %s40, 0
      %p193 = por %p191, %p192
      %s195 = sadd.s32 %s194, 1
      %p198 = scmp.eq.s32.totalorder %s34, 1
      %p199 = scmp.ne.s32.totalorder %s194, %s196
      %p200 = scmp.eq.s32.totalorder %s34, 0
      %p201 = por %p199, %p200
      %p202 = scmp.ne.s32.totalorder %s194, %s196
      %p203 = scmp.eq.s32.totalorder %s39, 1
      %p204 = por %p202, %p203
      %p205 = scmp.ne.s32.totalorder %s196, %s197
      %p206 = scmp.eq.s32.totalorder %s39, 0
      %p207 = por %p205, %p206
      %p208 = scmp.ne.s32.totalorder %s196, %s197
      %p209 = scmp.eq.s32.totalorder %s40, 1
      %p210 = por %p208, %p209
      %p212 = scmp.ne.s32.totalorder %s197, %s211
      %p213 = scmp.eq.s32.totalorder %s40, 0
      %p214 = por %p212, %p213
      %s216 = sadd.s32 %s215, 1
      %p219 = scmp.eq.s32.totalorder %s34, 1
      %p220 = scmp.ne.s32.totalorder %s215, %s217
      %p221 = scmp.eq.s32.totalorder %s34, 0
      %p222 = por %p220, %p221
      %p223 = scmp.ne.s32.totalorder %s215, %s217
      %p224 = scmp.eq.s32.totalorder %s39, 1
      %p225 = por %p223, %p224
      %p226 = scmp.ne.s32.totalorder %s217, %s218
      %p227 = scmp.eq.s32.totalorder %s39, 0
      %p228 = por %p226, %p227
      %p229 = scmp.ne.s32.totalorder %s217, %s218
      %p230 = scmp.eq.s32.totalorder %s40, 1
      %p231 = por %p229, %p230
      %p233 = scmp.ne.s32.totalorder %s218, %s232
      %p234 = scmp.eq.s32.totalorder %s40, 0
      %p235 = por %p233, %p234
      %s237 = sadd.s32 %s236, 1
      %p240 = scmp.eq.s32.totalorder %s34, 1
      %p241 = scmp.ne.s32.totalorder %s236, %s238
      %p242 = scmp.eq.s32.totalorder %s34, 0
      %p243 = por %p241, %p242
      %p244 = scmp.ne.s32.totalorder %s236, %s238
      %p245 = scmp.eq.s32.totalorder %s39, 1
      %p246 = por %p244, %p245
      %p247 = scmp.ne.s32.totalorder %s238, %s239
      %p248 = scmp.eq.s32.totalorder %s39, 0
      %p249 = por %p247, %p248
      %p250 = scmp.ne.s32.totalorder %s238, %s239
      %p251 = scmp.eq.s32.totalorder %s40, 1
      %p252 = por %p250, %p251
      %p254 = scmp.ne.s32.totalorder %s239, %s253
      %p255 = scmp.eq.s32.totalorder %s40, 0
      %p256 = por %p254, %p255
      %s258 = sadd.s32 %s257, 1
      %p261 = scmp.eq.s32.totalorder %s34, 1
      %p262 = scmp.ne.s32.totalorder %s257, %s259
      %p263 = scmp.eq.s32.totalorder %s34, 0
      %p264 = por %p262, %p263
      %p265 = scmp.ne.s32.totalorder %s257, %s259
      %p266 = scmp.eq.s32.totalorder %s39, 1
      %p267 = por %p265, %p266
      %p268 = scmp.ne.s32.totalorder %s259, %s260
      %p269 = scmp.eq.s32.totalorder %s39, 0
      %p270 = por %p268, %p269
      %p271 = scmp.ne.s32.totalorder %s259, %s260
      %p272 = scmp.eq.s32.totalorder %s40, 1
      %p273 = por %p271, %p272
      %p275 = scmp.ne.s32.totalorder %s260, %s274
      %p276 = scmp.eq.s32.totalorder %s40, 0
      %p277 = por %p275, %p276
      %s279 = sadd.s32 %s278, 1
      %p282 = scmp.eq.s32.totalorder %s34, 1
      %p283 = scmp.ne.s32.totalorder %s278, %s280
      %p284 = scmp.eq.s32.totalorder %s34, 0
      %p285 = por %p283, %p284
      %p286 = scmp.ne.s32.totalorder %s278, %s280
      %p287 = scmp.eq.s32.totalorder %s39, 1
      %p288 = por %p286, %p287
      %p289 = scmp.ne.s32.totalorder %s280, %s281
      %p290 = scmp.eq.s32.totalorder %s39, 0
      %p291 = por %p289, %p290
      %p292 = scmp.ne.s32.totalorder %s280, %s281
      %p293 = scmp.eq.s32.totalorder %s40, 1
      %p294 = por %p292, %p293
      %p296 = scmp.ne.s32.totalorder %s281, %s295
      %p297 = scmp.eq.s32.totalorder %s40, 0
      %p298 = por %p296, %p297
      %s300 = sadd.s32 %s299, 1
      %p303 = scmp.eq.s32.totalorder %s34, 1
      %p304 = scmp.ne.s32.totalorder %s299, %s301
      %p305 = scmp.eq.s32.totalorder %s34, 0
      %p306 = por %p304, %p305
      %p307 = scmp.ne.s32.totalorder %s299, %s301
      %p308 = scmp.eq.s32.totalorder %s39, 1
      %p309 = por %p307, %p308
      %p310 = scmp.ne.s32.totalorder %s301, %s302
      %p311 = scmp.eq.s32.totalorder %s39, 0
      %p312 = por %p310, %p311
      %p313 = scmp.ne.s32.totalorder %s301, %s302
      %p314 = scmp.eq.s32.totalorder %s40, 1
      %p315 = por %p313, %p314
      %p317 = scmp.ne.s32.totalorder %s302, %s316
      %p318 = scmp.eq.s32.totalorder %s40, 0
      %p319 = por %p317, %p318
      %s321 = sadd.s32 %s320, 1
      %p324 = scmp.eq.s32.totalorder %s34, 1
      %p325 = scmp.ne.s32.totalorder %s320, %s322
      %p326 = scmp.eq.s32.totalorder %s34, 0
      %p327 = por %p325, %p326
      %p328 = scmp.ne.s32.totalorder %s320, %s322
      %p329 = scmp.eq.s32.totalorder %s39, 1
      %p330 = por %p328, %p329
      %p331 = scmp.ne.s32.totalorder %s322, %s323
      %p332 = scmp.eq.s32.totalorder %s39, 0
      %p333 = por %p331, %p332
      %p334 = scmp.ne.s32.totalorder %s322, %s323
      %p335 = scmp.eq.s32.totalorder %s40, 1
      %p336 = por %p334, %p335
      %p338 = scmp.ne.s32.totalorder %s323, %s337
      %p339 = scmp.eq.s32.totalorder %s40, 0
      %p340 = por %p338, %p339
      %s342 = sadd.s32 %s341, 1
      %p345 = scmp.eq.s32.totalorder %s34, 1
      %p346 = scmp.ne.s32.totalorder %s341, %s343
      %p347 = scmp.eq.s32.totalorder %s34, 0
      %p348 = por %p346, %p347
      %p349 = scmp.ne.s32.totalorder %s341, %s343
      %p350 = scmp.eq.s32.totalorder %s39, 1
      %p351 = por %p349, %p350
      %p352 = scmp.ne.s32.totalorder %s343, %s344
      %p353 = scmp.eq.s32.totalorder %s39, 0
      %p354 = por %p352, %p353
      %p355 = scmp.ne.s32.totalorder %s343, %s344
      %p356 = scmp.eq.s32.totalorder %s40, 1
      %p357 = por %p355, %p356
      %p359 = scmp.ne.s32.totalorder %s344, %s358
      %p360 = scmp.eq.s32.totalorder %s40, 0
      %p361 = por %p359, %p360
      %s363 = sadd.s32 %s362, 1
      %p366 = scmp.eq.s32.totalorder %s34, 1
      %p367 = scmp.ne.s32.totalorder %s362, %s364
      %p368 = scmp.eq.s32.totalorder %s34, 0
      %p369 = por %p367, %p368
      %p370 = scmp.ne.s32.totalorder %s362, %s364
      %p371 = scmp.eq.s32.totalorder %s39, 1
      %p372 = por %p370, %p371
      %p373 = scmp.ne.s32.totalorder %s364, %s365
      %p374 = scmp.eq.s32.totalorder %s39, 0
      %p375 = por %p373, %p374
      %p376 = scmp.ne.s32.totalorder %s364, %s365
      %p377 = scmp.eq.s32.totalorder %s40, 1
      %p378 = por %p376, %p377
      %p380 = scmp.ne.s32.totalorder %s365, %s379
      %p381 = scmp.eq.s32.totalorder %s40, 0
      %p382 = por %p380, %p381
      %s383 = ssub.s32 %s34, %s41
      %p384 = scmp.eq.s32.totalorder %s383, 0
      %s386 = sadd.s32 %s385, 1
      %s387 = scalar_select %p384, %s385, %s386
      %p390 = pneg %p384
      %p391 = scmp.eq.s32.totalorder %s34, 1
      %p392 = por %p390, %p391
      %p393 = scmp.ne.s32.totalorder %s385, %s388
      %p394 = scmp.eq.s32.totalorder %s34, 0
      %p395 = por %p393, %p394
      %p396 = scmp.ne.s32.totalorder %s385, %s388
      %p397 = scmp.eq.s32.totalorder %s39, 1
      %p398 = por %p396, %p397
      %p399 = scmp.ne.s32.totalorder %s388, %s389
      %p400 = scmp.eq.s32.totalorder %s39, 0
      %p401 = por %p399, %p400
      %p402 = scmp.ne.s32.totalorder %s388, %s389
      %p403 = scmp.eq.s32.totalorder %s40, 1
      %p404 = por %p402, %p403
      %p406 = scmp.ne.s32.totalorder %s389, %s405
      %p407 = scmp.eq.s32.totalorder %s40, 0
      %p408 = por %p406, %p407
      %s409 = ssub.s32 %s34, %s41
      %p410 = scmp.eq.s32.totalorder %s409, 0
      %s412 = sadd.s32 %s411, 1
      %s413 = scalar_select %p410, %s411, %s412
      %p416 = pneg %p410
      %p417 = scmp.eq.s32.totalorder %s34, 1
      %p418 = por %p416, %p417
      %p419 = scmp.ne.s32.totalorder %s411, %s414
      %p420 = scmp.eq.s32.totalorder %s34, 0
      %p421 = por %p419, %p420
      %p422 = scmp.ne.s32.totalorder %s411, %s414
      %p423 = scmp.eq.s32.totalorder %s39, 1
      %p424 = por %p422, %p423
      %p425 = scmp.ne.s32.totalorder %s414, %s415
      %p426 = scmp.eq.s32.totalorder %s39, 0
      %p427 = por %p425, %p426
      %p428 = scmp.ne.s32.totalorder %s414, %s415
      %p429 = scmp.eq.s32.totalorder %s40, 1
      %p430 = por %p428, %p429
      %p432 = scmp.ne.s32.totalorder %s415, %s431
      %p433 = scmp.eq.s32.totalorder %s40, 0
      %p434 = por %p432, %p433
      %p435 = scmp.le.s32.totalorder 1, %s34
      %p436 = scmp.lt.s32.totalorder %s34, 3
      %p437 = pnand %p435, %p436
      %p438 = pneg %p437
      // Predicated region
      $region9: #{tpu_custom_call.1} parent=5 // pred_check
        _
      $region10: #{tpu_custom_call.1} parent=5 // pred_check_branch
        %440 = sbr.rel (%p437) target = $region12
      $region11: #{tpu_custom_call.1} parent=5 // pred_region
        %s441 = ssub.s32 %s34, 1
        // Predicated region
        $region13: #{tpu_custom_call.1} parent=11 // pred_check
          %p442 = pneg %p81
        $region14: #{tpu_custom_call.1} parent=11 // pred_check_branch
          %444 = sbr.rel (%p442) target = $region16
        $region15: #{tpu_custom_call.1} parent=11 // pred_region
          %s446 = ssub.s32 64, 64
          %447 = vsyncadd [#allocation3], %s446
          %s449 = sshll.u32 [#allocation2], 4
          %s450 = int_to_ptr.vmem [resolvable:$true] %s449
          %452 = dma.hbm_to_vmem [thread:$0]  %s1, 64, %s450, [#allocation3]
        $region16: #{tpu_custom_call.1} parent=11 // pred_fallthru
          _
        // Predicated region
        $region17: #{tpu_custom_call.1} parent=11 // pred_check
          %p453 = pneg %p102
        $region18: #{tpu_custom_call.1} parent=11 // pred_check_branch
          %455 = sbr.rel (%p453) target = $region20
        $region19: #{tpu_custom_call.1} parent=11 // pred_region
          _
        $region20: #{tpu_custom_call.1} parent=11 // pred_fallthru
          _
        // Predicated region
        $region21: #{tpu_custom_call.1} parent=11 // pred_check
          %p456 = pneg %p123
        $region22: #{tpu_custom_call.1} parent=11 // pred_check_branch
          %458 = sbr.rel (%p456) target = $region24
        $region23: #{tpu_custom_call.1} parent=11 // pred_region
          _
        $region24: #{tpu_custom_call.1} parent=11 // pred_fallthru
          _
        // Predicated region
        $region25: #{tpu_custom_call.1} parent=11 // pred_check
          %p459 = pneg %p144
        $region26: #{tpu_custom_call.1} parent=11 // pred_check_branch
          %461 = sbr.rel (%p459) target = $region28
        $region27: #{tpu_custom_call.1} parent=11 // pred_region
          %s463 = ssub.s32 256, 256
          %464 = vsyncadd [#allocation6], %s463
          %s465 = sshll.u32 [#allocation5], 4
          %s466 = int_to_ptr.vmem [resolvable:$true] %s465
          %471 = dma.hbm_to_vmem [thread:$0]  %s4, 256, %s466, [#allocation6], 64, 64, 4
        $region28: #{tpu_custom_call.1} parent=11 // pred_fallthru
          _
        // Predicated region
        $region29: #{tpu_custom_call.1} parent=11 // pred_check
          %p472 = pneg %p165
        $region30: #{tpu_custom_call.1} parent=11 // pred_check_branch
          %474 = sbr.rel (%p472) target = $region32
        $region31: #{tpu_custom_call.1} parent=11 // pred_region
          %s476 = ssub.s32 256, 256
          %477 = vsyncadd [#allocation6], %s476
          %s478 = sshll.u32 [#allocation7], 4
          %s479 = int_to_ptr.vmem [resolvable:$true] %s478
          %484 = dma.hbm_to_vmem [thread:$0]  %s5, 256, %s479, [#allocation6], 64, 64, 4
        $region32: #{tpu_custom_call.1} parent=11 // pred_fallthru
          _
        // Predicated region
        $region33: #{tpu_custom_call.1} parent=11 // pred_check
          %p485 = pneg %p186
        $region34: #{tpu_custom_call.1} parent=11 // pred_check_branch
          %487 = sbr.rel (%p485) target = $region36
        $region35: #{tpu_custom_call.1} parent=11 // pred_region
          %s489 = ssub.s32 256, 256
          %490 = vsyncadd [#allocation9], %s489
          %s491 = sshll.u32 [#allocation8], 4
          %s492 = int_to_ptr.vmem [resolvable:$true] %s491
          %497 = dma.hbm_to_vmem [thread:$0]  %s6, 256, %s492, [#allocation9], 64, 64, 4
        $region36: #{tpu_custom_call.1} parent=11 // pred_fallthru
          _
        // Predicated region
        $region37: #{tpu_custom_call.1} parent=11 // pred_check
          %p498 = pneg %p207
        $region38: #{tpu_custom_call.1} parent=11 // pred_check_branch
          %500 = sbr.rel (%p498) target = $region40
        $region39: #{tpu_custom_call.1} parent=11 // pred_region
          _
        $region40: #{tpu_custom_call.1} parent=11 // pred_fallthru
          _
        // Predicated region
        $region41: #{tpu_custom_call.1} parent=11 // pred_check
          %p501 = pneg %p228
        $region42: #{tpu_custom_call.1} parent=11 // pred_check_branch
          %503 = sbr.rel (%p501) target = $region44
        $region43: #{tpu_custom_call.1} parent=11 // pred_region
          %s505 = ssub.s32 256, 256
          %506 = vsyncadd [#allocation9], %s505
          %s507 = sshll.u32 [#allocation10], 4
          %s508 = int_to_ptr.vmem [resolvable:$true] %s507
          %513 = dma.hbm_to_vmem [thread:$0]  %s8, 256, %s508, [#allocation9], 64, 64, 4
        $region44: #{tpu_custom_call.1} parent=11 // pred_fallthru
          _
        // Predicated region
        $region45: #{tpu_custom_call.1} parent=11 // pred_check
          %p514 = pneg %p249
        $region46: #{tpu_custom_call.1} parent=11 // pred_check_branch
          %516 = sbr.rel (%p514) target = $region48
        $region47: #{tpu_custom_call.1} parent=11 // pred_region
          _
        $region48: #{tpu_custom_call.1} parent=11 // pred_fallthru
          _
        // Predicated region
        $region49: #{tpu_custom_call.1} parent=11 // pred_check
          %p517 = pneg %p270
        $region50: #{tpu_custom_call.1} parent=11 // pred_check_branch
          %519 = sbr.rel (%p517) target = $region52
        $region51: #{tpu_custom_call.1} parent=11 // pred_region
          %s521 = ssub.s32 256, 256
          %522 = vsyncadd [#allocation12], %s521
          %s523 = sshll.u32 [#allocation11], 4
          %s524 = int_to_ptr.vmem [resolvable:$true] %s523
          %529 = dma.hbm_to_vmem [thread:$0]  %s10, 256, %s524, [#allocation12], 64, 64, 4
        $region52: #{tpu_custom_call.1} parent=11 // pred_fallthru
          _
        // Predicated region
        $region53: #{tpu_custom_call.1} parent=11 // pred_check
          %p530 = pneg %p291
        $region54: #{tpu_custom_call.1} parent=11 // pred_check_branch
          %532 = sbr.rel (%p530) target = $region56
        $region55: #{tpu_custom_call.1} parent=11 // pred_region
          _
        $region56: #{tpu_custom_call.1} parent=11 // pred_fallthru
          _
        // Predicated region
        $region57: #{tpu_custom_call.1} parent=11 // pred_check
          %p533 = pneg %p312
        $region58: #{tpu_custom_call.1} parent=11 // pred_check_branch
          %535 = sbr.rel (%p533) target = $region60
        $region59: #{tpu_custom_call.1} parent=11 // pred_region
          %s537 = ssub.s32 256, 256
          %538 = vsyncadd [#allocation12], %s537
          %s539 = sshll.u32 [#allocation13], 4
          %s540 = int_to_ptr.vmem [resolvable:$true] %s539
          %545 = dma.hbm_to_vmem [thread:$0]  %s12, 256, %s540, [#allocation12], 64, 64, 4
        $region60: #{tpu_custom_call.1} parent=11 // pred_fallthru
          _
        // Predicated region
        $region61: #{tpu_custom_call.1} parent=11 // pred_check
          %p546 = pneg %p333
        $region62: #{tpu_custom_call.1} parent=11 // pred_check_branch
          %548 = sbr.rel (%p546) target = $region64
        $region63: #{tpu_custom_call.1} parent=11 // pred_region
          _
        $region64: #{tpu_custom_call.1} parent=11 // pred_fallthru
          _
        // Predicated region
        $region65: #{tpu_custom_call.1} parent=11 // pred_check
          %p549 = pneg %p354
        $region66: #{tpu_custom_call.1} parent=11 // pred_check_branch
          %551 = sbr.rel (%p549) target = $region68
        $region67: #{tpu_custom_call.1} parent=11 // pred_region
          _
        $region68: #{tpu_custom_call.1} parent=11 // pred_fallthru
          _
        // Predicated region
        $region69: #{tpu_custom_call.1} parent=11 // pred_check
          %p552 = pneg %p375
        $region70: #{tpu_custom_call.1} parent=11 // pred_check_branch
          %554 = sbr.rel (%p552) target = $region72
        $region71: #{tpu_custom_call.1} parent=11 // pred_region
          _
        $region72: #{tpu_custom_call.1} parent=11 // pred_fallthru
          _
      $region12: #{tpu_custom_call.1} parent=5 // pred_fallthru
        _
      %p555 = scmp.lt.s32.totalorder %s34, 2
      // Predicated region
      $region73: #{tpu_custom_call.1} parent=5 // pred_check
        %p556 = pneg %p555
      $region74: #{tpu_custom_call.1} parent=5 // pred_check_branch
        %558 = sbr.rel (%p556) target = $region76
      $region75: #{tpu_custom_call.1} parent=5 // pred_region
        // Predicated region
        $region77: #{tpu_custom_call.1} parent=75 // pred_check
          %p559 = pneg %p54
        $region78: #{tpu_custom_call.1} parent=75 // pred_check_branch
          %561 = sbr.rel (%p559) target = $region80
        $region79: #{tpu_custom_call.1} parent=75 // pred_region
          %p562 = scmp.lt.s32.totalorder %s34, 1
          %s563 = scalar_select %p562, %s34, 1
          %s564 = smul.addr %s563, 8
          %s565 = scalar_lea.vmem %s0, %s564
        $region80: #{tpu_custom_call.1} parent=75 // pred_fallthru
          _
      $region76: #{tpu_custom_call.1} parent=5 // pred_fallthru
        _
      %p566 = scmp.le.s32.totalorder 1, %s34
      %p567 = scmp.lt.s32.totalorder %s34, 3
      %p568 = pnand %p566, %p567
      %p569 = pneg %p568
      // Predicated region
      $region81: #{tpu_custom_call.1} parent=5 // pred_check
        _
      $region82: #{tpu_custom_call.1} parent=5 // pred_check_branch
        %571 = sbr.rel (%p568) target = $region84
      $region83: #{tpu_custom_call.1} parent=5 // pred_region
        %s572 = ssub.s32 %s34, 1
        // Predicated region
        $region85: #{tpu_custom_call.1} parent=83 // pred_check
          %p573 = pneg %p81
        $region86: #{tpu_custom_call.1} parent=83 // pred_check_branch
          %575 = sbr.rel (%p573) target = $region88
        $region87: #{tpu_custom_call.1} parent=83 // pred_region
          %576 = dma.done [#allocation3], 64
        $region88: #{tpu_custom_call.1} parent=83 // pred_fallthru
          _
        // Predicated region
        $region89: #{tpu_custom_call.1} parent=83 // pred_check
          %p577 = pneg %p144
        $region90: #{tpu_custom_call.1} parent=83 // pred_check_branch
          %579 = sbr.rel (%p577) target = $region92
        $region91: #{tpu_custom_call.1} parent=83 // pred_region
          %580 = dma.done [#allocation6], 256
        $region92: #{tpu_custom_call.1} parent=83 // pred_fallthru
          _
        // Predicated region
        $region93: #{tpu_custom_call.1} parent=83 // pred_check
          %p581 = pneg %p165
        $region94: #{tpu_custom_call.1} parent=83 // pred_check_branch
          %583 = sbr.rel (%p581) target = $region96
        $region95: #{tpu_custom_call.1} parent=83 // pred_region
          %584 = dma.done [#allocation6], 256
        $region96: #{tpu_custom_call.1} parent=83 // pred_fallthru
          _
        // Predicated region
        $region97: #{tpu_custom_call.1} parent=83 // pred_check
          %p585 = pneg %p186
        $region98: #{tpu_custom_call.1} parent=83 // pred_check_branch
          %587 = sbr.rel (%p585) target = $region100
        $region99: #{tpu_custom_call.1} parent=83 // pred_region
          %588 = dma.done [#allocation9], 256
        $region100: #{tpu_custom_call.1} parent=83 // pred_fallthru
          _
        // Predicated region
        $region101: #{tpu_custom_call.1} parent=83 // pred_check
          %p589 = pneg %p228
        $region102: #{tpu_custom_call.1} parent=83 // pred_check_branch
          %591 = sbr.rel (%p589) target = $region104
        $region103: #{tpu_custom_call.1} parent=83 // pred_region
          %592 = dma.done [#allocation9], 256
        $region104: #{tpu_custom_call.1} parent=83 // pred_fallthru
          _
        // Predicated region
        $region105: #{tpu_custom_call.1} parent=83 // pred_check
          %p593 = pneg %p270
        $region106: #{tpu_custom_call.1} parent=83 // pred_check_branch
          %595 = sbr.rel (%p593) target = $region108
        $region107: #{tpu_custom_call.1} parent=83 // pred_region
          %596 = dma.done [#allocation12], 256
        $region108: #{tpu_custom_call.1} parent=83 // pred_fallthru
          _
        // Predicated region
        $region109: #{tpu_custom_call.1} parent=83 // pred_check
          %p597 = pneg %p312
        $region110: #{tpu_custom_call.1} parent=83 // pred_check_branch
          %599 = sbr.rel (%p597) target = $region112
        $region111: #{tpu_custom_call.1} parent=83 // pred_region
          %600 = dma.done [#allocation12], 256
        $region112: #{tpu_custom_call.1} parent=83 // pred_fallthru
          _
        %p601 = scmp.lt.s32.totalorder %s39, 1
        %s602 = scalar_select %p601, %s39, 1
        %s603 = smul.addr %s602, 8
        %s604 = scalar_lea.vmem %s0, %s603
        %p605 = pneg %p60
        %p606 = pneg %p57
        %p607 = pneg %p81
        %p608 = pneg %p78
        %p609 = pneg %p102
        %p610 = pneg %p99
        %p611 = pneg %p123
        %p612 = pneg %p120
        %p613 = pneg %p144
        %p614 = pneg %p141
        %p615 = pneg %p165
        %p616 = pneg %p162
        %p617 = pneg %p186
        %p618 = pneg %p183
        %p619 = pneg %p207
        %p620 = pneg %p204
        %p621 = pneg %p228
        %p622 = pneg %p225
        %p623 = pneg %p249
        %p624 = pneg %p246
        %p625 = pneg %p270
        %p626 = pneg %p267
        %p627 = pneg %p291
        %p628 = pneg %p288
        %p629 = pneg %p312
        %p630 = pneg %p309
        %p631 = pneg %p333
        %p632 = pneg %p330
        %p633 = pneg %p354
        %p634 = pneg %p351
        %p635 = pneg %p375
        %p636 = pneg %p372
        %p637 = pneg %p401
        %p638 = pneg %p398
        %s639 = sand.u32 %s388, 1
        %s640 = scalar_lea.sflag [#allocation4], %s639
        %s641 = sand.u32 %s388, 1
        %s642 = smul.addr %s641, 8
        %s643 = scalar_lea.vmem [#allocation14], %s642
        %p644 = pneg %p427
        %p645 = pneg %p424
        %s646 = sand.u32 %s414, 1
        %s647 = scalar_lea.sflag [#allocation16], %s646
        %s648 = sand.u32 %s414, 1
        %s649 = smul.addr %s648, 16
        %s650 = scalar_lea.vmem [#allocation15], %s649
        %p651 = scmp.lt.s32.totalorder %s39, 1
        %s652 = scalar_select %p651, %s39, 1
        %s653 = smul.addr %s652, 8
        %s654 = scalar_lea.vmem %s0, %s653
        %v656 = vld [vmem:[%s654] sm:$0xff]
        %v657 = vld [vmem:[#allocation2] sm:$0x1]
        %v658 = vld [vmem:[#allocation2 + $0x1] sm:$0x1]
        %vm659 = vcmask 261120
        %v660 = vsel %vm659, %v656, 0.0
        %661 = vadd.xlane.f32.xlu0 %v660
        %v662 = vpop.xlane.xlu0 %661
        %v663 = vrcp.pop 32.0
        %v664 = vmul.f32 %v662, %v663
        %v665 = vsub.f32 %v656, %v664
        %v666 = vmul.f32 %v665, %v665
        %v667 = vsel %vm659, %v666, 0.0
        %668 = vadd.xlane.f32.xlu0 %v667
        %v669 = vpop.xlane.xlu0 %668
        %v670 = vmul.f32 %v669, %v663
        %v671 = vadd.f32 %v670, 1e-06
        %v672 = vrsqrt.pop %v671
        %v673 = vmul.f32 %v665, %v672
        %v674 = vlaneseq
        %v675 = vshrl.u32 %v674, 7
        %v676 = vsub.s32 0, %v675
        %v677 = vrot.slane %v657, %v676
        %v678 = vmul.f32 %v673, %v677
        %v679 = vlaneseq
        %v680 = vshrl.u32 %v679, 7
        %v681 = vsub.s32 0, %v680
        %v682 = vrot.slane %v658, %v681
        %v683 = vadd.f32 %v678, %v682
        %v684 = vpack.c.bf16 %v683, %v683
        %v685 = vld [vmem:[%s2] sm:$0xf]
        %v686 = vld [vmem:[%s2 + $0x4] sm:$0xf]
        %v687 = vld [vmem:[%s2 + $0x8] sm:$0xf]
        %v688 = vld [vmem:[%s2 + $0xc] sm:$0xf]
        %v693 = vunpack.c.l.b16 %v685
        %v694 = vunpack.c.l.b16 %v686
        %v695 = vunpack.c.l.b16 %v687
        %v696 = vunpack.c.l.b16 %v688
        %v697 = vpack.c.b16 %v694, %v693
        %v698 = vpack.c.b16 %v696, %v695
        %v702 = vsel %vm659, %v684, 0
        %704 = vmatprep.subr.bf16.mxu0 0
        %705 = vmatpush1.bf16.msra.mxu0 %v697
        %706 = vmatprep.subr.bf16.mxu0 0
        %707 = vmatpush1.bf16.msra.mxu0 %v698
        %708 = vmatprep.subr.bf16.mxu0 0
        %709 = vmatpush1.bf16.msra.mxu0 0
        %710 = vmatprep.subr.bf16.mxu0 0
        %711 = vmatpush1.bf16.msra.mxu0 0
        %712 = vmatprep.subr.bf16.mxu0 0
        %713 = vmatpush1.bf16.msra.mxu0 0
        %714 = vmatprep.subr.bf16.mxu0 0
        %715 = vmatpush1.bf16.msra.mxu0 0
        %716 = vmatprep.subr.bf16.mxu0 0
        %717 = vmatpush1.bf16.msra.mxu0 0
        %718 = vmatprep.subr.bf16.mxu0 0
        %719 = vmatpush1.bf16.msra.mxu0 0
        %720 = vmatprep.subr.bf16.mxu0 0
        %721 = vmatpush1.bf16.msra.mxu0 0
        %722 = vmatprep.subr.bf16.mxu0 0
        %723 = vmatpush1.bf16.msra.mxu0 0
        %724 = vmatprep.subr.bf16.mxu0 0
        %725 = vmatpush1.bf16.msra.mxu0 0
        %726 = vmatprep.subr.bf16.mxu0 0
        %727 = vmatpush1.bf16.msra.mxu0 0
        %728 = vmatprep.subr.bf16.mxu0 0
        %729 = vmatpush1.bf16.msra.mxu0 0
        %730 = vmatprep.subr.bf16.mxu0 0
        %731 = vmatpush1.bf16.msra.mxu0 0
        %732 = vmatprep.subr.bf16.mxu0 0
        %733 = vmatpush1.bf16.msra.mxu0 0
        %734 = vmatprep.subr.bf16.mxu0 0
        %735 = vmatpush1.bf16.msra.mxu0 0
        %736 = vmatprep.mubr.bf16.mxu0 0
        %737 = vmatmul.mubr.bf16.gmra.mrb[0].mxu0 %v702
        %v738 = vpop.f32.mrb[0].mxu0
        %v739 = vadd.f32 0.0, %v738
        %v740 = vpop.f32.mrb[0].mxu0
        %v741 = vpop.f32.mrb[0].mxu0
        %v742 = vpop.f32.mrb[0].mxu0
        %743 = vdwg.mxu0
        %v744 = vpack.c.bf16 %v739, %v739
        %746 = vrot.lane.b32.xlu0 %v744, 96
        %v747 = vpop.permute.xlu0 %746
        %vm748 = vcmask 130048
        %v750 = vsel %vm748, %v744, 0
        %v753 = vsel %vm748, %v747, 0
        %755 = vmatprep.subr.bf16.mxu0 0
        %756 = vmatpush1.bf16.xpose.msra.mxu0 %v753
        %757 = vmatprep.subr.bf16.mxu0 0
        %758 = vmatpush1.bf16.xpose.msra.mxu0 0
        %759 = vmatprep.subr.bf16.mxu0 0
        %760 = vmatpush1.bf16.xpose.msra.mxu0 0
        %761 = vmatprep.subr.bf16.mxu0 0
        %762 = vmatpush1.bf16.xpose.msra.mxu0 0
        %763 = vmatprep.subr.bf16.mxu0 0
        %764 = vmatpush1.bf16.xpose.msra.mxu0 0
        %765 = vmatprep.subr.bf16.mxu0 0
        %766 = vmatpush1.bf16.xpose.msra.mxu0 0
        %767 = vmatprep.subr.bf16.mxu0 0
        %768 = vmatpush1.bf16.xpose.msra.mxu0 0
        %769 = vmatprep.subr.bf16.mxu0 0
        %770 = vmatpush1.bf16.xpose.msra.mxu0 0
        %771 = vmatprep.subr.bf16.mxu0 0
        %772 = vmatpush1.bf16.xpose.msra.mxu0 0
        %773 = vmatprep.subr.bf16.mxu0 0
        %774 = vmatpush1.bf16.xpose.msra.mxu0 0
        %775 = vmatprep.subr.bf16.mxu0 0
        %776 = vmatpush1.bf16.xpose.msra.mxu0 0
        %777 = vmatprep.subr.bf16.mxu0 0
        %778 = vmatpush1.bf16.xpose.msra.mxu0 0
        %779 = vmatprep.subr.bf16.mxu0 0
        %780 = vmatpush1.bf16.xpose.msra.mxu0 0
        %781 = vmatprep.subr.bf16.mxu0 0
        %782 = vmatpush1.bf16.xpose.msra.mxu0 0
        %783 = vmatprep.subr.bf16.mxu0 0
        %784 = vmatpush1.bf16.xpose.msra.mxu0 0
        %785 = vmatprep.subr.bf16.mxu0 0
        %786 = vmatpush1.bf16.xpose.msra.mxu0 0
        %787 = vmatprep.mubr.bf16.mxu0 0
        %788 = vmatmul.mubr.bf16.gmra.mrb[0].mxu0 %v750
        %v789 = vpop.f32.mrb[0].mxu0
        %v790 = vadd.f32 0.0, %v789
        %v791 = vpop.f32.mrb[0].mxu0
        %v792 = vpop.f32.mrb[0].mxu0
        %v793 = vpop.f32.mrb[0].mxu0
        %794 = vdwg.mxu0
        %vm795 = vcmask 64512
        %v796 = vsel %vm795, %v790, -inf
        %797 = vmax.xlane.f32.xlu0 %v796
        %v798 = vpop.xlane.xlu0 %797
        %v799 = vsub.f32 %v790, %v798
        %v800 = vmul.f32 %v799, 1.442695
        %v801 = vpow.pop %v800
        %v802 = vsel %vm795, %v801, 0.0
        %803 = vadd.xlane.f32.xlu0 %v802
        %v804 = vpop.xlane.xlu0 %803
        %v805 = vrcp.pop %v804
        %v806 = vmul.f32 %v801, %v805
        %v807 = vrcp.pop %v804
        %v808 = vmul.f32 %v801, %v807
        %809 = vst.msk [vmem:[%s650] sm:$0xff] %vm795, %v808
        %v810 = vpack.c.bf16 %v806, %v806
        %811 = vrot.lane.b32.xlu0 %v744, 64
        %v812 = vpop.permute.xlu0 %811
        %v814 = vsel %vm795, %v810, 0
        %vm816 = vcmask 1043456
        %v818 = vsel %vm816, %v812, 0
        %820 = vmatprep.subr.bf16.mxu0 0
        %821 = vmatpush1.bf16.msra.mxu0 %v818
        %822 = vmatprep.subr.bf16.mxu0 0
        %823 = vmatpush1.bf16.msra.mxu0 0
        %824 = vmatprep.subr.bf16.mxu0 0
        %825 = vmatpush1.bf16.msra.mxu0 0
        %826 = vmatprep.subr.bf16.mxu0 0
        %827 = vmatpush1.bf16.msra.mxu0 0
        %828 = vmatprep.subr.bf16.mxu0 0
        %829 = vmatpush1.bf16.msra.mxu0 0
        %830 = vmatprep.subr.bf16.mxu0 0
        %831 = vmatpush1.bf16.msra.mxu0 0
        %832 = vmatprep.subr.bf16.mxu0 0
        %833 = vmatpush1.bf16.msra.mxu0 0
        %834 = vmatprep.subr.bf16.mxu0 0
        %835 = vmatpush1.bf16.msra.mxu0 0
        %836 = vmatprep.subr.bf16.mxu0 0
        %837 = vmatpush1.bf16.msra.mxu0 0
        %838 = vmatprep.subr.bf16.mxu0 0
        %839 = vmatpush1.bf16.msra.mxu0 0
        %840 = vmatprep.subr.bf16.mxu0 0
        %841 = vmatpush1.bf16.msra.mxu0 0
        %842 = vmatprep.subr.bf16.mxu0 0
        %843 = vmatpush1.bf16.msra.mxu0 0
        %844 = vmatprep.subr.bf16.mxu0 0
        %845 = vmatpush1.bf16.msra.mxu0 0
        %846 = vmatprep.subr.bf16.mxu0 0
        %847 = vmatpush1.bf16.msra.mxu0 0
        %848 = vmatprep.subr.bf16.mxu0 0
        %849 = vmatpush1.bf16.msra.mxu0 0
        %850 = vmatprep.subr.bf16.mxu0 0
        %851 = vmatpush1.bf16.msra.mxu0 0
        %852 = vmatprep.mubr.bf16.mxu0 0
        %853 = vmatmul.mubr.bf16.gmra.mrb[0].mxu0 %v814
        %v854 = vpop.f32.mrb[0].mxu0
        %v855 = vadd.f32 0.0, %v854
        %v856 = vpop.f32.mrb[0].mxu0
        %v857 = vpop.f32.mrb[0].mxu0
        %v858 = vpop.f32.mrb[0].mxu0
        %859 = vdwg.mxu0
        %860 = vrot.lane.b32.xlu0 %v744, 112
        %v861 = vpop.permute.xlu0 %860
        %862 = vrot.lane.b32.xlu0 %v744, 80
        %v863 = vpop.permute.xlu0 %862
        %v865 = vsel %vm748, %v861, 0
        %v868 = vsel %vm748, %v863, 0
        %870 = vmatprep.subr.bf16.mxu0 0
        %871 = vmatpush1.bf16.xpose.msra.mxu0 %v868
        %872 = vmatprep.subr.bf16.mxu0 0
        %873 = vmatpush1.bf16.xpose.msra.mxu0 0
        %874 = vmatprep.subr.bf16.mxu0 0
        %875 = vmatpush1.bf16.xpose.msra.mxu0 0
        %876 = vmatprep.subr.bf16.mxu0 0
        %877 = vmatpush1.bf16.xpose.msra.mxu0 0
        %878 = vmatprep.subr.bf16.mxu0 0
        %879 = vmatpush1.bf16.xpose.msra.mxu0 0
        %880 = vmatprep.subr.bf16.mxu0 0
        %881 = vmatpush1.bf16.xpose.msra.mxu0 0
        %882 = vmatprep.subr.bf16.mxu0 0
        %883 = vmatpush1.bf16.xpose.msra.mxu0 0
        %884 = vmatprep.subr.bf16.mxu0 0
        %885 = vmatpush1.bf16.xpose.msra.mxu0 0
        %886 = vmatprep.subr.bf16.mxu0 0
        %887 = vmatpush1.bf16.xpose.msra.mxu0 0
        %888 = vmatprep.subr.bf16.mxu0 0
        %889 = vmatpush1.bf16.xpose.msra.mxu0 0
        %890 = vmatprep.subr.bf16.mxu0 0
        %891 = vmatpush1.bf16.xpose.msra.mxu0 0
        %892 = vmatprep.subr.bf16.mxu0 0
        %893 = vmatpush1.bf16.xpose.msra.mxu0 0
        %894 = vmatprep.subr.bf16.mxu0 0
        %895 = vmatpush1.bf16.xpose.msra.mxu0 0
        %896 = vmatprep.subr.bf16.mxu0 0
        %897 = vmatpush1.bf16.xpose.msra.mxu0 0
        %898 = vmatprep.subr.bf16.mxu0 0
        %899 = vmatpush1.bf16.xpose.msra.mxu0 0
        %900 = vmatprep.subr.bf16.mxu0 0
        %901 = vmatpush1.bf16.xpose.msra.mxu0 0
        %902 = vmatprep.mubr.bf16.mxu0 0
        %903 = vmatmul.mubr.bf16.gmra.mrb[0].mxu0 %v865
        %v904 = vpop.f32.mrb[0].mxu0
        %v905 = vadd.f32 0.0, %v904
        %v906 = vpop.f32.mrb[0].mxu0
        %v907 = vpop.f32.mrb[0].mxu0
        %v908 = vpop.f32.mrb[0].mxu0
        %909 = vdwg.mxu0
        %v910 = vsel %vm795, %v905, -inf
        %911 = vmax.xlane.f32.xlu0 %v910
        %v912 = vpop.xlane.xlu0 %911
        %v913 = vsub.f32 %v905, %v912
        %v914 = vmul.f32 %v913, 1.442695
        %v915 = vpow.pop %v914
        %v916 = vsel %vm795, %v915, 0.0
        %917 = vadd.xlane.f32.xlu0 %v916
        %v918 = vpop.xlane.xlu0 %917
        %v919 = vrcp.pop %v918
        %v920 = vmul.f32 %v915, %v919
        %v921 = vrcp.pop %v918
        %v922 = vmul.f32 %v915, %v921
        %s923 = scalar_lea.vmem %s650, 8 [#allocation15]
        %924 = vst.msk [vmem:[%s923] sm:$0xff] %vm795, %v922
        %v925 = vpack.c.bf16 %v920, %v920
        %926 = vrot.lane.b32.xlu0 %v744, 48
        %v927 = vpop.permute.xlu0 %926
        %v929 = vsel %vm795, %v925, 0
        %v932 = vsel %vm816, %v927, 0
        %934 = vmatprep.subr.bf16.mxu0 0
        %935 = vmatpush1.bf16.msra.mxu0 %v932
        %936 = vmatprep.subr.bf16.mxu0 0
        %937 = vmatpush1.bf16.msra.mxu0 0
        %938 = vmatprep.subr.bf16.mxu0 0
        %939 = vmatpush1.bf16.msra.mxu0 0
        %940 = vmatprep.subr.bf16.mxu0 0
        %941 = vmatpush1.bf16.msra.mxu0 0
        %942 = vmatprep.subr.bf16.mxu0 0
        %943 = vmatpush1.bf16.msra.mxu0 0
        %944 = vmatprep.subr.bf16.mxu0 0
        %945 = vmatpush1.bf16.msra.mxu0 0
        %946 = vmatprep.subr.bf16.mxu0 0
        %947 = vmatpush1.bf16.msra.mxu0 0
        %948 = vmatprep.subr.bf16.mxu0 0
        %949 = vmatpush1.bf16.msra.mxu0 0
        %950 = vmatprep.subr.bf16.mxu0 0
        %951 = vmatpush1.bf16.msra.mxu0 0
        %952 = vmatprep.subr.bf16.mxu0 0
        %953 = vmatpush1.bf16.msra.mxu0 0
        %954 = vmatprep.subr.bf16.mxu0 0
        %955 = vmatpush1.bf16.msra.mxu0 0
        %956 = vmatprep.subr.bf16.mxu0 0
        %957 = vmatpush1.bf16.msra.mxu0 0
        %958 = vmatprep.subr.bf16.mxu0 0
        %959 = vmatpush1.bf16.msra.mxu0 0
        %960 = vmatprep.subr.bf16.mxu0 0
        %961 = vmatpush1.bf16.msra.mxu0 0
        %962 = vmatprep.subr.bf16.mxu0 0
        %963 = vmatpush1.bf16.msra.mxu0 0
        %964 = vmatprep.subr.bf16.mxu0 0
        %965 = vmatpush1.bf16.msra.mxu0 0
        %966 = vmatprep.mubr.bf16.mxu0 0
        %967 = vmatmul.mubr.bf16.gmra.mrb[0].mxu0 %v929
        %v968 = vpop.f32.mrb[0].mxu0
        %v969 = vadd.f32 0.0, %v968
        %v970 = vpop.f32.mrb[0].mxu0
        %v971 = vpop.f32.mrb[0].mxu0
        %v972 = vpop.f32.mrb[0].mxu0
        %973 = vdwg.mxu0
        %975 = vrot.lane.b32.xlu0 %v969, 16
        %v976 = vpop.permute.xlu0 %975
        %v978 = vsel %vm748, %v855, %v976
        %v979 = vpack.c.bf16 %v978, %v978
        %v980 = vld [vmem:[%s3] sm:$0xf]
        %v981 = vld [vmem:[%s3 + $0x4] sm:$0xf]
        %v982 = vld [vmem:[%s3 + $0x8] sm:$0xf]
        %v983 = vld [vmem:[%s3 + $0xc] sm:$0xf]
        %v988 = vunpack.c.l.b16 %v980
        %v989 = vunpack.c.l.b16 %v981
        %v990 = vunpack.c.l.b16 %v982
        %v991 = vunpack.c.l.b16 %v983
        %v992 = vpack.c.b16 %v989, %v988
        %v993 = vpack.c.b16 %v991, %v990
        %v997 = vsel %vm659, %v979, 0
        %999 = vmatprep.subr.bf16.mxu0 0
        %1000 = vmatpush1.bf16.msra.mxu0 %v992
        %1001 = vmatprep.subr.bf16.mxu0 0
        %1002 = vmatpush1.bf16.msra.mxu0 %v993
        %1003 = vmatprep.subr.bf16.mxu0 0
        %1004 = vmatpush1.bf16.msra.mxu0 0
        %1005 = vmatprep.subr.bf16.mxu0 0
        %1006 = vmatpush1.bf16.msra.mxu0 0
        %1007 = vmatprep.subr.bf16.mxu0 0
        %1008 = vmatpush1.bf16.msra.mxu0 0
        %1009 = vmatprep.subr.bf16.mxu0 0
        %1010 = vmatpush1.bf16.msra.mxu0 0
        %1011 = vmatprep.subr.bf16.mxu0 0
        %1012 = vmatpush1.bf16.msra.mxu0 0
        %1013 = vmatprep.subr.bf16.mxu0 0
        %1014 = vmatpush1.bf16.msra.mxu0 0
        %1015 = vmatprep.subr.bf16.mxu0 0
        %1016 = vmatpush1.bf16.msra.mxu0 0
        %1017 = vmatprep.subr.bf16.mxu0 0
        %1018 = vmatpush1.bf16.msra.mxu0 0
        %1019 = vmatprep.subr.bf16.mxu0 0
        %1020 = vmatpush1.bf16.msra.mxu0 0
        %1021 = vmatprep.subr.bf16.mxu0 0
        %1022 = vmatpush1.bf16.msra.mxu0 0
        %1023 = vmatprep.subr.bf16.mxu0 0
        %1024 = vmatpush1.bf16.msra.mxu0 0
        %1025 = vmatprep.subr.bf16.mxu0 0
        %1026 = vmatpush1.bf16.msra.mxu0 0
        %1027 = vmatprep.subr.bf16.mxu0 0
        %1028 = vmatpush1.bf16.msra.mxu0 0
        %1029 = vmatprep.subr.bf16.mxu0 0
        %1030 = vmatpush1.bf16.msra.mxu0 0
        %1031 = vmatprep.mubr.bf16.mxu0 0
        %1032 = vmatmul.mubr.bf16.gmra.mrb[0].mxu0 %v997
        %v1033 = vpop.f32.mrb[0].mxu0
        %v1034 = vadd.f32 0.0, %v1033
        %v1035 = vpop.f32.mrb[0].mxu0
        %v1036 = vpop.f32.mrb[0].mxu0
        %v1037 = vpop.f32.mrb[0].mxu0
        %1038 = vdwg.mxu0
        %v1039 = vpack.c.bf16 %v656, %v656
        %v1040 = vpack.c.bf16 %v1034, %v1034
        %v1041 = vld [vmem:[#allocation5] sm:$0xf]
        %v1042 = vld [vmem:[#allocation5 + $0x4] sm:$0xf]
        %v1043 = vld [vmem:[#allocation5 + $0x8] sm:$0xf]
        %v1044 = vld [vmem:[#allocation5 + $0xc] sm:$0xf]
        %v1045 = vld [vmem:[%s7] sm:$0x1]
        %v1047 = vlaneseq
        %v1048 = vshrl.u32 %v1047, 7
        %v1049 = vsub.s32 0, %v1048
        %v1050 = vrot.slane %v1045, %v1049
        %v1056 = vunpack.c.l.b16 %v1041
        %v1057 = vunpack.c.l.b16 %v1042
        %v1058 = vunpack.c.l.b16 %v1043
        %v1059 = vunpack.c.l.b16 %v1044
        %v1060 = vpack.c.b16 %v1057, %v1056
        %v1061 = vpack.c.b16 %v1059, %v1058
        %v1065 = vsel %vm659, %v1040, 0
        %1067 = vmatprep.subr.bf16.mxu0 0
        %1068 = vmatpush1.bf16.msra.mxu0 %v1060
        %1069 = vmatprep.subr.bf16.mxu0 0
        %1070 = vmatpush1.bf16.msra.mxu0 %v1061
        %1071 = vmatprep.subr.bf16.mxu0 0
        %1072 = vmatpush1.bf16.msra.mxu0 0
        %1073 = vmatprep.subr.bf16.mxu0 0
        %1074 = vmatpush1.bf16.msra.mxu0 0
        %1075 = vmatprep.subr.bf16.mxu0 0
        %1076 = vmatpush1.bf16.msra.mxu0 0
        %1077 = vmatprep.subr.bf16.mxu0 0
        %1078 = vmatpush1.bf16.msra.mxu0 0
        %1079 = vmatprep.subr.bf16.mxu0 0
        %1080 = vmatpush1.bf16.msra.mxu0 0
        %1081 = vmatprep.subr.bf16.mxu0 0
        %1082 = vmatpush1.bf16.msra.mxu0 0
        %1083 = vmatprep.subr.bf16.mxu0 0
        %1084 = vmatpush1.bf16.msra.mxu0 0
        %1085 = vmatprep.subr.bf16.mxu0 0
        %1086 = vmatpush1.bf16.msra.mxu0 0
        %1087 = vmatprep.subr.bf16.mxu0 0
        %1088 = vmatpush1.bf16.msra.mxu0 0
        %1089 = vmatprep.subr.bf16.mxu0 0
        %1090 = vmatpush1.bf16.msra.mxu0 0
        %1091 = vmatprep.subr.bf16.mxu0 0
        %1092 = vmatpush1.bf16.msra.mxu0 0
        %1093 = vmatprep.subr.bf16.mxu0 0
        %1094 = vmatpush1.bf16.msra.mxu0 0
        %1095 = vmatprep.subr.bf16.mxu0 0
        %1096 = vmatpush1.bf16.msra.mxu0 0
        %1097 = vmatprep.subr.bf16.mxu0 0
        %1098 = vmatpush1.bf16.msra.mxu0 0
        %1099 = vmatprep.mubr.bf16.mxu0 0
        %1100 = vmatmul.mubr.bf16.gmra.mrb[0].mxu0 %v1065
        %v1101 = vpop.f32.mrb[0].mxu0
        %v1102 = vadd.f32 %v1050, %v1101
        %v1103 = vpop.f32.mrb[0].mxu0
        %v1104 = vpop.f32.mrb[0].mxu0
        %v1105 = vpop.f32.mrb[0].mxu0
        %1106 = vdwg.mxu0
        %v1107 = vld [vmem:[#allocation7] sm:$0xf]
        %v1108 = vld [vmem:[#allocation7 + $0x4] sm:$0xf]
        %v1109 = vld [vmem:[#allocation7 + $0x8] sm:$0xf]
        %v1110 = vld [vmem:[#allocation7 + $0xc] sm:$0xf]
        %v1115 = vunpack.c.l.b16 %v1107
        %v1116 = vunpack.c.l.b16 %v1108
        %v1117 = vunpack.c.l.b16 %v1109
        %v1118 = vunpack.c.l.b16 %v1110
        %v1119 = vpack.c.b16 %v1116, %v1115
        %v1120 = vpack.c.b16 %v1118, %v1117
        %v1124 = vsel %vm659, %v1039, 0
        %1126 = vmatprep.subr.bf16.mxu0 0
        %1127 = vmatpush1.bf16.msra.mxu0 %v1119
        %1128 = vmatprep.subr.bf16.mxu0 0
        %1129 = vmatpush1.bf16.msra.mxu0 %v1120
        %1130 = vmatprep.subr.bf16.mxu0 0
        %1131 = vmatpush1.bf16.msra.mxu0 0
        %1132 = vmatprep.subr.bf16.mxu0 0
        %1133 = vmatpush1.bf16.msra.mxu0 0
        %1134 = vmatprep.subr.bf16.mxu0 0
        %1135 = vmatpush1.bf16.msra.mxu0 0
        %1136 = vmatprep.subr.bf16.mxu0 0
        %1137 = vmatpush1.bf16.msra.mxu0 0
        %1138 = vmatprep.subr.bf16.mxu0 0
        %1139 = vmatpush1.bf16.msra.mxu0 0
        %1140 = vmatprep.subr.bf16.mxu0 0
        %1141 = vmatpush1.bf16.msra.mxu0 0
        %1142 = vmatprep.subr.bf16.mxu0 0
        %1143 = vmatpush1.bf16.msra.mxu0 0
        %1144 = vmatprep.subr.bf16.mxu0 0
        %1145 = vmatpush1.bf16.msra.mxu0 0
        %1146 = vmatprep.subr.bf16.mxu0 0
        %1147 = vmatpush1.bf16.msra.mxu0 0
        %1148 = vmatprep.subr.bf16.mxu0 0
        %1149 = vmatpush1.bf16.msra.mxu0 0
        %1150 = vmatprep.subr.bf16.mxu0 0
        %1151 = vmatpush1.bf16.msra.mxu0 0
        %1152 = vmatprep.subr.bf16.mxu0 0
        %1153 = vmatpush1.bf16.msra.mxu0 0
        %1154 = vmatprep.subr.bf16.mxu0 0
        %1155 = vmatpush1.bf16.msra.mxu0 0
        %1156 = vmatprep.subr.bf16.mxu0 0
        %1157 = vmatpush1.bf16.msra.mxu0 0
        %1158 = vmatprep.mubr.bf16.mxu0 0
        %1159 = vmatmul.mubr.bf16.gmra.mrb[0].mxu0 %v1124
        %v1160 = vpop.f32.mrb[0].mxu0
        %v1161 = vadd.f32 0.0, %v1160
        %v1162 = vpop.f32.mrb[0].mxu0
        %v1163 = vpop.f32.mrb[0].mxu0
        %v1164 = vpop.f32.mrb[0].mxu0
        %1165 = vdwg.mxu0
        %v1166 = vadd.f32 %v1102, %v1161
        %v1167 = vxor.u32 %v1166, 2147483648
        %v1168 = vmul.f32 %v1167, 1.442695
        %v1169 = vpow.pop %v1168
        %v1170 = vadd.f32 %v1169, 1.0
        %v1171 = vrcp.pop %v1170
        %v1172 = vmul.f32 1.0, %v1171
        %v1173 = vmul.f32 %v1172, %v656
        %v1174 = vpack.c.bf16 %v1173, %v1173
        %v1175 = vld [vmem:[#allocation8] sm:$0xf]
        %v1176 = vld [vmem:[#allocation8 + $0x4] sm:$0xf]
        %v1177 = vld [vmem:[#allocation8 + $0x8] sm:$0xf]
        %v1178 = vld [vmem:[#allocation8 + $0xc] sm:$0xf]
        %v1183 = vunpack.c.l.b16 %v1175
        %v1184 = vunpack.c.l.b16 %v1176
        %v1185 = vunpack.c.l.b16 %v1177
        %v1186 = vunpack.c.l.b16 %v1178
        %v1187 = vpack.c.b16 %v1184, %v1183
        %v1188 = vpack.c.b16 %v1186, %v1185
        %v1192 = vsel %vm659, %v1174, 0
        %1194 = vmatprep.subr.bf16.mxu0 0
        %1195 = vmatpush1.bf16.msra.mxu0 %v1187
        %1196 = vmatprep.subr.bf16.mxu0 0
        %1197 = vmatpush1.bf16.msra.mxu0 %v1188
        %1198 = vmatprep.subr.bf16.mxu0 0
        %1199 = vmatpush1.bf16.msra.mxu0 0
        %1200 = vmatprep.subr.bf16.mxu0 0
        %1201 = vmatpush1.bf16.msra.mxu0 0
        %1202 = vmatprep.subr.bf16.mxu0 0
        %1203 = vmatpush1.bf16.msra.mxu0 0
        %1204 = vmatprep.subr.bf16.mxu0 0
        %1205 = vmatpush1.bf16.msra.mxu0 0
        %1206 = vmatprep.subr.bf16.mxu0 0
        %1207 = vmatpush1.bf16.msra.mxu0 0
        %1208 = vmatprep.subr.bf16.mxu0 0
        %1209 = vmatpush1.bf16.msra.mxu0 0
        %1210 = vmatprep.subr.bf16.mxu0 0
        %1211 = vmatpush1.bf16.msra.mxu0 0
        %1212 = vmatprep.subr.bf16.mxu0 0
        %1213 = vmatpush1.bf16.msra.mxu0 0
        %1214 = vmatprep.subr.bf16.mxu0 0
        %1215 = vmatpush1.bf16.msra.mxu0 0
        %1216 = vmatprep.subr.bf16.mxu0 0
        %1217 = vmatpush1.bf16.msra.mxu0 0
        %1218 = vmatprep.subr.bf16.mxu0 0
        %1219 = vmatpush1.bf16.msra.mxu0 0
        %1220 = vmatprep.subr.bf16.mxu0 0
        %1221 = vmatpush1.bf16.msra.mxu0 0
        %1222 = vmatprep.subr.bf16.mxu0 0
        %1223 = vmatpush1.bf16.msra.mxu0 0
        %1224 = vmatprep.subr.bf16.mxu0 0
        %1225 = vmatpush1.bf16.msra.mxu0 0
        %1226 = vmatprep.mubr.bf16.mxu0 0
        %1227 = vmatmul.mubr.bf16.gmra.mrb[0].mxu0 %v1192
        %v1228 = vpop.f32.mrb[0].mxu0
        %v1229 = vadd.f32 0.0, %v1228
        %v1230 = vpop.f32.mrb[0].mxu0
        %v1231 = vpop.f32.mrb[0].mxu0
        %v1232 = vpop.f32.mrb[0].mxu0
        %1233 = vdwg.mxu0
        %1235 = vrot.lane.b32.xlu0 %v1229, 64
        %v1236 = vpop.permute.xlu0 %1235
        %v1238 = vadd.f32 %v1102, %v1236
        %v1239 = vtanh.pop %v1238
        %v1240 = vsub.f32 1.0, %v1172
        %1242 = vrot.lane.b32.xlu0 %v656, 32
        %v1243 = vpop.permute.xlu0 %1242
        %v1245 = vmul.f32 %v1240, %v1243
        %1247 = vrot.lane.b32.xlu0 %v1239, 96
        %v1248 = vpop.permute.xlu0 %1247
        %v1250 = vmul.f32 %v1172, %v1248
        %v1251 = vadd.f32 %v1245, %v1250
        %v1252 = vld [vmem:[#allocation2 + $0x2] sm:$0x1]
        %v1253 = vld [vmem:[#allocation2 + $0x3] sm:$0x1]
        %1255 = vrot.lane.b32.xlu0 %v1251, 96
        %v1256 = vpop.permute.xlu0 %1255
        %v1258 = vsel %vm659, %v1256, 0.0
        %1259 = vadd.xlane.f32.xlu0 %v1258
        %v1260 = vpop.xlane.xlu0 %1259
        %v1261 = vmul.f32 %v1260, %v663
        %v1262 = vsub.f32 %v1251, %v1261
        %v1263 = vmul.f32 %v1262, %v1262
        %1265 = vrot.lane.b32.xlu0 %v1263, 96
        %v1266 = vpop.permute.xlu0 %1265
        %v1268 = vsel %vm659, %v1266, 0.0
        %1269 = vadd.xlane.f32.xlu0 %v1268
        %v1270 = vpop.xlane.xlu0 %1269
        %v1271 = vmul.f32 %v1270, %v663
        %v1272 = vadd.f32 %v1271, 1e-06
        %v1273 = vrsqrt.pop %v1272
        %v1274 = vmul.f32 %v1262, %v1273
        %v1275 = vlaneseq
        %v1276 = vshrl.u32 %v1275, 7
        %v1277 = vsub.s32 0, %v1276
        %v1278 = vrot.slane %v1252, %v1277
        %1280 = vrot.lane.b32.xlu0 %v1278, 32
        %v1281 = vpop.permute.xlu0 %1280
        %v1283 = vmul.f32 %v1274, %v1281
        %v1284 = vlaneseq
        %v1285 = vshrl.u32 %v1284, 7
        %v1286 = vsub.s32 0, %v1285
        %v1287 = vrot.slane %v1253, %v1286
        %1289 = vrot.lane.b32.xlu0 %v1287, 32
        %v1290 = vpop.permute.xlu0 %1289
        %v1292 = vadd.f32 %v1283, %v1290
        %v1293 = vpack.c.bf16 %v1292, %v1292
        %v1294 = vld [vmem:[#allocation13] sm:$0xf]
        %v1295 = vld [vmem:[#allocation13 + $0x4] sm:$0xf]
        %v1296 = vld [vmem:[#allocation13 + $0x8] sm:$0xf]
        %v1297 = vld [vmem:[#allocation13 + $0xc] sm:$0xf]
        %v1298 = vld [vmem:[%s13] sm:$0x1]
        %v1300 = vlaneseq
        %v1301 = vshrl.u32 %v1300, 7
        %v1302 = vsub.s32 0, %v1301
        %v1303 = vrot.slane %v1298, %v1302
        %1306 = vrot.lane.b32.xlu0 %v1293, 96
        %v1307 = vpop.permute.xlu0 %1306
        %v1312 = vunpack.c.l.b16 %v1294
        %v1313 = vunpack.c.l.b16 %v1295
        %v1314 = vunpack.c.l.b16 %v1296
        %v1315 = vunpack.c.l.b16 %v1297
        %v1316 = vpack.c.b16 %v1313, %v1312
        %v1317 = vpack.c.b16 %v1315, %v1314
        %v1321 = vsel %vm659, %v1307, 0
        %1323 = vmatprep.subr.bf16.mxu0 0
        %1324 = vmatpush1.bf16.msra.mxu0 %v1316
        %1325 = vmatprep.subr.bf16.mxu0 0
        %1326 = vmatpush1.bf16.msra.mxu0 %v1317
        %1327 = vmatprep.subr.bf16.mxu0 0
        %1328 = vmatpush1.bf16.msra.mxu0 0
        %1329 = vmatprep.subr.bf16.mxu0 0
        %1330 = vmatpush1.bf16.msra.mxu0 0
        %1331 = vmatprep.subr.bf16.mxu0 0
        %1332 = vmatpush1.bf16.msra.mxu0 0
        %1333 = vmatprep.subr.bf16.mxu0 0
        %1334 = vmatpush1.bf16.msra.mxu0 0
        %1335 = vmatprep.subr.bf16.mxu0 0
        %1336 = vmatpush1.bf16.msra.mxu0 0
        %1337 = vmatprep.subr.bf16.mxu0 0
        %1338 = vmatpush1.bf16.msra.mxu0 0
        %1339 = vmatprep.subr.bf16.mxu0 0
        %1340 = vmatpush1.bf16.msra.mxu0 0
        %1341 = vmatprep.subr.bf16.mxu0 0
        %1342 = vmatpush1.bf16.msra.mxu0 0
        %1343 = vmatprep.subr.bf16.mxu0 0
        %1344 = vmatpush1.bf16.msra.mxu0 0
        %1345 = vmatprep.subr.bf16.mxu0 0
        %1346 = vmatpush1.bf16.msra.mxu0 0
        %1347 = vmatprep.subr.bf16.mxu0 0
        %1348 = vmatpush1.bf16.msra.mxu0 0
        %1349 = vmatprep.subr.bf16.mxu0 0
        %1350 = vmatpush1.bf16.msra.mxu0 0
        %1351 = vmatprep.subr.bf16.mxu0 0
        %1352 = vmatpush1.bf16.msra.mxu0 0
        %1353 = vmatprep.subr.bf16.mxu0 0
        %1354 = vmatpush1.bf16.msra.mxu0 0
        %1355 = vmatprep.mubr.bf16.mxu0 0
        %1356 = vmatmul.mubr.bf16.gmra.mrb[0].mxu0 %v1321
        %v1357 = vpop.f32.mrb[0].mxu0
        %v1358 = vadd.f32 %v1303, %v1357
        %v1359 = vpop.f32.mrb[0].mxu0
        %v1360 = vpop.f32.mrb[0].mxu0
        %v1361 = vpop.f32.mrb[0].mxu0
        %1362 = vdwg.mxu0
        %v1363 = vmax.f32 %v1358, 0.0
        %v1364 = vpack.c.bf16 %v1363, %v1363
        %v1365 = vld [vmem:[%s14] sm:$0xf]
        %v1366 = vld [vmem:[%s14 + $0x4] sm:$0xf]
        %v1367 = vld [vmem:[%s14 + $0x8] sm:$0xf]
        %v1368 = vld [vmem:[%s14 + $0xc] sm:$0xf]
        %v1369 = vld [vmem:[%s14 + $0x10] sm:$0xf]
        %v1370 = vld [vmem:[%s14 + $0x14] sm:$0xf]
        %v1371 = vld [vmem:[%s14 + $0x18] sm:$0xf]
        %v1372 = vld [vmem:[%s14 + $0x1c] sm:$0xf]
        %v1373 = vld [vmem:[%s15] sm:$0x1]
        %v1375 = vlaneseq
        %v1376 = vshrl.u32 %v1375, 7
        %v1377 = vsub.s32 0, %v1376
        %v1378 = vrot.slane %v1373, %v1377
        %v1388 = vunpack.c.l.b16 %v1365
        %v1389 = vunpack.c.l.b16 %v1366
        %v1390 = vunpack.c.l.b16 %v1367
        %v1391 = vunpack.c.l.b16 %v1368
        %v1392 = vunpack.c.l.b16 %v1369
        %v1393 = vunpack.c.l.b16 %v1370
        %v1394 = vunpack.c.l.b16 %v1371
        %v1395 = vunpack.c.l.b16 %v1372
        %v1396 = vpack.c.b16 %v1389, %v1388
        %v1397 = vpack.c.b16 %v1391, %v1390
        %v1398 = vpack.c.b16 %v1393, %v1392
        %v1399 = vpack.c.b16 %v1395, %v1394
        %vm1404 = vcmask 523264
        %v1406 = vsel %vm1404, %v1364, 0
        %1408 = vmatprep.subr.bf16.mxu0 0
        %1409 = vmatpush1.bf16.msra.mxu0 %v1396
        %1410 = vmatprep.subr.bf16.mxu0 0
        %1411 = vmatpush1.bf16.msra.mxu0 %v1397
        %1412 = vmatprep.subr.bf16.mxu0 0
        %1413 = vmatpush1.bf16.msra.mxu0 %v1398
        %1414 = vmatprep.subr.bf16.mxu0 0
        %1415 = vmatpush1.bf16.msra.mxu0 %v1399
        %1416 = vmatprep.subr.bf16.mxu0 0
        %1417 = vmatpush1.bf16.msra.mxu0 0
        %1418 = vmatprep.subr.bf16.mxu0 0
        %1419 = vmatpush1.bf16.msra.mxu0 0
        %1420 = vmatprep.subr.bf16.mxu0 0
        %1421 = vmatpush1.bf16.msra.mxu0 0
        %1422 = vmatprep.subr.bf16.mxu0 0
        %1423 = vmatpush1.bf16.msra.mxu0 0
        %1424 = vmatprep.subr.bf16.mxu0 0
        %1425 = vmatpush1.bf16.msra.mxu0 0
        %1426 = vmatprep.subr.bf16.mxu0 0
        %1427 = vmatpush1.bf16.msra.mxu0 0
        %1428 = vmatprep.subr.bf16.mxu0 0
        %1429 = vmatpush1.bf16.msra.mxu0 0
        %1430 = vmatprep.subr.bf16.mxu0 0
        %1431 = vmatpush1.bf16.msra.mxu0 0
        %1432 = vmatprep.subr.bf16.mxu0 0
        %1433 = vmatpush1.bf16.msra.mxu0 0
        %1434 = vmatprep.subr.bf16.mxu0 0
        %1435 = vmatpush1.bf16.msra.mxu0 0
        %1436 = vmatprep.subr.bf16.mxu0 0
        %1437 = vmatpush1.bf16.msra.mxu0 0
        %1438 = vmatprep.subr.bf16.mxu0 0
        %1439 = vmatpush1.bf16.msra.mxu0 0
        %1440 = vmatprep.mubr.bf16.mxu0 0
        %1441 = vmatmul.mubr.bf16.gmra.mrb[0].mxu0 %v1406
        %v1442 = vpop.f32.mrb[0].mxu0
        %v1443 = vadd.f32 %v1378, %v1442
        %v1444 = vpop.f32.mrb[0].mxu0
        %v1445 = vpop.f32.mrb[0].mxu0
        %v1446 = vpop.f32.mrb[0].mxu0
        %1447 = vdwg.mxu0
        %v1448 = vpack.c.bf16 %v1251, %v1251
        %v1449 = vpack.c.bf16 %v1443, %v1443
        %v1450 = vld [vmem:[#allocation10] sm:$0xf]
        %v1451 = vld [vmem:[#allocation10 + $0x4] sm:$0xf]
        %v1452 = vld [vmem:[#allocation10 + $0x8] sm:$0xf]
        %v1453 = vld [vmem:[#allocation10 + $0xc] sm:$0xf]
        %v1454 = vld [vmem:[%s11] sm:$0x1]
        %v1456 = vlaneseq
        %v1457 = vshrl.u32 %v1456, 7
        %v1458 = vsub.s32 0, %v1457
        %v1459 = vrot.slane %v1454, %v1458
        %v1465 = vunpack.c.l.b16 %v1450
        %v1466 = vunpack.c.l.b16 %v1451
        %v1467 = vunpack.c.l.b16 %v1452
        %v1468 = vunpack.c.l.b16 %v1453
        %v1469 = vpack.c.b16 %v1466, %v1465
        %v1470 = vpack.c.b16 %v1468, %v1467
        %v1474 = vsel %vm659, %v1449, 0
        %1476 = vmatprep.subr.bf16.mxu0 0
        %1477 = vmatpush1.bf16.msra.mxu0 %v1469
        %1478 = vmatprep.subr.bf16.mxu0 0
        %1479 = vmatpush1.bf16.msra.mxu0 %v1470
        %1480 = vmatprep.subr.bf16.mxu0 0
        %1481 = vmatpush1.bf16.msra.mxu0 0
        %1482 = vmatprep.subr.bf16.mxu0 0
        %1483 = vmatpush1.bf16.msra.mxu0 0
        %1484 = vmatprep.subr.bf16.mxu0 0
        %1485 = vmatpush1.bf16.msra.mxu0 0
        %1486 = vmatprep.subr.bf16.mxu0 0
        %1487 = vmatpush1.bf16.msra.mxu0 0
        %1488 = vmatprep.subr.bf16.mxu0 0
        %1489 = vmatpush1.bf16.msra.mxu0 0
        %1490 = vmatprep.subr.bf16.mxu0 0
        %1491 = vmatpush1.bf16.msra.mxu0 0
        %1492 = vmatprep.subr.bf16.mxu0 0
        %1493 = vmatpush1.bf16.msra.mxu0 0
        %1494 = vmatprep.subr.bf16.mxu0 0
        %1495 = vmatpush1.bf16.msra.mxu0 0
        %1496 = vmatprep.subr.bf16.mxu0 0
        %1497 = vmatpush1.bf16.msra.mxu0 0
        %1498 = vmatprep.subr.bf16.mxu0 0
        %1499 = vmatpush1.bf16.msra.mxu0 0
        %1500 = vmatprep.subr.bf16.mxu0 0
        %1501 = vmatpush1.bf16.msra.mxu0 0
        %1502 = vmatprep.subr.bf16.mxu0 0
        %1503 = vmatpush1.bf16.msra.mxu0 0
        %1504 = vmatprep.subr.bf16.mxu0 0
        %1505 = vmatpush1.bf16.msra.mxu0 0
        %1506 = vmatprep.subr.bf16.mxu0 0
        %1507 = vmatpush1.bf16.msra.mxu0 0
        %1508 = vmatprep.mubr.bf16.mxu0 0
        %1509 = vmatmul.mubr.bf16.gmra.mrb[0].mxu0 %v1474
        %v1510 = vpop.f32.mrb[0].mxu0
        %v1511 = vadd.f32 %v1459, %v1510
        %v1512 = vpop.f32.mrb[0].mxu0
        %v1513 = vpop.f32.mrb[0].mxu0
        %v1514 = vpop.f32.mrb[0].mxu0
        %1515 = vdwg.mxu0
        %v1516 = vld [vmem:[%s9] sm:$0xf]
        %v1517 = vld [vmem:[%s9 + $0x4] sm:$0xf]
        %v1518 = vld [vmem:[%s9 + $0x8] sm:$0xf]
        %v1519 = vld [vmem:[%s9 + $0xc] sm:$0xf]
        %1521 = vrot.lane.b32.xlu0 %v1448, 96
        %v1522 = vpop.permute.xlu0 %1521
        %v1527 = vunpack.c.l.b16 %v1516
        %v1528 = vunpack.c.l.b16 %v1517
        %v1529 = vunpack.c.l.b16 %v1518
        %v1530 = vunpack.c.l.b16 %v1519
        %v1531 = vpack.c.b16 %v1528, %v1527
        %v1532 = vpack.c.b16 %v1530, %v1529
        %v1536 = vsel %vm659, %v1522, 0
        %1538 = vmatprep.subr.bf16.mxu0 0
        %1539 = vmatpush1.bf16.msra.mxu0 %v1531
        %1540 = vmatprep.subr.bf16.mxu0 0
        %1541 = vmatpush1.bf16.msra.mxu0 %v1532
        %1542 = vmatprep.subr.bf16.mxu0 0
        %1543 = vmatpush1.bf16.msra.mxu0 0
        %1544 = vmatprep.subr.bf16.mxu0 0
        %1545 = vmatpush1.bf16.msra.mxu0 0
        %1546 = vmatprep.subr.bf16.mxu0 0
        %1547 = vmatpush1.bf16.msra.mxu0 0
        %1548 = vmatprep.subr.bf16.mxu0 0
        %1549 = vmatpush1.bf16.msra.mxu0 0
        %1550 = vmatprep.subr.bf16.mxu0 0
        %1551 = vmatpush1.bf16.msra.mxu0 0
        %1552 = vmatprep.subr.bf16.mxu0 0
        %1553 = vmatpush1.bf16.msra.mxu0 0
        %1554 = vmatprep.subr.bf16.mxu0 0
        %1555 = vmatpush1.bf16.msra.mxu0 0
        %1556 = vmatprep.subr.bf16.mxu0 0
        %1557 = vmatpush1.bf16.msra.mxu0 0
        %1558 = vmatprep.subr.bf16.mxu0 0
        %1559 = vmatpush1.bf16.msra.mxu0 0
        %1560 = vmatprep.subr.bf16.mxu0 0
        %1561 = vmatpush1.bf16.msra.mxu0 0
        %1562 = vmatprep.subr.bf16.mxu0 0
        %1563 = vmatpush1.bf16.msra.mxu0 0
        %1564 = vmatprep.subr.bf16.mxu0 0
        %1565 = vmatpush1.bf16.msra.mxu0 0
        %1566 = vmatprep.subr.bf16.mxu0 0
        %1567 = vmatpush1.bf16.msra.mxu0 0
        %1568 = vmatprep.subr.bf16.mxu0 0
        %1569 = vmatpush1.bf16.msra.mxu0 0
        %1570 = vmatprep.mubr.bf16.mxu0 0
        %1571 = vmatmul.mubr.bf16.gmra.mrb[0].mxu0 %v1536
        %v1572 = vpop.f32.mrb[0].mxu0
        %v1573 = vadd.f32 0.0, %v1572
        %v1574 = vpop.f32.mrb[0].mxu0
        %v1575 = vpop.f32.mrb[0].mxu0
        %v1576 = vpop.f32.mrb[0].mxu0
        %1577 = vdwg.mxu0
        %v1578 = vadd.f32 %v1511, %v1573
        %v1579 = vxor.u32 %v1578, 2147483648
        %v1580 = vmul.f32 %v1579, 1.442695
        %v1581 = vpow.pop %v1580
        %v1582 = vadd.f32 %v1581, 1.0
        %v1583 = vrcp.pop %v1582
        %v1584 = vmul.f32 1.0, %v1583
        %v1585 = vmul.f32 %v1584, %v1256
        %v1586 = vpack.c.bf16 %v1585, %v1585
        %v1587 = vld [vmem:[#allocation11] sm:$0xf]
        %v1588 = vld [vmem:[#allocation11 + $0x4] sm:$0xf]
        %v1589 = vld [vmem:[#allocation11 + $0x8] sm:$0xf]
        %v1590 = vld [vmem:[#allocation11 + $0xc] sm:$0xf]
        %v1595 = vunpack.c.l.b16 %v1587
        %v1596 = vunpack.c.l.b16 %v1588
        %v1597 = vunpack.c.l.b16 %v1589
        %v1598 = vunpack.c.l.b16 %v1590
        %v1599 = vpack.c.b16 %v1596, %v1595
        %v1600 = vpack.c.b16 %v1598, %v1597
        %v1604 = vsel %vm659, %v1586, 0
        %1606 = vmatprep.subr.bf16.mxu0 0
        %1607 = vmatpush1.bf16.msra.mxu0 %v1599
        %1608 = vmatprep.subr.bf16.mxu0 0
        %1609 = vmatpush1.bf16.msra.mxu0 %v1600
        %1610 = vmatprep.subr.bf16.mxu0 0
        %1611 = vmatpush1.bf16.msra.mxu0 0
        %1612 = vmatprep.subr.bf16.mxu0 0
        %1613 = vmatpush1.bf16.msra.mxu0 0
        %1614 = vmatprep.subr.bf16.mxu0 0
        %1615 = vmatpush1.bf16.msra.mxu0 0
        %1616 = vmatprep.subr.bf16.mxu0 0
        %1617 = vmatpush1.bf16.msra.mxu0 0
        %1618 = vmatprep.subr.bf16.mxu0 0
        %1619 = vmatpush1.bf16.msra.mxu0 0
        %1620 = vmatprep.subr.bf16.mxu0 0
        %1621 = vmatpush1.bf16.msra.mxu0 0
        %1622 = vmatprep.subr.bf16.mxu0 0
        %1623 = vmatpush1.bf16.msra.mxu0 0
        %1624 = vmatprep.subr.bf16.mxu0 0
        %1625 = vmatpush1.bf16.msra.mxu0 0
        %1626 = vmatprep.subr.bf16.mxu0 0
        %1627 = vmatpush1.bf16.msra.mxu0 0
        %1628 = vmatprep.subr.bf16.mxu0 0
        %1629 = vmatpush1.bf16.msra.mxu0 0
        %1630 = vmatprep.subr.bf16.mxu0 0
        %1631 = vmatpush1.bf16.msra.mxu0 0
        %1632 = vmatprep.subr.bf16.mxu0 0
        %1633 = vmatpush1.bf16.msra.mxu0 0
        %1634 = vmatprep.subr.bf16.mxu0 0
        %1635 = vmatpush1.bf16.msra.mxu0 0
        %1636 = vmatprep.subr.bf16.mxu0 0
        %1637 = vmatpush1.bf16.msra.mxu0 0
        %1638 = vmatprep.mubr.bf16.mxu0 0
        %1639 = vmatmul.mubr.bf16.gmra.mrb[0].mxu0 %v1604
        %v1640 = vpop.f32.mrb[0].mxu0
        %v1641 = vadd.f32 0.0, %v1640
        %v1642 = vpop.f32.mrb[0].mxu0
        %v1643 = vpop.f32.mrb[0].mxu0
        %v1644 = vpop.f32.mrb[0].mxu0
        %1645 = vdwg.mxu0
        %1647 = vrot.lane.b32.xlu0 %v1641, 64
        %v1648 = vpop.permute.xlu0 %1647
        %v1650 = vadd.f32 %v1511, %v1648
        %v1651 = vtanh.pop %v1650
        %v1652 = vsub.f32 1.0, %v1584
        %v1653 = vmul.f32 %v1652, %v1251
        %1655 = vrot.lane.b32.xlu0 %v1651, 96
        %v1656 = vpop.permute.xlu0 %1655
        %v1658 = vmul.f32 %v1584, %v1656
        %v1659 = vadd.f32 %v1653, %v1658
        %1661 = vrot.lane.b32.xlu0 %v1659, 96
        %v1662 = vpop.permute.xlu0 %1661
        %1664 = vst.msk [vmem:[%s643] sm:$0xff] %vm659, %v1662
        %s1665 = sand.u32 %s388, 1
        %s1666 = scalar_lea.sflag [#allocation4], %s1665
        %s1667 = sand.u32 %s388, 1
        %s1668 = smul.addr %s1667, 8
        %s1669 = scalar_lea.vmem [#allocation14], %s1668
        %s1670 = sand.u32 %s414, 1
        %s1671 = scalar_lea.sflag [#allocation16], %s1670
        %s1672 = sand.u32 %s414, 1
        %s1673 = smul.addr %s1672, 16
        %s1674 = scalar_lea.vmem [#allocation15], %s1673
        // Predicated region
        $region113: #{tpu_custom_call.1} parent=83 // pred_check
          %p1675 = pneg %p398
        $region114: #{tpu_custom_call.1} parent=83 // pred_check_branch
          %1677 = sbr.rel (%p1675) target = $region116
        $region115: #{tpu_custom_call.1} parent=83 // pred_region
          %s1679 = ssub.s32 128, 128
          %1680 = vsyncadd %s1666, %s1679
          %s1681 = smul.addr %s39, 128
          %s1682 = scalar_lea.hbm %s16, %s1681
          %s1684 = sshll.u32 %s1669, 4
          %s1685 = int_to_ptr.vmem [resolvable:$true] %s1684
          %1687 = dma.vmem_to_hbm [thread:$0]  %s1685, 128, %s1682, %s1666
        $region116: #{tpu_custom_call.1} parent=83 // pred_fallthru
          _
        // Predicated region
        $region117: #{tpu_custom_call.1} parent=83 // pred_check
          %p1688 = pneg %p424
        $region118: #{tpu_custom_call.1} parent=83 // pred_check_branch
          %1690 = sbr.rel (%p1688) target = $region120
        $region119: #{tpu_custom_call.1} parent=83 // pred_region
          %s1692 = ssub.s32 256, 256
          %1693 = vsyncadd %s1671, %s1692
          %s1694 = smul.addr %s39, 2
          %s1695 = smul.addr %s1694, 128
          %s1696 = scalar_lea.hbm %s17, %s1695
          %s1697 = sshll.u32 %s1674, 4
          %s1698 = int_to_ptr.vmem [resolvable:$true] %s1697
          %1703 = dma.vmem_to_hbm [thread:$0]  %s1698, 256, %s1696, %s1671, 128, 128, 8
        $region120: #{tpu_custom_call.1} parent=83 // pred_fallthru
          _
      $region84: #{tpu_custom_call.1} parent=5 // pred_fallthru
        _
      %p1704 = scmp.le.s32.totalorder 2, %s34
      // Predicated region
      $region121: #{tpu_custom_call.1} parent=5 // pred_check
        %p1705 = pneg %p1704
      $region122: #{tpu_custom_call.1} parent=5 // pred_check_branch
        %1707 = sbr.rel (%p1705) target = $region124
      $region123: #{tpu_custom_call.1} parent=5 // pred_region
        %s1708 = ssub.s32 %s34, 2
        // Predicated region
        $region125: #{tpu_custom_call.1} parent=123 // pred_check
          %p1709 = pneg %p404
        $region126: #{tpu_custom_call.1} parent=123 // pred_check_branch
          %1711 = sbr.rel (%p1709) target = $region128
        $region127: #{tpu_custom_call.1} parent=123 // pred_region
          %s1712 = sand.u32 %s389, 1
          %s1713 = scalar_lea.sflag [#allocation4], %s1712
          %s1714 = sand.u32 %s389, 1
          %s1715 = smul.addr %s1714, 8
          %s1716 = scalar_lea.vmem [#allocation14], %s1715
          %1717 = dma.done %s1713, 128
        $region128: #{tpu_custom_call.1} parent=123 // pred_fallthru
          _
        // Predicated region
        $region129: #{tpu_custom_call.1} parent=123 // pred_check
          %p1718 = pneg %p430
        $region130: #{tpu_custom_call.1} parent=123 // pred_check_branch
          %1720 = sbr.rel (%p1718) target = $region132
        $region131: #{tpu_custom_call.1} parent=123 // pred_region
          %s1721 = sand.u32 %s415, 1
          %s1722 = scalar_lea.sflag [#allocation16], %s1721
          %s1723 = sand.u32 %s415, 1
          %s1724 = smul.addr %s1723, 16
          %s1725 = scalar_lea.vmem [#allocation15], %s1724
          %1726 = dma.done %s1722, 256
        $region132: #{tpu_custom_call.1} parent=123 // pred_fallthru
          _
      $region124: #{tpu_custom_call.1} parent=5 // pred_fallthru
        _
    $region6: #{tpu_custom_call.1} parent=1 // loop_footer
      %s38 = sadd.s32 1, %s34
    $region7: #{tpu_custom_call.1} parent=1 // loop_footer_branch
      %33 = sbr.rel target = $region3
    $region8: #{tpu_custom_call.1} parent=1 // loop_exit
      _
    %1727 = vsyncpa [#allocation3], 1
    %s1728 = scalar_lea.sflag [#allocation3], 1
    %1729 = vsyncpa %s1728, 1
    %1730 = vsyncpa [#allocation6], 1
    %1731 = vsyncpa [#allocation9], 1
    %1732 = vsyncpa [#allocation12], 1
    %1733 = vsyncpa [#allocation4], 1
    %s1734 = scalar_lea.sflag [#allocation4], 1
    %1735 = vsyncpa %s1734, 1
    %1736 = vsyncpa [#allocation16], 1
    %s1737 = scalar_lea.sflag [#allocation16], 1
    %1738 = vsyncpa %s1737, 1

</llo_original>
